<compile_context>
chip_gen: v7x
topology: tpu7x:2x2x1
jax: 0.10.0
libtpu: 0.0.40
codegen_flags: <defaults>
</compile_context>

<pallas_src>
import functools

import jax
import jax.numpy as jnp
from jax import lax
from jax.experimental import pallas as pl
from jax.experimental.pallas import tpu as pltpu


def _round_up(x, m):
    return ((x + m - 1) // m) * m


def _pad2(x, rows, cols, dtype=jnp.float32):
    out = jnp.zeros((rows, cols), dtype)
    return out.at[: x.shape[0], : x.shape[1]].set(x.astype(dtype))


def _tile_targets():
    """(TM target, TK target, vmem_limit_bytes) per chip generation."""
    try:
        kind = jax.devices()[0].device_kind.lower()
    except Exception:
        kind = ""
    if "v5" in kind or "v6" in kind:
        # 128 MiB physical VMEM; these chips are the most HBM-bound, so use
        # the biggest resident blocks (fewest grid steps / nbr re-reads).
        return 1024, 4096, 96 * 1024 * 1024
    # v7x has only 64 MiB VMEM per TensorCore -> conservative budget (also
    # the default for unknown chips).
    return 512, 2048, 48 * 1024 * 1024


def _pow2_tile(n, target):
    """Largest power-of-two multiple of 256 that is <= target and still leaves
    at least two tiles over the 256-padded extent of `n` when possible."""
    t = 256
    n_pad = _round_up(max(n, 1), 256)
    while t * 2 <= target and t * 2 <= n_pad:
        t *= 2
    return t


def make_plan(num_users, num_items):
    tm_t, tk_t, vmem = _tile_targets()
    tm_u = _pow2_tile(num_users, tm_t)   # user-pass destination tile
    tk_u = _pow2_tile(num_items, tk_t)   # user-pass contraction tile
    tm_i = _pow2_tile(num_items, tm_t)   # item-pass destination tile
    tk_i = _pow2_tile(num_users, tk_t)   # item-pass contraction tile
    # All tiles are power-of-two multiples of 256, so padding each node count
    # to the larger of its two tile roles keeps every grid extent integral.
    nu_p = _round_up(num_users, max(tm_u, tk_i))
    ni_p = _round_up(num_items, max(tm_i, tk_u))
    return dict(nu=num_users, ni=num_items, nu_p=nu_p, ni_p=ni_p,
                tm_u=tm_u, tk_u=tk_u, tm_i=tm_i, tk_i=tk_i, vmem=vmem)


def prepare_graph(A_hat, plan):
    """One-time graph prep (run OUTSIDE the jitted forward): padded bf16
    A_hat, a padded bf16 transpose (item pass needs no in-kernel transpose),
    and the layer-invariant per-node edge-norm sums in f32."""
    nu_p, ni_p = plan["nu_p"], plan["ni_p"]
    A_bf = _pad2(A_hat, nu_p, ni_p, jnp.bfloat16)
    A_T_bf = _pad2(A_hat.T, ni_p, nu_p, jnp.bfloat16)
    s_u = _pad2(jnp.sum(A_hat, axis=1, keepdims=True), nu_p, 1, jnp.float32)
    s_i = _pad2(jnp.sum(A_hat, axis=0)[:, None], ni_p, 1, jnp.float32)
    return dict(A_bf=A_bf, A_T_bf=A_T_bf, s_u=s_u, s_i=s_i)


# --------------------------- fused layer kernel ---------------------------

def _fused_layer_kernel(a_ref, nbr_ref, self_ref, s_ref, w1_ref, w2_ref,
                        b1_ref, bsum_ref, o_ref, obf_ref, acc_ref):
    """Grid step (i, k): accumulate agg += A_hat[i-tile, k-tile] @ nbr[k-tile];
    on the last k step apply the fused NGCF transform and store the
    normalized embeddings (f32 and bf16 copies)."""
    k = pl.program_id(1)

    @pl.when(k == 0)
    def _():
        acc_ref[...] = jnp.zeros_like(acc_ref)

    # Neighbor aggregation: bf16 MXU inputs, f32 accumulation.
    acc_ref[...] += jnp.dot(a_ref[...], nbr_ref[...],
                            preferred_element_type=jnp.float32)

    @pl.when(k == pl.num_programs(1) - 1)
    def _():
        agg = acc_ref[...]                    # (TM, Din) f32
        feat = self_ref[...]                  # (TM, Din) f32
        # Two MXU dots against static W1 / W2 refs (no lane-axis concat copy),
        # bf16 inputs with f32 accumulation.
        xs = (agg + feat).astype(jnp.bfloat16)
        xm = (agg * feat).astype(jnp.bfloat16)
        h = jnp.dot(xs, w1_ref[...], preferred_element_type=jnp.float32)
        h = h + jnp.dot(xm, w2_ref[...], preferred_element_type=jnp.float32)
        # rowbias = (1 + s) * b1 + s * b2 = b1 + s * (b1 + b2)
        h = h + b1_ref[...] + s_ref[...] * bsum_ref[...]
        h = jnp.where(h >= 0.0, h, 0.2 * h)   # LeakyReLU(0.2)
        # dropout: identity (eval mode)
        # F.normalize(p=2, dim=1); eps expressed on the squared norm (1e-24).
        ss = jnp.sum(h * h, axis=1, keepdims=True)
        hn = h * lax.rsqrt(jnp.maximum(ss, 1e-24))
        o_ref[...] = hn
        obf_ref[...] = hn.astype(jnp.bfloat16)


def fused_ngcf_layer(a_bf, nbr_bf, self_f32, s_col, w1_bf, w2_bf,
                     b1_row, bsum_row, *, tm, tk, vmem_limit):
    """Aggregate + transform one node type.

    a_bf     : (n_dst, n_src) bf16 normalized adjacency (already transposed
               for the item pass), zero-padded.
    nbr_bf   : (n_src, d_in)  bf16 neighbor features.
    self_f32 : (n_dst, d_in)  f32 own features.
    s_col    : (n_dst, 1)     f32 sum of incident edge norms (precomputed).
    Returns (f32 embeddings, bf16 embeddings), both (n_dst, d_out).
    """
    n_dst, n_src = a_bf.shape
    d_in = self_f32.shape[1]
    d_out = w1_bf.shape[1]
    assert n_dst % tm == 0 and n_src % tk == 0
    assert d_in % 128 == 0 and d_out % 128 == 0
    assert nbr_bf.shape == (n_src, d_in)
    assert w1_bf.shape == (d_in, d_out) and w2_bf.shape == (d_in, d_out)

    grid = (n_dst // tm, n_src // tk)
    return pl.pallas_call(
        _fused_layer_kernel,
        out_shape=(jax.ShapeDtypeStruct((n_dst, d_out), jnp.float32),
                   jax.ShapeDtypeStruct((n_dst, d_out), jnp.bfloat16)),
        grid=grid,
        in_specs=[
            pl.BlockSpec((tm, tk), lambda i, k: (i, k)),        # A_hat tile
            pl.BlockSpec((tk, d_in), lambda i, k: (k, 0)),      # neighbor feats
            pl.BlockSpec((tm, d_in), lambda i, k: (i, 0)),      # own feats
            pl.BlockSpec((tm, 1), lambda i, k: (i, 0)),         # edge-norm sums
            pl.BlockSpec((d_in, d_out), lambda i, k: (0, 0)),   # W1 (bf16)
            pl.BlockSpec((d_in, d_out), lambda i, k: (0, 0)),   # W2 (bf16)
            pl.BlockSpec((1, d_out), lambda i, k: (0, 0)),      # b1
            pl.BlockSpec((1, d_out), lambda i, k: (0, 0)),      # b1 + b2
        ],
        out_specs=(pl.BlockSpec((tm, d_out), lambda i, k: (i, 0)),
                   pl.BlockSpec((tm, d_out), lambda i, k: (i, 0))),
        scratch_shapes=[pltpu.VMEM((tm, d_in), jnp.float32)],   # agg accumulator
        compiler_params=pltpu.CompilerParams(
            # destination-row axis parallel (megacore / 2-TC sharding),
            # contraction axis is the reduction -> arbitrary and last.
            dimension_semantics=("parallel", "arbitrary"),
            vmem_limit_bytes=vmem_limit,
        ),
    )(a_bf, nbr_bf, self_f32, s_col, w1_bf, w2_bf, b1_row, bsum_row)


# --------------------------- NGCF forward (glue) ---------------------------

def ngcf_forward(graph, user_feat, item_feat, weights,
                 users, pos_items, neg_items, *, plan):
    """weights: list of (W1[in,out], b1[out], W2[in,out], b2[out]) per layer."""
    Nu, Ni = plan["nu"], plan["ni"]
    nu_p, ni_p = plan["nu_p"], plan["ni_p"]
    d_in_p = _round_up(user_feat.shape[1], 128)

    U_f32 = _pad2(user_feat, nu_p, d_in_p)
    V_f32 = _pad2(item_feat, ni_p, d_in_p)
    U_bf = U_f32.astype(jnp.bfloat16)
    V_bf = V_f32.astype(jnp.bfloat16)

    user_embeds = [user_feat]
    item_embeds = [item_feat]
    for (w1, b1, w2, b2) in weights:
        d_out = w1.shape[1]
        d_out_p = _round_up(d_out, 128)
        w1_bf = _pad2(w1, d_in_p, d_out_p, jnp.bfloat16)
        w2_bf = _pad2(w2, d_in_p, d_out_p, jnp.bfloat16)
        b1row = _pad2(b1.reshape(1, -1), 1, d_out_p)
        bsum = _pad2((b1 + b2).reshape(1, -1), 1, d_out_p)

        # users <- A_hat @ V ; items <- A_hat^T @ U (pre-transposed bf16 copy).
        U_new, U_new_bf = fused_ngcf_layer(
            graph["A_bf"], V_bf, U_f32, graph["s_u"], w1_bf, w2_bf,
            b1row, bsum, tm=plan["tm_u"], tk=plan["tk_u"],
            vmem_limit=plan["vmem"])
        V_new, V_new_bf = fused_ngcf_layer(
            graph["A_T_bf"], U_bf, V_f32, graph["s_i"], w1_bf, w2_bf,
            b1row, bsum, tm=plan["tm_i"], tk=plan["tk_i"],
            vmem_limit=plan["vmem"])

        U_f32, V_f32 = U_new, V_new
        U_bf, V_bf = U_new_bf, V_new_bf      # bf16 copies straight from kernel
        d_in_p = d_out_p
        user_embeds.append(U_f32[:Nu, :d_out])
        item_embeds.append(V_f32[:Ni, :d_out])

    user_embd = jnp.concatenate(user_embeds, axis=1)
    item_embd = jnp.concatenate(item_embeds, axis=1)
    return user_embd[users, :], item_embd[pos_items, :], item_embd[neg_items, :]


# --------------------------- reference & demo ---------------------------

def ngcf_reference(A_hat, user_feat, item_feat, weights,
                   users, pos_items, neg_items):
    """Plain-JAX f32 reference of the same dense NGCF formulation."""
    s_u = jnp.sum(A_hat, axis=1, keepdims=True)
    s_i = jnp.sum(A_hat, axis=0)[:, None]
    U, V = user_feat, item_feat
    ue, ie = [U], [V]
    for (w1, b1, w2, b2) in weights:
        agg_u = A_hat @ V
        agg_v = A_hat.T @ U

        def xform(agg, x, s, w1=w1, b1=b1, w2=w2, b2=b2):
            h = (agg + x) @ w1 + (agg * x) @ w2 + b1 + s * (b1 + b2)
            h = jnp.where(h >= 0.0, h, 0.2 * h)
            n = jnp.sqrt(jnp.maximum(jnp.sum(h * h, axis=1, keepdims=True), 1e-24))
            return h / n

        U, V = xform(agg_u, U, s_u), xform(agg_v, V, s_i)
        ue.append(U)
        ie.append(V)
    ue = jnp.concatenate(ue, axis=1)
    ie = jnp.concatenate(ie, axis=1)
    return ue[users, :], ie[pos_items, :], ie[neg_items, :]


def xavier_uniform(key, shape):
    fan_in, fan_out = shape
    bound = jnp.sqrt(6.0 / (fan_in + fan_out))
    return jax.random.uniform(key, shape, jnp.float32, -bound, bound)


if __name__ == "__main__":
    key = jax.random.PRNGKey(0)
    Nu, Ni = 96, 80                 # number of user / item nodes
    in_size = 16
    layer_size = [32, 16]
    batch = 8

    # --- graph construction (deterministic, every node has degree >= 1) ---
    k_adj, k_u, k_i, k_idx, key = jax.random.split(key, 5)
    A = jax.random.bernoulli(k_adj, 0.2, (Nu, Ni)).astype(jnp.float32)
    A = A.at[jnp.arange(Nu), jnp.arange(Nu) % Ni].set(1.0)
    A = A.at[jnp.arange(Ni) % Nu, jnp.arange(Ni)].set(1.0)
    deg_u = jnp.sum(A, axis=1)                              # user degree
    deg_i = jnp.sum(A, axis=0)                              # item degree
    A_hat = A / jnp.sqrt(deg_u[:, None] * deg_i[None, :])   # NGCF edge norm

    # --- parameters (xavier-uniform weights, zero biases, as in the module) ---
    user_feat = xavier_uniform(k_u, (Nu, in_size))
    item_feat = xavier_uniform(k_i, (Ni, in_size))
    weights = []
    dims = [in_size] + layer_size
    for li in range(len(layer_size)):
        k1, k2, key = jax.random.split(key, 3)
        w1 = xavier_uniform(k1, (dims[li], dims[li + 1]))   # stored as (in, out)
        w2 = xavier_uniform(k2, (dims[li], dims[li + 1]))
        b1 = jnp.zeros((dims[li + 1],), jnp.float32)
        b2 = jnp.zeros((dims[li + 1],), jnp.float32)
        weights.append((w1, b1, w2, b2))

    ku, kp, kn = jax.random.split(k_idx, 3)
    users = jax.random.randint(ku, (batch,), 0, Nu)
    pos_items = jax.random.randint(kp, (batch,), 0, Ni)
    neg_items = jax.random.randint(kn, (batch,), 0, Ni)

    # --- one-time graph prep (outside the jitted forward) ---
    plan = make_plan(Nu, Ni)
    graph = jax.block_until_ready(prepare_graph(A_hat, plan))

    fwd = jax.jit(functools.partial(ngcf_forward, plan=plan))
    u_g, pos_g, neg_g = fwd(graph, user_feat, item_feat, weights,
                            users, pos_items, neg_items)
    jax.block_until_ready((u_g, pos_g, neg_g))

    total_dim = in_size + sum(layer_size)
    assert u_g.shape == (batch, total_dim), u_g.shape
    assert pos_g.shape == (batch, total_dim), pos_g.shape
    assert neg_g.shape == (batch, total_dim), neg_g.shape
    assert bool(jnp.all(jnp.isfinite(u_g)))
    assert bool(jnp.all(jnp.isfinite(pos_g)))
    assert bool(jnp.all(jnp.isfinite(neg_g)))

    # --- f32 reference check (bf16 A_hat / bf16 epilogue -> loose tolerance) ---
    u_r, p_r, n_r = ngcf_reference(A_hat, user_feat, item_feat, weights,
                                   users, pos_items, neg_items)
    for got, ref in ((u_g, u_r), (pos_g, p_r), (neg_g, n_r)):
        err = float(jnp.max(jnp.abs(got - ref)))
        assert err < 5e-2, f"max abs error {err}"

    print("KERNEL_OK")
</pallas_src>

<mosaic_0001>
module attributes {stable_mosaic.version = 11 : i64} {
  func.func @_fused_layer_kernel(%arg0: i32, %arg1: i32, %arg2: memref<256x256xbf16, #tpu.memory_space<vmem>>, %arg3: memref<256x128xbf16, #tpu.memory_space<vmem>>, %arg4: memref<256x128xf32, #tpu.memory_space<vmem>>, %arg5: memref<256x1xf32, #tpu.memory_space<vmem>>, %arg6: memref<128x128xbf16, #tpu.memory_space<vmem>>, %arg7: memref<128x128xbf16, #tpu.memory_space<vmem>>, %arg8: memref<1x128xf32, #tpu.memory_space<vmem>>, %arg9: memref<1x128xf32, #tpu.memory_space<vmem>>, %arg10: memref<256x128xf32, #tpu.memory_space<vmem>>, %arg11: memref<256x128xbf16, #tpu.memory_space<vmem>>, %arg12: memref<256x128xf32, #tpu.memory_space<vmem>>) attributes {dimension_semantics = [#tpu.dimension_semantics<parallel>, #tpu.dimension_semantics<arbitrary>], iteration_bounds = array<i64: 1, 1>, scalar_prefetch = 0 : i64, scratch_operands = 1 : i64, tpu.core_type = #tpu.core_type<tc>, window_params = [{transform_indices = @transform_0, window_bounds = array<i64: 256, 256>}, {transform_indices = @transform_1, window_bounds = array<i64: 256, 128>}, {transform_indices = @transform_2, window_bounds = array<i64: 256, 128>}, {transform_indices = @transform_3, window_bounds = array<i64: 256, 1>}, {pipeline_mode = #tpu.pipeline_mode<synchronous>, transform_indices = @transform_4, window_bounds = array<i64: 128, 128>}, {pipeline_mode = #tpu.pipeline_mode<synchronous>, transform_indices = @transform_5, window_bounds = array<i64: 128, 128>}, {pipeline_mode = #tpu.pipeline_mode<synchronous>, transform_indices = @transform_6, window_bounds = array<i64: 1, 128>}, {pipeline_mode = #tpu.pipeline_mode<synchronous>, transform_indices = @transform_7, window_bounds = array<i64: 1, 128>}, {transform_indices = @transform_8, window_bounds = array<i64: 256, 128>}, {transform_indices = @transform_9, window_bounds = array<i64: 256, 128>}]} {
    %c0_i32 = arith.constant 0 : i32
    %0 = arith.cmpi eq, %arg1, %c0_i32 : i32
    %1 = arith.extui %0 : i1 to i32
    %c0_i32_0 = arith.constant 0 : i32
    %2 = arith.cmpi ne, %1, %c0_i32_0 : i32
    scf.if %2 {
      %cst_10 = arith.constant 0.000000e+00 : f32
      %12 = vector.broadcast %cst_10 : f32 to vector<256x128xf32>
      %c0_11 = arith.constant 0 : index
      %c0_12 = arith.constant 0 : index
      %13 = vector.load %arg12[%c0_11, %c0_12] : memref<256x128xf32, #tpu.memory_space<vmem>>, vector<256x128xf32>
      tpu.vector_store %arg12[%c0_11, %c0_12], %12 {strides = array<i32>} : memref<256x128xf32, #tpu.memory_space<vmem>>, vector<256x128xf32>,
    } else {
    }
    %c0 = arith.constant 0 : index
    %c0_1 = arith.constant 0 : index
    %3 = vector.load %arg12[%c0, %c0_1] : memref<256x128xf32, #tpu.memory_space<vmem>>, vector<256x128xf32>
    %c0_2 = arith.constant 0 : index
    %c0_3 = arith.constant 0 : index
    %4 = vector.load %arg2[%c0_2, %c0_3] : memref<256x256xbf16, #tpu.memory_space<vmem>>, vector<256x256xbf16>
    %c0_4 = arith.constant 0 : index
    %c0_5 = arith.constant 0 : index
    %5 = vector.load %arg3[%c0_4, %c0_5] : memref<256x128xbf16, #tpu.memory_space<vmem>>, vector<256x128xbf16>
    %cst = arith.constant dense<0.000000e+00> : vector<256x128xf32>
    %6 = tpu.matmul %4, %5, %cst {dimension_numbers = #tpu.dot_dimension_numbers<[1], [0], [0], [1], [0, 0, 1, 1], [], []>} : vector<256x256xbf16>, vector<256x128xbf16>, vector<256x128xf32> -> vector<256x128xf32>
    %7 = arith.addf %3, %6 : vector<256x128xf32>
    %c0_6 = arith.constant 0 : index
    %c0_7 = arith.constant 0 : index
    %8 = vector.load %arg12[%c0_6, %c0_7] : memref<256x128xf32, #tpu.memory_space<vmem>>, vector<256x128xf32>
    tpu.vector_store %arg12[%c0_6, %c0_7], %7 {strides = array<i32>} : memref<256x128xf32, #tpu.memory_space<vmem>>, vector<256x128xf32>,
    %c0_i32_8 = arith.constant 0 : i32
    %9 = arith.cmpi eq, %arg1, %c0_i32_8 : i32
    %10 = arith.extui %9 : i1 to i32
    %c0_i32_9 = arith.constant 0 : i32
    %11 = arith.cmpi ne, %10, %c0_i32_9 : i32
    scf.if %11 {
      %c0_10 = arith.constant 0 : index
      %c0_11 = arith.constant 0 : index
      %12 = vector.load %arg12[%c0_10, %c0_11] : memref<256x128xf32, #tpu.memory_space<vmem>>, vector<256x128xf32>
      %c0_12 = arith.constant 0 : index
      %c0_13 = arith.constant 0 : index
      %13 = vector.load %arg4[%c0_12, %c0_13] : memref<256x128xf32, #tpu.memory_space<vmem>>, vector<256x128xf32>
      %14 = arith.addf %12, %13 : vector<256x128xf32>
      %15 = arith.truncf %14 : vector<256x128xf32> to vector<256x128xbf16>
      %16 = arith.mulf %12, %13 : vector<256x128xf32>
      %17 = arith.truncf %16 : vector<256x128xf32> to vector<256x128xbf16>
      %c0_14 = arith.constant 0 : index
      %c0_15 = arith.constant 0 : index
      %18 = vector.load %arg6[%c0_14, %c0_15] : memref<128x128xbf16, #tpu.memory_space<vmem>>, vector<128x128xbf16>
      %cst_16 = arith.constant dense<0.000000e+00> : vector<256x128xf32>
      %19 = tpu.matmul %15, %18, %cst_16 {dimension_numbers = #tpu.dot_dimension_numbers<[1], [0], [0], [1], [0, 0, 1, 1], [], []>} : vector<256x128xbf16>, vector<128x128xbf16>, vector<256x128xf32> -> vector<256x128xf32>
      %c0_17 = arith.constant 0 : index
      %c0_18 = arith.constant 0 : index
      %20 = vector.load %arg7[%c0_17, %c0_18] : memref<128x128xbf16, #tpu.memory_space<vmem>>, vector<128x128xbf16>
      %cst_19 = arith.constant dense<0.000000e+00> : vector<256x128xf32>
      %21 = tpu.matmul %17, %20, %cst_19 {dimension_numbers = #tpu.dot_dimension_numbers<[1], [0], [0], [1], [0, 0, 1, 1], [], []>} : vector<256x128xbf16>, vector<128x128xbf16>, vector<256x128xf32> -> vector<256x128xf32>
      %22 = arith.addf %19, %21 : vector<256x128xf32>
      %c0_20 = arith.constant 0 : index
      %c0_21 = arith.constant 0 : index
      %23 = vector.load %arg8[%c0_20, %c0_21] : memref<1x128xf32, #tpu.memory_space<vmem>>, vector<1x128xf32>
      %24 = vector.broadcast %23 : vector<1x128xf32> to vector<256x128xf32>
      %25 = arith.addf %22, %24 : vector<256x128xf32>
      %c0_22 = arith.constant 0 : index
      %c0_23 = arith.constant 0 : index
      %26 = vector.load %arg5[%c0_22, %c0_23] : memref<256x1xf32, #tpu.memory_space<vmem>>, vector<256x1xf32>
      %c0_24 = arith.constant 0 : index
      %c0_25 = arith.constant 0 : index
      %27 = vector.load %arg9[%c0_24, %c0_25] : memref<1x128xf32, #tpu.memory_space<vmem>>, vector<1x128xf32>
      %28 = vector.broadcast %26 : vector<256x1xf32> to vector<256x128xf32>
      %29 = vector.broadcast %27 : vector<1x128xf32> to vector<256x128xf32>
      %30 = arith.mulf %28, %29 : vector<256x128xf32>
      %31 = arith.addf %25, %30 : vector<256x128xf32>
      %cst_26 = arith.constant 0.000000e+00 : f32
      %32 = vector.broadcast %cst_26 : f32 to vector<256x128xf32>
      %33 = arith.cmpf oge, %31, %32 : vector<256x128xf32>
      %cst_27 = arith.constant 2.000000e-01 : f32
      %34 = vector.broadcast %cst_27 : f32 to vector<256x128xf32>
      %35 = arith.mulf %34, %31 : vector<256x128xf32>
      %36 = arith.select %33, %31, %35 : vector<256x128xi1>, vector<256x128xf32>
      %37 = arith.mulf %36, %36 : vector<256x128xf32>
      %cst_28 = arith.constant dense<0.000000e+00> : vector<256xf32>
      %38 = vector.multi_reduction <add>, %37, %cst_28 [1] : vector<256x128xf32> to vector<256xf32>
      %39 = vector.shape_cast %38 : vector<256xf32> to vector<256x1xf32>
      %cst_29 = arith.constant 1.000000e-24 : f32
      %40 = vector.broadcast %cst_29 : f32 to vector<256x1xf32>
      %41 = arith.maximumf %39, %40 : vector<256x1xf32>
      %42 = math.rsqrt %41 : vector<256x1xf32>
      %43 = vector.broadcast %42 : vector<256x1xf32> to vector<256x128xf32>
      %44 = arith.mulf %36, %43 : vector<256x128xf32>
      %c0_30 = arith.constant 0 : index
      %c0_31 = arith.constant 0 : index
      %45 = vector.load %arg10[%c0_30, %c0_31] : memref<256x128xf32, #tpu.memory_space<vmem>>, vector<256x128xf32>
      tpu.vector_store %arg10[%c0_30, %c0_31], %44 {strides = array<i32>} : memref<256x128xf32, #tpu.memory_space<vmem>>, vector<256x128xf32>,
      %46 = arith.truncf %44 : vector<256x128xf32> to vector<256x128xbf16>
      %c0_32 = arith.constant 0 : index
      %c0_33 = arith.constant 0 : index
      %47 = vector.load %arg11[%c0_32, %c0_33] : memref<256x128xbf16, #tpu.memory_space<vmem>>, vector<256x128xbf16>
      tpu.vector_store %arg11[%c0_32, %c0_33], %46 {strides = array<i32>} : memref<256x128xbf16, #tpu.memory_space<vmem>>, vector<256x128xbf16>,
    } else {
    }
    return
  }
  func.func @transform_0(%arg0: i32, %arg1: i32) -> (i32, i32) {
    %c0_i32 = arith.constant 0 : i32
    return %arg0, %arg1 : i32, i32
  }
  func.func @transform_1(%arg0: i32, %arg1: i32) -> (i32, i32) {
    %c0_i32 = arith.constant 0 : i32
    %c0_i32_0 = arith.constant 0 : i32
    return %arg1, %c0_i32 : i32, i32
  }
  func.func @transform_2(%arg0: i32, %arg1: i32) -> (i32, i32) {
    %c0_i32 = arith.constant 0 : i32
    %c0_i32_0 = arith.constant 0 : i32
    return %arg0, %c0_i32 : i32, i32
  }
  func.func @transform_3(%arg0: i32, %arg1: i32) -> (i32, i32) {
    %c0_i32 = arith.constant 0 : i32
    %c0_i32_0 = arith.constant 0 : i32
    return %arg0, %c0_i32 : i32, i32
  }
  func.func @transform_4(%arg0: i32, %arg1: i32) -> (i32, i32) {
    %c0_i32 = arith.constant 0 : i32
    %c0_i32_0 = arith.constant 0 : i32
    %c0_i32_1 = arith.constant 0 : i32
    return %c0_i32, %c0_i32_0 : i32, i32
  }
  func.func @transform_5(%arg0: i32, %arg1: i32) -> (i32, i32) {
    %c0_i32 = arith.constant 0 : i32
    %c0_i32_0 = arith.constant 0 : i32
    %c0_i32_1 = arith.constant 0 : i32
    return %c0_i32, %c0_i32_0 : i32, i32
  }
  func.func @transform_6(%arg0: i32, %arg1: i32) -> (i32, i32) {
    %c0_i32 = arith.constant 0 : i32
    %c0_i32_0 = arith.constant 0 : i32
    %c0_i32_1 = arith.constant 0 : i32
    return %c0_i32, %c0_i32_0 : i32, i32
  }
  func.func @transform_7(%arg0: i32, %arg1: i32) -> (i32, i32) {
    %c0_i32 = arith.constant 0 : i32
    %c0_i32_0 = arith.constant 0 : i32
    %c0_i32_1 = arith.constant 0 : i32
    return %c0_i32, %c0_i32_0 : i32, i32
  }
  func.func @transform_8(%arg0: i32, %arg1: i32) -> (i32, i32) {
    %c0_i32 = arith.constant 0 : i32
    %c0_i32_0 = arith.constant 0 : i32
    return %arg0, %c0_i32 : i32, i32
  }
  func.func @transform_9(%arg0: i32, %arg1: i32) -> (i32, i32) {
    %c0_i32 = arith.constant 0 : i32
    %c0_i32_0 = arith.constant 0 : i32
    return %arg0, %c0_i32 : i32, i32
  }
}

module attributes {stable_mosaic.version = 11 : i64} {
  func.func @_fused_layer_kernel(%arg0: i32, %arg1: i32, %arg2: memref<256x256xbf16, #tpu.memory_space<vmem>>, %arg3: memref<256x128xbf16, #tpu.memory_space<vmem>>, %arg4: memref<256x128xf32, #tpu.memory_space<vmem>>, %arg5: memref<256x1xf32, #tpu.memory_space<vmem>>, %arg6: memref<128x128xbf16, #tpu.memory_space<vmem>>, %arg7: memref<128x128xbf16, #tpu.memory_space<vmem>>, %arg8: memref<1x128xf32, #tpu.memory_space<vmem>>, %arg9: memref<1x128xf32, #tpu.memory_space<vmem>>, %arg10: memref<256x128xf32, #tpu.memory_space<vmem>>, %arg11: memref<256x128xbf16, #tpu.memory_space<vmem>>, %arg12: memref<256x128xf32, #tpu.memory_space<vmem>>) attributes {dimension_semantics = [#tpu.dimension_semantics<parallel>, #tpu.dimension_semantics<arbitrary>], iteration_bounds = array<i64: 1, 1>, scalar_prefetch = 0 : i64, scratch_operands = 1 : i64, tpu.core_type = #tpu.core_type<tc>, window_params = [{transform_indices = @transform_0, window_bounds = array<i64: 256, 256>}, {transform_indices = @transform_1, window_bounds = array<i64: 256, 128>}, {transform_indices = @transform_2, window_bounds = array<i64: 256, 128>}, {transform_indices = @transform_3, window_bounds = array<i64: 256, 1>}, {pipeline_mode = #tpu.pipeline_mode<synchronous>, transform_indices = @transform_4, window_bounds = array<i64: 128, 128>}, {pipeline_mode = #tpu.pipeline_mode<synchronous>, transform_indices = @transform_5, window_bounds = array<i64: 128, 128>}, {pipeline_mode = #tpu.pipeline_mode<synchronous>, transform_indices = @transform_6, window_bounds = array<i64: 1, 128>}, {pipeline_mode = #tpu.pipeline_mode<synchronous>, transform_indices = @transform_7, window_bounds = array<i64: 1, 128>}, {transform_indices = @transform_8, window_bounds = array<i64: 256, 128>}, {transform_indices = @transform_9, window_bounds = array<i64: 256, 128>}]} {
    %c0_i32 = arith.constant 0 : i32
    %0 = arith.cmpi eq, %arg1, %c0_i32 : i32
    %1 = arith.extui %0 : i1 to i32
    %c0_i32_0 = arith.constant 0 : i32
    %2 = arith.cmpi ne, %1, %c0_i32_0 : i32
    scf.if %2 {
      %cst_10 = arith.constant 0.000000e+00 : f32
      %12 = vector.broadcast %cst_10 : f32 to vector<256x128xf32>
      %c0_11 = arith.constant 0 : index
      %c0_12 = arith.constant 0 : index
      %13 = vector.load %arg12[%c0_11, %c0_12] : memref<256x128xf32, #tpu.memory_space<vmem>>, vector<256x128xf32>
      tpu.vector_store %arg12[%c0_11, %c0_12], %12 {strides = array<i32>} : memref<256x128xf32, #tpu.memory_space<vmem>>, vector<256x128xf32>,
    } else {
    }
    %c0 = arith.constant 0 : index
    %c0_1 = arith.constant 0 : index
    %3 = vector.load %arg12[%c0, %c0_1] : memref<256x128xf32, #tpu.memory_space<vmem>>, vector<256x128xf32>
    %c0_2 = arith.constant 0 : index
    %c0_3 = arith.constant 0 : index
    %4 = vector.load %arg2[%c0_2, %c0_3] : memref<256x256xbf16, #tpu.memory_space<vmem>>, vector<256x256xbf16>
    %c0_4 = arith.constant 0 : index
    %c0_5 = arith.constant 0 : index
    %5 = vector.load %arg3[%c0_4, %c0_5] : memref<256x128xbf16, #tpu.memory_space<vmem>>, vector<256x128xbf16>
    %cst = arith.constant dense<0.000000e+00> : vector<256x128xf32>
    %6 = tpu.matmul %4, %5, %cst {dimension_numbers = #tpu.dot_dimension_numbers<[1], [0], [0], [1], [0, 0, 1, 1], [], []>} : vector<256x256xbf16>, vector<256x128xbf16>, vector<256x128xf32> -> vector<256x128xf32>
    %7 = arith.addf %3, %6 : vector<256x128xf32>
    %c0_6 = arith.constant 0 : index
    %c0_7 = arith.constant 0 : index
    %8 = vector.load %arg12[%c0_6, %c0_7] : memref<256x128xf32, #tpu.memory_space<vmem>>, vector<256x128xf32>
    tpu.vector_store %arg12[%c0_6, %c0_7], %7 {strides = array<i32>} : memref<256x128xf32, #tpu.memory_space<vmem>>, vector<256x128xf32>,
    %c0_i32_8 = arith.constant 0 : i32
    %9 = arith.cmpi eq, %arg1, %c0_i32_8 : i32
    %10 = arith.extui %9 : i1 to i32
    %c0_i32_9 = arith.constant 0 : i32
    %11 = arith.cmpi ne, %10, %c0_i32_9 : i32
    scf.if %11 {
      %c0_10 = arith.constant 0 : index
      %c0_11 = arith.constant 0 : index
      %12 = vector.load %arg12[%c0_10, %c0_11] : memref<256x128xf32, #tpu.memory_space<vmem>>, vector<256x128xf32>
      %c0_12 = arith.constant 0 : index
      %c0_13 = arith.constant 0 : index
      %13 = vector.load %arg4[%c0_12, %c0_13] : memref<256x128xf32, #tpu.memory_space<vmem>>, vector<256x128xf32>
      %14 = arith.addf %12, %13 : vector<256x128xf32>
      %15 = arith.truncf %14 : vector<256x128xf32> to vector<256x128xbf16>
      %16 = arith.mulf %12, %13 : vector<256x128xf32>
      %17 = arith.truncf %16 : vector<256x128xf32> to vector<256x128xbf16>
      %c0_14 = arith.constant 0 : index
      %c0_15 = arith.constant 0 : index
      %18 = vector.load %arg6[%c0_14, %c0_15] : memref<128x128xbf16, #tpu.memory_space<vmem>>, vector<128x128xbf16>
      %cst_16 = arith.constant dense<0.000000e+00> : vector<256x128xf32>
      %19 = tpu.matmul %15, %18, %cst_16 {dimension_numbers = #tpu.dot_dimension_numbers<[1], [0], [0], [1], [0, 0, 1, 1], [], []>} : vector<256x128xbf16>, vector<128x128xbf16>, vector<256x128xf32> -> vector<256x128xf32>
      %c0_17 = arith.constant 0 : index
      %c0_18 = arith.constant 0 : index
      %20 = vector.load %arg7[%c0_17, %c0_18] : memref<128x128xbf16, #tpu.memory_space<vmem>>, vector<128x128xbf16>
      %cst_19 = arith.constant dense<0.000000e+00> : vector<256x128xf32>
      %21 = tpu.matmul %17, %20, %cst_19 {dimension_numbers = #tpu.dot_dimension_numbers<[1], [0], [0], [1], [0, 0, 1, 1], [], []>} : vector<256x128xbf16>, vector<128x128xbf16>, vector<256x128xf32> -> vector<256x128xf32>
      %22 = arith.addf %19, %21 : vector<256x128xf32>
      %c0_20 = arith.constant 0 : index
      %c0_21 = arith.constant 0 : index
      %23 = vector.load %arg8[%c0_20, %c0_21] : memref<1x128xf32, #tpu.memory_space<vmem>>, vector<1x128xf32>
      %24 = vector.broadcast %23 : vector<1x128xf32> to vector<256x128xf32>
      %25 = arith.addf %22, %24 : vector<256x128xf32>
      %c0_22 = arith.constant 0 : index
      %c0_23 = arith.constant 0 : index
      %26 = vector.load %arg5[%c0_22, %c0_23] : memref<256x1xf32, #tpu.memory_space<vmem>>, vector<256x1xf32>
      %c0_24 = arith.constant 0 : index
      %c0_25 = arith.constant 0 : index
      %27 = vector.load %arg9[%c0_24, %c0_25] : memref<1x128xf32, #tpu.memory_space<vmem>>, vector<1x128xf32>
      %28 = vector.broadcast %26 : vector<256x1xf32> to vector<256x128xf32>
      %29 = vector.broadcast %27 : vector<1x128xf32> to vector<256x128xf32>
      %30 = arith.mulf %28, %29 : vector<256x128xf32>
      %31 = arith.addf %25, %30 : vector<256x128xf32>
      %cst_26 = arith.constant 0.000000e+00 : f32
      %32 = vector.broadcast %cst_26 : f32 to vector<256x128xf32>
      %33 = arith.cmpf oge, %31, %32 : vector<256x128xf32>
      %cst_27 = arith.constant 2.000000e-01 : f32
      %34 = vector.broadcast %cst_27 : f32 to vector<256x128xf32>
      %35 = arith.mulf %34, %31 : vector<256x128xf32>
      %36 = arith.select %33, %31, %35 : vector<256x128xi1>, vector<256x128xf32>
      %37 = arith.mulf %36, %36 : vector<256x128xf32>
      %cst_28 = arith.constant dense<0.000000e+00> : vector<256xf32>
      %38 = vector.multi_reduction <add>, %37, %cst_28 [1] : vector<256x128xf32> to vector<256xf32>
      %39 = vector.shape_cast %38 : vector<256xf32> to vector<256x1xf32>
      %cst_29 = arith.constant 1.000000e-24 : f32
      %40 = vector.broadcast %cst_29 : f32 to vector<256x1xf32>
      %41 = arith.maximumf %39, %40 : vector<256x1xf32>
      %42 = math.rsqrt %41 : vector<256x1xf32>
      %43 = vector.broadcast %42 : vector<256x1xf32> to vector<256x128xf32>
      %44 = arith.mulf %36, %43 : vector<256x128xf32>
      %c0_30 = arith.constant 0 : index
      %c0_31 = arith.constant 0 : index
      %45 = vector.load %arg10[%c0_30, %c0_31] : memref<256x128xf32, #tpu.memory_space<vmem>>, vector<256x128xf32>
      tpu.vector_store %arg10[%c0_30, %c0_31], %44 {strides = array<i32>} : memref<256x128xf32, #tpu.memory_space<vmem>>, vector<256x128xf32>,
      %46 = arith.truncf %44 : vector<256x128xf32> to vector<256x128xbf16>
      %c0_32 = arith.constant 0 : index
      %c0_33 = arith.constant 0 : index
      %47 = vector.load %arg11[%c0_32, %c0_33] : memref<256x128xbf16, #tpu.memory_space<vmem>>, vector<256x128xbf16>
      tpu.vector_store %arg11[%c0_32, %c0_33], %46 {strides = array<i32>} : memref<256x128xbf16, #tpu.memory_space<vmem>>, vector<256x128xbf16>,
    } else {
    }
    return
  }
  func.func @transform_0(%arg0: i32, %arg1: i32) -> (i32, i32) {
    %c0_i32 = arith.constant 0 : i32
    return %arg0, %arg1 : i32, i32
  }
  func.func @transform_1(%arg0: i32, %arg1: i32) -> (i32, i32) {
    %c0_i32 = arith.constant 0 : i32
    %c0_i32_0 = arith.constant 0 : i32
    return %arg1, %c0_i32 : i32, i32
  }
  func.func @transform_2(%arg0: i32, %arg1: i32) -> (i32, i32) {
    %c0_i32 = arith.constant 0 : i32
    %c0_i32_0 = arith.constant 0 : i32
    return %arg0, %c0_i32 : i32, i32
  }
  func.func @transform_3(%arg0: i32, %arg1: i32) -> (i32, i32) {
    %c0_i32 = arith.constant 0 : i32
    %c0_i32_0 = arith.constant 0 : i32
    return %arg0, %c0_i32 : i32, i32
  }
  func.func @transform_4(%arg0: i32, %arg1: i32) -> (i32, i32) {
    %c0_i32 = arith.constant 0 : i32
    %c0_i32_0 = arith.constant 0 : i32
    %c0_i32_1 = arith.constant 0 : i32
    return %c0_i32, %c0_i32_0 : i32, i32
  }
  func.func @transform_5(%arg0: i32, %arg1: i32) -> (i32, i32) {
    %c0_i32 = arith.constant 0 : i32
    %c0_i32_0 = arith.constant 0 : i32
    %c0_i32_1 = arith.constant 0 : i32
    return %c0_i32, %c0_i32_0 : i32, i32
  }
  func.func @transform_6(%arg0: i32, %arg1: i32) -> (i32, i32) {
    %c0_i32 = arith.constant 0 : i32
    %c0_i32_0 = arith.constant 0 : i32
    %c0_i32_1 = arith.constant 0 : i32
    return %c0_i32, %c0_i32_0 : i32, i32
  }
  func.func @transform_7(%arg0: i32, %arg1: i32) -> (i32, i32) {
    %c0_i32 = arith.constant 0 : i32
    %c0_i32_0 = arith.constant 0 : i32
    %c0_i32_1 = arith.constant 0 : i32
    return %c0_i32, %c0_i32_0 : i32, i32
  }
  func.func @transform_8(%arg0: i32, %arg1: i32) -> (i32, i32) {
    %c0_i32 = arith.constant 0 : i32
    %c0_i32_0 = arith.constant 0 : i32
    return %arg0, %c0_i32 : i32, i32
  }
  func.func @transform_9(%arg0: i32, %arg1: i32) -> (i32, i32) {
    %c0_i32 = arith.constant 0 : i32
    %c0_i32_0 = arith.constant 0 : i32
    return %arg0, %c0_i32 : i32, i32
  }
}

</mosaic_0001>

<llo_original>
// kernel: ngcf_forward.7
$region0: #{ngcf_forward.7}
  #allocation0 [shape = 'u32[]', space=smem, size = 0x4, offset = 0x4, fixed_abs, tag = 'smem constant byte address 0x4 - core index']
  #allocation1 [shape = 'u32[144,128]{1,0:T(1,128)}', space=vmem, size = 0x12000, scoped, tag = 'internal scratch']
  #allocation2 [shape = 'f32[256,128]{1,0:T(8,128)}', space=vmem, size = 0x20000, scoped, tag = 'scratch operand']
  %s0 = inlined_call_operand.vmem [shape: bf16[256,256], index: 0, kind: input, shape index: {}]
  %s1 = inlined_call_operand.vmem [shape: bf16[256,128], index: 1, kind: input, shape index: {}]
  %s2 = inlined_call_operand.vmem [shape: f32[256,128], index: 2, kind: input, shape index: {}]
  %s3 = inlined_call_operand.vmem [shape: f32[256,1], index: 3, kind: input, shape index: {}]
  %s4 = inlined_call_operand.vmem [shape: bf16[128,128], index: 4, kind: input, shape index: {}]
  %s5 = inlined_call_operand.vmem [shape: bf16[128,128], index: 5, kind: input, shape index: {}]
  %s6 = inlined_call_operand.vmem [shape: f32[1,128], index: 6, kind: input, shape index: {}]
  %s7 = inlined_call_operand.vmem [shape: f32[1,128], index: 7, kind: input, shape index: {}]
  %s8 = inlined_call_operand.vmem [shape: f32[256,128], index: 8, kind: output, shape index: {0}]
  %s9 = inlined_call_operand.hbm [shape: bf16[256,128], index: 9, kind: output, shape index: {1}]
  %10 = xla_tuple %s8, %s9
  %s11 = sld [smem:[#allocation0]]
  $region58: #{ngcf_forward.7} parent=0
    _
  %s13 = ssub.s32 1, %s11
  %s14 = scalar_select 0, %s13, %s11
  $region1: #{ngcf_forward.7} parent=0
    #allocation3 [shape = 'u8[65536]{0}', space=vmem, size = 0x10000, scoped, tag = 'output window, operand 1, single buffered']
    #allocation4 [shape = 's32[1]{0}', space=sflag, size = 0x4, scoped, tag = 'scoped memory for ngcf_forward.7']
    %15 = vsyncpa [#allocation4], 0
    // Predicated region
    $region2: #{ngcf_forward.7} parent=1 // pred_check
      _
    $region3: #{ngcf_forward.7} parent=1 // pred_check_branch
      %17 = sbr.rel (0) target = $region5
    $region4: #{ngcf_forward.7} parent=1 // pred_region
      _
    $region5: #{ngcf_forward.7} parent=1 // pred_fallthru
      _
    // Predicated region
    $region6: #{ngcf_forward.7} parent=1 // pred_check
      _
    $region7: #{ngcf_forward.7} parent=1 // pred_check_branch
      %19 = sbr.rel (0) target = $region9
    $region8: #{ngcf_forward.7} parent=1 // pred_region
      _
    $region9: #{ngcf_forward.7} parent=1 // pred_fallthru
      _
    // Predicated region
    $region10: #{ngcf_forward.7} parent=1 // pred_check
      _
    $region11: #{ngcf_forward.7} parent=1 // pred_check_branch
      %21 = sbr.rel (0) target = $region13
    $region12: #{ngcf_forward.7} parent=1 // pred_region
      _
    $region13: #{ngcf_forward.7} parent=1 // pred_fallthru
      _
    // Predicated region
    $region14: #{ngcf_forward.7} parent=1 // pred_check
      _
    $region15: #{ngcf_forward.7} parent=1 // pred_check_branch
      %23 = sbr.rel (0) target = $region17
    $region16: #{ngcf_forward.7} parent=1 // pred_region
      _
    $region17: #{ngcf_forward.7} parent=1 // pred_fallthru
      _
    // Predicated region
    $region18: #{ngcf_forward.7} parent=1 // pred_check
      _
    $region19: #{ngcf_forward.7} parent=1 // pred_check_branch
      %25 = sbr.rel (0) target = $region21
    $region20: #{ngcf_forward.7} parent=1 // pred_region
      _
    $region21: #{ngcf_forward.7} parent=1 // pred_fallthru
      _
    // Predicated region
    $region22: #{ngcf_forward.7} parent=1 // pred_check
      _
    $region23: #{ngcf_forward.7} parent=1 // pred_check_branch
      %27 = sbr.rel (0) target = $region25
    $region24: #{ngcf_forward.7} parent=1 // pred_region
      _
    $region25: #{ngcf_forward.7} parent=1 // pred_fallthru
      _
    // Predicated region
    $region26: #{ngcf_forward.7} parent=1 // pred_check
      _
    $region27: #{ngcf_forward.7} parent=1 // pred_check_branch
      %29 = sbr.rel (0) target = $region29
    $region28: #{ngcf_forward.7} parent=1 // pred_region
      _
    $region29: #{ngcf_forward.7} parent=1 // pred_fallthru
      _
    // Predicated region
    $region30: #{ngcf_forward.7} parent=1 // pred_check
      _
    $region31: #{ngcf_forward.7} parent=1 // pred_check_branch
      %31 = sbr.rel (0) target = $region33
    $region32: #{ngcf_forward.7} parent=1 // pred_region
      _
    $region33: #{ngcf_forward.7} parent=1 // pred_fallthru
      _
    %p33 = scmp.eq.s32.totalorder 0, 0
    // Predicated region
    $region34: #{ngcf_forward.7} parent=1 // pred_check
      %p34 = pneg %p33
    $region35: #{ngcf_forward.7} parent=1 // pred_check_branch
      %36 = sbr.rel (%p34) target = $region37
    $region36: #{ngcf_forward.7} parent=1 // pred_region
      %37 = vst [vmem:[#allocation2] sm:$0xff] 0.0
      %38 = vst [vmem:[#allocation2 + $0x8] sm:$0xff] 0.0
      %39 = vst [vmem:[#allocation2 + $0x10] sm:$0xff] 0.0
      %40 = vst [vmem:[#allocation2 + $0x18] sm:$0xff] 0.0
      %41 = vst [vmem:[#allocation2 + $0x20] sm:$0xff] 0.0
      %42 = vst [vmem:[#allocation2 + $0x28] sm:$0xff] 0.0
      %43 = vst [vmem:[#allocation2 + $0x30] sm:$0xff] 0.0
      %44 = vst [vmem:[#allocation2 + $0x38] sm:$0xff] 0.0
      %45 = vst [vmem:[#allocation2 + $0x40] sm:$0xff] 0.0
      %46 = vst [vmem:[#allocation2 + $0x48] sm:$0xff] 0.0
      %47 = vst [vmem:[#allocation2 + $0x50] sm:$0xff] 0.0
      %48 = vst [vmem:[#allocation2 + $0x58] sm:$0xff] 0.0
      %49 = vst [vmem:[#allocation2 + $0x60] sm:$0xff] 0.0
      %50 = vst [vmem:[#allocation2 + $0x68] sm:$0xff] 0.0
      %51 = vst [vmem:[#allocation2 + $0x70] sm:$0xff] 0.0
      %52 = vst [vmem:[#allocation2 + $0x78] sm:$0xff] 0.0
      %53 = vst [vmem:[#allocation2 + $0x80] sm:$0xff] 0.0
      %54 = vst [vmem:[#allocation2 + $0x88] sm:$0xff] 0.0
      %55 = vst [vmem:[#allocation2 + $0x90] sm:$0xff] 0.0
      %56 = vst [vmem:[#allocation2 + $0x98] sm:$0xff] 0.0
      %57 = vst [vmem:[#allocation2 + $0xa0] sm:$0xff] 0.0
      %58 = vst [vmem:[#allocation2 + $0xa8] sm:$0xff] 0.0
      %59 = vst [vmem:[#allocation2 + $0xb0] sm:$0xff] 0.0
      %60 = vst [vmem:[#allocation2 + $0xb8] sm:$0xff] 0.0
      %61 = vst [vmem:[#allocation2 + $0xc0] sm:$0xff] 0.0
      %62 = vst [vmem:[#allocation2 + $0xc8] sm:$0xff] 0.0
      %63 = vst [vmem:[#allocation2 + $0xd0] sm:$0xff] 0.0
      %64 = vst [vmem:[#allocation2 + $0xd8] sm:$0xff] 0.0
      %65 = vst [vmem:[#allocation2 + $0xe0] sm:$0xff] 0.0
      %66 = vst [vmem:[#allocation2 + $0xe8] sm:$0xff] 0.0
      %67 = vst [vmem:[#allocation2 + $0xf0] sm:$0xff] 0.0
      %68 = vst [vmem:[#allocation2 + $0xf8] sm:$0xff] 0.0
    $region37: #{ngcf_forward.7} parent=1 // pred_fallthru
      _
    %v69 = vld [vmem:[#allocation2] sm:$0xff]
    %v70 = vld [vmem:[#allocation2 + $0x8] sm:$0xff]
    %v71 = vld [vmem:[#allocation2 + $0x10] sm:$0xff]
    %v72 = vld [vmem:[#allocation2 + $0x18] sm:$0xff]
    %v73 = vld [vmem:[#allocation2 + $0x20] sm:$0xff]
    %v74 = vld [vmem:[#allocation2 + $0x28] sm:$0xff]
    %v75 = vld [vmem:[#allocation2 + $0x30] sm:$0xff]
    %v76 = vld [vmem:[#allocation2 + $0x38] sm:$0xff]
    %v77 = vld [vmem:[#allocation2 + $0x40] sm:$0xff]
    %v78 = vld [vmem:[#allocation2 + $0x48] sm:$0xff]
    %v79 = vld [vmem:[#allocation2 + $0x50] sm:$0xff]
    %v80 = vld [vmem:[#allocation2 + $0x58] sm:$0xff]
    %v81 = vld [vmem:[#allocation2 + $0x60] sm:$0xff]
    %v82 = vld [vmem:[#allocation2 + $0x68] sm:$0xff]
    %v83 = vld [vmem:[#allocation2 + $0x70] sm:$0xff]
    %v84 = vld [vmem:[#allocation2 + $0x78] sm:$0xff]
    %v85 = vld [vmem:[#allocation2 + $0x80] sm:$0xff]
    %v86 = vld [vmem:[#allocation2 + $0x88] sm:$0xff]
    %v87 = vld [vmem:[#allocation2 + $0x90] sm:$0xff]
    %v88 = vld [vmem:[#allocation2 + $0x98] sm:$0xff]
    %v89 = vld [vmem:[#allocation2 + $0xa0] sm:$0xff]
    %v90 = vld [vmem:[#allocation2 + $0xa8] sm:$0xff]
    %v91 = vld [vmem:[#allocation2 + $0xb0] sm:$0xff]
    %v92 = vld [vmem:[#allocation2 + $0xb8] sm:$0xff]
    %v93 = vld [vmem:[#allocation2 + $0xc0] sm:$0xff]
    %v94 = vld [vmem:[#allocation2 + $0xc8] sm:$0xff]
    %v95 = vld [vmem:[#allocation2 + $0xd0] sm:$0xff]
    %v96 = vld [vmem:[#allocation2 + $0xd8] sm:$0xff]
    %v97 = vld [vmem:[#allocation2 + $0xe0] sm:$0xff]
    %v98 = vld [vmem:[#allocation2 + $0xe8] sm:$0xff]
    %v99 = vld [vmem:[#allocation2 + $0xf0] sm:$0xff]
    %v100 = vld [vmem:[#allocation2 + $0xf8] sm:$0xff]
    %v101 = vld [vmem:[%s0] sm:$0xff]
    %v102 = vld [vmem:[%s0 + $0x8] sm:$0xff]
    %v103 = vld [vmem:[%s0 + $0x10] sm:$0xff]
    %v104 = vld [vmem:[%s0 + $0x18] sm:$0xff]
    %v105 = vld [vmem:[%s0 + $0x20] sm:$0xff]
    %v106 = vld [vmem:[%s0 + $0x28] sm:$0xff]
    %v107 = vld [vmem:[%s0 + $0x30] sm:$0xff]
    %v108 = vld [vmem:[%s0 + $0x38] sm:$0xff]
    %v109 = vld [vmem:[%s0 + $0x40] sm:$0xff]
    %v110 = vld [vmem:[%s0 + $0x48] sm:$0xff]
    %v111 = vld [vmem:[%s0 + $0x50] sm:$0xff]
    %v112 = vld [vmem:[%s0 + $0x58] sm:$0xff]
    %v113 = vld [vmem:[%s0 + $0x60] sm:$0xff]
    %v114 = vld [vmem:[%s0 + $0x68] sm:$0xff]
    %v115 = vld [vmem:[%s0 + $0x70] sm:$0xff]
    %v116 = vld [vmem:[%s0 + $0x78] sm:$0xff]
    %v117 = vld [vmem:[%s0 + $0x80] sm:$0xff]
    %v118 = vld [vmem:[%s0 + $0x88] sm:$0xff]
    %v119 = vld [vmem:[%s0 + $0x90] sm:$0xff]
    %v120 = vld [vmem:[%s0 + $0x98] sm:$0xff]
    %v121 = vld [vmem:[%s0 + $0xa0] sm:$0xff]
    %v122 = vld [vmem:[%s0 + $0xa8] sm:$0xff]
    %v123 = vld [vmem:[%s0 + $0xb0] sm:$0xff]
    %v124 = vld [vmem:[%s0 + $0xb8] sm:$0xff]
    %v125 = vld [vmem:[%s0 + $0xc0] sm:$0xff]
    %v126 = vld [vmem:[%s0 + $0xc8] sm:$0xff]
    %v127 = vld [vmem:[%s0 + $0xd0] sm:$0xff]
    %v128 = vld [vmem:[%s0 + $0xd8] sm:$0xff]
    %v129 = vld [vmem:[%s0 + $0xe0] sm:$0xff]
    %v130 = vld [vmem:[%s0 + $0xe8] sm:$0xff]
    %v131 = vld [vmem:[%s0 + $0xf0] sm:$0xff]
    %v132 = vld [vmem:[%s0 + $0xf8] sm:$0xff]
    %v133 = vld [vmem:[%s1] sm:$0xf]
    %v134 = vld [vmem:[%s1 + $0x4] sm:$0xf]
    %v135 = vld [vmem:[%s1 + $0x8] sm:$0xf]
    %v136 = vld [vmem:[%s1 + $0xc] sm:$0xf]
    %v137 = vld [vmem:[%s1 + $0x10] sm:$0xf]
    %v138 = vld [vmem:[%s1 + $0x14] sm:$0xf]
    %v139 = vld [vmem:[%s1 + $0x18] sm:$0xf]
    %v140 = vld [vmem:[%s1 + $0x1c] sm:$0xf]
    %v141 = vld [vmem:[%s1 + $0x20] sm:$0xf]
    %v142 = vld [vmem:[%s1 + $0x24] sm:$0xf]
    %v143 = vld [vmem:[%s1 + $0x28] sm:$0xf]
    %v144 = vld [vmem:[%s1 + $0x2c] sm:$0xf]
    %v145 = vld [vmem:[%s1 + $0x30] sm:$0xf]
    %v146 = vld [vmem:[%s1 + $0x34] sm:$0xf]
    %v147 = vld [vmem:[%s1 + $0x38] sm:$0xf]
    %v148 = vld [vmem:[%s1 + $0x3c] sm:$0xf]
    %v149 = vld [vmem:[%s1 + $0x40] sm:$0xf]
    %v150 = vld [vmem:[%s1 + $0x44] sm:$0xf]
    %v151 = vld [vmem:[%s1 + $0x48] sm:$0xf]
    %v152 = vld [vmem:[%s1 + $0x4c] sm:$0xf]
    %v153 = vld [vmem:[%s1 + $0x50] sm:$0xf]
    %v154 = vld [vmem:[%s1 + $0x54] sm:$0xf]
    %v155 = vld [vmem:[%s1 + $0x58] sm:$0xf]
    %v156 = vld [vmem:[%s1 + $0x5c] sm:$0xf]
    %v157 = vld [vmem:[%s1 + $0x60] sm:$0xf]
    %v158 = vld [vmem:[%s1 + $0x64] sm:$0xf]
    %v159 = vld [vmem:[%s1 + $0x68] sm:$0xf]
    %v160 = vld [vmem:[%s1 + $0x6c] sm:$0xf]
    %v161 = vld [vmem:[%s1 + $0x70] sm:$0xf]
    %v162 = vld [vmem:[%s1 + $0x74] sm:$0xf]
    %v163 = vld [vmem:[%s1 + $0x78] sm:$0xf]
    %v164 = vld [vmem:[%s1 + $0x7c] sm:$0xf]
    %v197 = vunpack.c.l.b16 %v101
    %v198 = vunpack.c.h.b16 %v101
    %v199 = vunpack.c.l.b16 %v102
    %v200 = vunpack.c.h.b16 %v102
    %v201 = vunpack.c.l.b16 %v103
    %v202 = vunpack.c.h.b16 %v103
    %v203 = vunpack.c.l.b16 %v104
    %v204 = vunpack.c.h.b16 %v104
    %v205 = vunpack.c.l.b16 %v105
    %v206 = vunpack.c.h.b16 %v105
    %v207 = vunpack.c.l.b16 %v106
    %v208 = vunpack.c.h.b16 %v106
    %v209 = vunpack.c.l.b16 %v107
    %v210 = vunpack.c.h.b16 %v107
    %v211 = vunpack.c.l.b16 %v108
    %v212 = vunpack.c.h.b16 %v108
    %v213 = vunpack.c.l.b16 %v109
    %v214 = vunpack.c.h.b16 %v109
    %v215 = vunpack.c.l.b16 %v110
    %v216 = vunpack.c.h.b16 %v110
    %v217 = vunpack.c.l.b16 %v111
    %v218 = vunpack.c.h.b16 %v111
    %v219 = vunpack.c.l.b16 %v112
    %v220 = vunpack.c.h.b16 %v112
    %v221 = vunpack.c.l.b16 %v113
    %v222 = vunpack.c.h.b16 %v113
    %v223 = vunpack.c.l.b16 %v114
    %v224 = vunpack.c.h.b16 %v114
    %v225 = vunpack.c.l.b16 %v115
    %v226 = vunpack.c.h.b16 %v115
    %v227 = vunpack.c.l.b16 %v116
    %v228 = vunpack.c.h.b16 %v116
    %v229 = vunpack.c.l.b16 %v117
    %v230 = vunpack.c.h.b16 %v117
    %v231 = vunpack.c.l.b16 %v118
    %v232 = vunpack.c.h.b16 %v118
    %v233 = vunpack.c.l.b16 %v119
    %v234 = vunpack.c.h.b16 %v119
    %v235 = vunpack.c.l.b16 %v120
    %v236 = vunpack.c.h.b16 %v120
    %v237 = vunpack.c.l.b16 %v121
    %v238 = vunpack.c.h.b16 %v121
    %v239 = vunpack.c.l.b16 %v122
    %v240 = vunpack.c.h.b16 %v122
    %v241 = vunpack.c.l.b16 %v123
    %v242 = vunpack.c.h.b16 %v123
    %v243 = vunpack.c.l.b16 %v124
    %v244 = vunpack.c.h.b16 %v124
    %v245 = vunpack.c.l.b16 %v125
    %v246 = vunpack.c.h.b16 %v125
    %v247 = vunpack.c.l.b16 %v126
    %v248 = vunpack.c.h.b16 %v126
    %v249 = vunpack.c.l.b16 %v127
    %v250 = vunpack.c.h.b16 %v127
    %v251 = vunpack.c.l.b16 %v128
    %v252 = vunpack.c.h.b16 %v128
    %v253 = vunpack.c.l.b16 %v129
    %v254 = vunpack.c.h.b16 %v129
    %v255 = vunpack.c.l.b16 %v130
    %v256 = vunpack.c.h.b16 %v130
    %v257 = vunpack.c.l.b16 %v131
    %v258 = vunpack.c.h.b16 %v131
    %v259 = vunpack.c.l.b16 %v132
    %v260 = vunpack.c.h.b16 %v132
    %v261 = vpack.c.b16 %v199, %v197
    %v262 = vpack.c.b16 %v200, %v198
    %v263 = vpack.c.b16 %v203, %v201
    %v264 = vpack.c.b16 %v204, %v202
    %v265 = vpack.c.b16 %v207, %v205
    %v266 = vpack.c.b16 %v208, %v206
    %v267 = vpack.c.b16 %v211, %v209
    %v268 = vpack.c.b16 %v212, %v210
    %v269 = vpack.c.b16 %v215, %v213
    %v270 = vpack.c.b16 %v216, %v214
    %v271 = vpack.c.b16 %v219, %v217
    %v272 = vpack.c.b16 %v220, %v218
    %v273 = vpack.c.b16 %v223, %v221
    %v274 = vpack.c.b16 %v224, %v222
    %v275 = vpack.c.b16 %v227, %v225
    %v276 = vpack.c.b16 %v228, %v226
    %v277 = vpack.c.b16 %v231, %v229
    %v278 = vpack.c.b16 %v232, %v230
    %v279 = vpack.c.b16 %v235, %v233
    %v280 = vpack.c.b16 %v236, %v234
    %v281 = vpack.c.b16 %v239, %v237
    %v282 = vpack.c.b16 %v240, %v238
    %v283 = vpack.c.b16 %v243, %v241
    %v284 = vpack.c.b16 %v244, %v242
    %v285 = vpack.c.b16 %v247, %v245
    %v286 = vpack.c.b16 %v248, %v246
    %v287 = vpack.c.b16 %v251, %v249
    %v288 = vpack.c.b16 %v252, %v250
    %v289 = vpack.c.b16 %v255, %v253
    %v290 = vpack.c.b16 %v256, %v254
    %v291 = vpack.c.b16 %v259, %v257
    %v292 = vpack.c.b16 %v260, %v258
    %v357 = vunpack.c.l.b16 %v133
    %v358 = vunpack.c.l.b16 %v134
    %v359 = vunpack.c.l.b16 %v135
    %v360 = vunpack.c.l.b16 %v136
    %v361 = vunpack.c.l.b16 %v137
    %v362 = vunpack.c.l.b16 %v138
    %v363 = vunpack.c.l.b16 %v139
    %v364 = vunpack.c.l.b16 %v140
    %v365 = vunpack.c.l.b16 %v141
    %v366 = vunpack.c.l.b16 %v142
    %v367 = vunpack.c.l.b16 %v143
    %v368 = vunpack.c.l.b16 %v144
    %v369 = vunpack.c.l.b16 %v145
    %v370 = vunpack.c.l.b16 %v146
    %v371 = vunpack.c.l.b16 %v147
    %v372 = vunpack.c.l.b16 %v148
    %v373 = vunpack.c.l.b16 %v149
    %v374 = vunpack.c.l.b16 %v150
    %v375 = vunpack.c.l.b16 %v151
    %v376 = vunpack.c.l.b16 %v152
    %v377 = vunpack.c.l.b16 %v153
    %v378 = vunpack.c.l.b16 %v154
    %v379 = vunpack.c.l.b16 %v155
    %v380 = vunpack.c.l.b16 %v156
    %v381 = vunpack.c.l.b16 %v157
    %v382 = vunpack.c.l.b16 %v158
    %v383 = vunpack.c.l.b16 %v159
    %v384 = vunpack.c.l.b16 %v160
    %v385 = vunpack.c.l.b16 %v161
    %v386 = vunpack.c.l.b16 %v162
    %v387 = vunpack.c.l.b16 %v163
    %v388 = vunpack.c.l.b16 %v164
    %v389 = vpack.c.b16 %v358, %v357
    %v390 = vpack.c.b16 %v360, %v359
    %v391 = vpack.c.b16 %v362, %v361
    %v392 = vpack.c.b16 %v364, %v363
    %v393 = vpack.c.b16 %v366, %v365
    %v394 = vpack.c.b16 %v368, %v367
    %v395 = vpack.c.b16 %v370, %v369
    %v396 = vpack.c.b16 %v372, %v371
    %v397 = vpack.c.b16 %v374, %v373
    %v398 = vpack.c.b16 %v376, %v375
    %v399 = vpack.c.b16 %v378, %v377
    %v400 = vpack.c.b16 %v380, %v379
    %v401 = vpack.c.b16 %v382, %v381
    %v402 = vpack.c.b16 %v384, %v383
    %v403 = vpack.c.b16 %v386, %v385
    %v404 = vpack.c.b16 %v388, %v387
    %421 = vmatprep.subr.bf16.mxu0 0
    %422 = vmatpush1.bf16.msra.mxu0 %v389
    %423 = vmatprep.subr.bf16.mxu0 0
    %424 = vmatpush1.bf16.msra.mxu0 %v390
    %425 = vmatprep.subr.bf16.mxu0 0
    %426 = vmatpush1.bf16.msra.mxu0 %v391
    %427 = vmatprep.subr.bf16.mxu0 0
    %428 = vmatpush1.bf16.msra.mxu0 %v392
    %429 = vmatprep.subr.bf16.mxu0 0
    %430 = vmatpush1.bf16.msra.mxu0 %v393
    %431 = vmatprep.subr.bf16.mxu0 0
    %432 = vmatpush1.bf16.msra.mxu0 %v394
    %433 = vmatprep.subr.bf16.mxu0 0
    %434 = vmatpush1.bf16.msra.mxu0 %v395
    %435 = vmatprep.subr.bf16.mxu0 0
    %436 = vmatpush1.bf16.msra.mxu0 %v396
    %437 = vmatprep.subr.bf16.mxu0 0
    %438 = vmatpush1.bf16.msra.mxu0 %v397
    %439 = vmatprep.subr.bf16.mxu0 0
    %440 = vmatpush1.bf16.msra.mxu0 %v398
    %441 = vmatprep.subr.bf16.mxu0 0
    %442 = vmatpush1.bf16.msra.mxu0 %v399
    %443 = vmatprep.subr.bf16.mxu0 0
    %444 = vmatpush1.bf16.msra.mxu0 %v400
    %445 = vmatprep.subr.bf16.mxu0 0
    %446 = vmatpush1.bf16.msra.mxu0 %v401
    %447 = vmatprep.subr.bf16.mxu0 0
    %448 = vmatpush1.bf16.msra.mxu0 %v402
    %449 = vmatprep.subr.bf16.mxu0 0
    %450 = vmatpush1.bf16.msra.mxu0 %v403
    %451 = vmatprep.subr.bf16.mxu0 0
    %452 = vmatpush1.bf16.msra.mxu0 %v404
    %453 = vmatprep.mubr.bf16.mxu0 %v262
    %454 = vmatmul.mubr.bf16.gmra.mrb[0].mxu0 %v261
    %v455 = vpop.f32.mrb[0].mxu0
    %v456 = vadd.f32 0.0, %v455
    %v457 = vpop.f32.mrb[0].mxu0
    %v458 = vpop.f32.mrb[0].mxu0
    %v459 = vadd.f32 0.0, %v458
    %v460 = vpop.f32.mrb[0].mxu0
    %461 = vmatprep.mubr.bf16.mxu0 %v264
    %462 = vmatmul.mubr.bf16.gmra.mrb[0].mxu0 %v263
    %v463 = vpop.f32.mrb[0].mxu0
    %v464 = vadd.f32 0.0, %v463
    %v465 = vpop.f32.mrb[0].mxu0
    %v466 = vpop.f32.mrb[0].mxu0
    %v467 = vadd.f32 0.0, %v466
    %v468 = vpop.f32.mrb[0].mxu0
    %469 = vmatprep.mubr.bf16.mxu0 %v266
    %470 = vmatmul.mubr.bf16.gmra.mrb[0].mxu0 %v265
    %v471 = vpop.f32.mrb[0].mxu0
    %v472 = vadd.f32 0.0, %v471
    %v473 = vpop.f32.mrb[0].mxu0
    %v474 = vpop.f32.mrb[0].mxu0
    %v475 = vadd.f32 0.0, %v474
    %v476 = vpop.f32.mrb[0].mxu0
    %477 = vmatprep.mubr.bf16.mxu0 %v268
    %478 = vmatmul.mubr.bf16.gmra.mrb[0].mxu0 %v267
    %v479 = vpop.f32.mrb[0].mxu0
    %v480 = vadd.f32 0.0, %v479
    %v481 = vpop.f32.mrb[0].mxu0
    %v482 = vpop.f32.mrb[0].mxu0
    %v483 = vadd.f32 0.0, %v482
    %v484 = vpop.f32.mrb[0].mxu0
    %485 = vmatprep.mubr.bf16.mxu0 %v270
    %486 = vmatmul.mubr.bf16.gmra.mrb[0].mxu0 %v269
    %v487 = vpop.f32.mrb[0].mxu0
    %v488 = vadd.f32 0.0, %v487
    %v489 = vpop.f32.mrb[0].mxu0
    %v490 = vpop.f32.mrb[0].mxu0
    %v491 = vadd.f32 0.0, %v490
    %v492 = vpop.f32.mrb[0].mxu0
    %493 = vmatprep.mubr.bf16.mxu0 %v272
    %494 = vmatmul.mubr.bf16.gmra.mrb[0].mxu0 %v271
    %v495 = vpop.f32.mrb[0].mxu0
    %v496 = vadd.f32 0.0, %v495
    %v497 = vpop.f32.mrb[0].mxu0
    %v498 = vpop.f32.mrb[0].mxu0
    %v499 = vadd.f32 0.0, %v498
    %v500 = vpop.f32.mrb[0].mxu0
    %501 = vmatprep.mubr.bf16.mxu0 %v274
    %502 = vmatmul.mubr.bf16.gmra.mrb[0].mxu0 %v273
    %v503 = vpop.f32.mrb[0].mxu0
    %v504 = vadd.f32 0.0, %v503
    %v505 = vpop.f32.mrb[0].mxu0
    %v506 = vpop.f32.mrb[0].mxu0
    %v507 = vadd.f32 0.0, %v506
    %v508 = vpop.f32.mrb[0].mxu0
    %509 = vmatprep.mubr.bf16.mxu0 %v276
    %510 = vmatmul.mubr.bf16.gmra.mrb[0].mxu0 %v275
    %v511 = vpop.f32.mrb[0].mxu0
    %v512 = vadd.f32 0.0, %v511
    %v513 = vpop.f32.mrb[0].mxu0
    %v514 = vpop.f32.mrb[0].mxu0
    %v515 = vadd.f32 0.0, %v514
    %v516 = vpop.f32.mrb[0].mxu0
    %517 = vmatprep.mubr.bf16.mxu0 %v278
    %518 = vmatmul.mubr.bf16.gmra.mrb[0].mxu0 %v277
    %v519 = vpop.f32.mrb[0].mxu0
    %v520 = vadd.f32 0.0, %v519
    %v521 = vpop.f32.mrb[0].mxu0
    %v522 = vpop.f32.mrb[0].mxu0
    %v523 = vadd.f32 0.0, %v522
    %v524 = vpop.f32.mrb[0].mxu0
    %525 = vmatprep.mubr.bf16.mxu0 %v280
    %526 = vmatmul.mubr.bf16.gmra.mrb[0].mxu0 %v279
    %v527 = vpop.f32.mrb[0].mxu0
    %v528 = vadd.f32 0.0, %v527
    %v529 = vpop.f32.mrb[0].mxu0
    %v530 = vpop.f32.mrb[0].mxu0
    %v531 = vadd.f32 0.0, %v530
    %v532 = vpop.f32.mrb[0].mxu0
    %533 = vmatprep.mubr.bf16.mxu0 %v282
    %534 = vmatmul.mubr.bf16.gmra.mrb[0].mxu0 %v281
    %v535 = vpop.f32.mrb[0].mxu0
    %v536 = vadd.f32 0.0, %v535
    %v537 = vpop.f32.mrb[0].mxu0
    %v538 = vpop.f32.mrb[0].mxu0
    %v539 = vadd.f32 0.0, %v538
    %v540 = vpop.f32.mrb[0].mxu0
    %541 = vmatprep.mubr.bf16.mxu0 %v284
    %542 = vmatmul.mubr.bf16.gmra.mrb[0].mxu0 %v283
    %v543 = vpop.f32.mrb[0].mxu0
    %v544 = vadd.f32 0.0, %v543
    %v545 = vpop.f32.mrb[0].mxu0
    %v546 = vpop.f32.mrb[0].mxu0
    %v547 = vadd.f32 0.0, %v546
    %v548 = vpop.f32.mrb[0].mxu0
    %549 = vmatprep.mubr.bf16.mxu0 %v286
    %550 = vmatmul.mubr.bf16.gmra.mrb[0].mxu0 %v285
    %v551 = vpop.f32.mrb[0].mxu0
    %v552 = vadd.f32 0.0, %v551
    %v553 = vpop.f32.mrb[0].mxu0
    %v554 = vpop.f32.mrb[0].mxu0
    %v555 = vadd.f32 0.0, %v554
    %v556 = vpop.f32.mrb[0].mxu0
    %557 = vmatprep.mubr.bf16.mxu0 %v288
    %558 = vmatmul.mubr.bf16.gmra.mrb[0].mxu0 %v287
    %v559 = vpop.f32.mrb[0].mxu0
    %v560 = vadd.f32 0.0, %v559
    %v561 = vpop.f32.mrb[0].mxu0
    %v562 = vpop.f32.mrb[0].mxu0
    %v563 = vadd.f32 0.0, %v562
    %v564 = vpop.f32.mrb[0].mxu0
    %565 = vmatprep.mubr.bf16.mxu0 %v290
    %566 = vmatmul.mubr.bf16.gmra.mrb[0].mxu0 %v289
    %v567 = vpop.f32.mrb[0].mxu0
    %v568 = vadd.f32 0.0, %v567
    %v569 = vpop.f32.mrb[0].mxu0
    %v570 = vpop.f32.mrb[0].mxu0
    %v571 = vadd.f32 0.0, %v570
    %v572 = vpop.f32.mrb[0].mxu0
    %573 = vmatprep.mubr.bf16.mxu0 %v292
    %574 = vmatmul.mubr.bf16.gmra.mrb[0].mxu0 %v291
    %v575 = vpop.f32.mrb[0].mxu0
    %v576 = vadd.f32 0.0, %v575
    %v577 = vpop.f32.mrb[0].mxu0
    %v578 = vpop.f32.mrb[0].mxu0
    %v579 = vadd.f32 0.0, %v578
    %v580 = vpop.f32.mrb[0].mxu0
    %581 = vdwg.mxu0
    %v582 = vadd.f32 %v69, %v456
    %v583 = vadd.f32 %v70, %v459
    %v584 = vadd.f32 %v71, %v464
    %v585 = vadd.f32 %v72, %v467
    %v586 = vadd.f32 %v73, %v472
    %v587 = vadd.f32 %v74, %v475
    %v588 = vadd.f32 %v75, %v480
    %v589 = vadd.f32 %v76, %v483
    %v590 = vadd.f32 %v77, %v488
    %v591 = vadd.f32 %v78, %v491
    %v592 = vadd.f32 %v79, %v496
    %v593 = vadd.f32 %v80, %v499
    %v594 = vadd.f32 %v81, %v504
    %v595 = vadd.f32 %v82, %v507
    %v596 = vadd.f32 %v83, %v512
    %v597 = vadd.f32 %v84, %v515
    %v598 = vadd.f32 %v85, %v520
    %v599 = vadd.f32 %v86, %v523
    %v600 = vadd.f32 %v87, %v528
    %v601 = vadd.f32 %v88, %v531
    %v602 = vadd.f32 %v89, %v536
    %v603 = vadd.f32 %v90, %v539
    %v604 = vadd.f32 %v91, %v544
    %v605 = vadd.f32 %v92, %v547
    %v606 = vadd.f32 %v93, %v552
    %v607 = vadd.f32 %v94, %v555
    %v608 = vadd.f32 %v95, %v560
    %v609 = vadd.f32 %v96, %v563
    %v610 = vadd.f32 %v97, %v568
    %v611 = vadd.f32 %v98, %v571
    %v612 = vadd.f32 %v99, %v576
    %v613 = vadd.f32 %v100, %v579
    %614 = vst [vmem:[#allocation2] sm:$0xff] %v582
    %615 = vst [vmem:[#allocation2 + $0x8] sm:$0xff] %v583
    %616 = vst [vmem:[#allocation2 + $0x10] sm:$0xff] %v584
    %617 = vst [vmem:[#allocation2 + $0x18] sm:$0xff] %v585
    %618 = vst [vmem:[#allocation2 + $0x20] sm:$0xff] %v586
    %619 = vst [vmem:[#allocation2 + $0x28] sm:$0xff] %v587
    %620 = vst [vmem:[#allocation2 + $0x30] sm:$0xff] %v588
    %621 = vst [vmem:[#allocation2 + $0x38] sm:$0xff] %v589
    %622 = vst [vmem:[#allocation2 + $0x40] sm:$0xff] %v590
    %623 = vst [vmem:[#allocation2 + $0x48] sm:$0xff] %v591
    %624 = vst [vmem:[#allocation2 + $0x50] sm:$0xff] %v592
    %625 = vst [vmem:[#allocation2 + $0x58] sm:$0xff] %v593
    %626 = vst [vmem:[#allocation2 + $0x60] sm:$0xff] %v594
    %627 = vst [vmem:[#allocation2 + $0x68] sm:$0xff] %v595
    %628 = vst [vmem:[#allocation2 + $0x70] sm:$0xff] %v596
    %629 = vst [vmem:[#allocation2 + $0x78] sm:$0xff] %v597
    %630 = vst [vmem:[#allocation2 + $0x80] sm:$0xff] %v598
    %631 = vst [vmem:[#allocation2 + $0x88] sm:$0xff] %v599
    %632 = vst [vmem:[#allocation2 + $0x90] sm:$0xff] %v600
    %633 = vst [vmem:[#allocation2 + $0x98] sm:$0xff] %v601
    %634 = vst [vmem:[#allocation2 + $0xa0] sm:$0xff] %v602
    %635 = vst [vmem:[#allocation2 + $0xa8] sm:$0xff] %v603
    %636 = vst [vmem:[#allocation2 + $0xb0] sm:$0xff] %v604
    %637 = vst [vmem:[#allocation2 + $0xb8] sm:$0xff] %v605
    %638 = vst [vmem:[#allocation2 + $0xc0] sm:$0xff] %v606
    %639 = vst [vmem:[#allocation2 + $0xc8] sm:$0xff] %v607
    %640 = vst [vmem:[#allocation2 + $0xd0] sm:$0xff] %v608
    %641 = vst [vmem:[#allocation2 + $0xd8] sm:$0xff] %v609
    %642 = vst [vmem:[#allocation2 + $0xe0] sm:$0xff] %v610
    %643 = vst [vmem:[#allocation2 + $0xe8] sm:$0xff] %v611
    %644 = vst [vmem:[#allocation2 + $0xf0] sm:$0xff] %v612
    %645 = vst [vmem:[#allocation2 + $0xf8] sm:$0xff] %v613
    // Predicated region
    $region38: #{ngcf_forward.7} parent=1 // pred_check
      %p646 = pneg %p33
    $region39: #{ngcf_forward.7} parent=1 // pred_check_branch
      %648 = sbr.rel (%p646) target = $region41
    $region40: #{ngcf_forward.7} parent=1 // pred_region
      %v649 = vld [vmem:[#allocation2] sm:$0xff]
      %v650 = vld [vmem:[#allocation2 + $0x8] sm:$0xff]
      %v651 = vld [vmem:[#allocation2 + $0x10] sm:$0xff]
      %v652 = vld [vmem:[#allocation2 + $0x18] sm:$0xff]
      %v653 = vld [vmem:[#allocation2 + $0x20] sm:$0xff]
      %v654 = vld [vmem:[#allocation2 + $0x28] sm:$0xff]
      %v655 = vld [vmem:[#allocation2 + $0x30] sm:$0xff]
      %v656 = vld [vmem:[#allocation2 + $0x38] sm:$0xff]
      %v657 = vld [vmem:[#allocation2 + $0x40] sm:$0xff]
      %v658 = vld [vmem:[#allocation2 + $0x48] sm:$0xff]
      %v659 = vld [vmem:[#allocation2 + $0x50] sm:$0xff]
      %v660 = vld [vmem:[#allocation2 + $0x58] sm:$0xff]
      %v661 = vld [vmem:[#allocation2 + $0x60] sm:$0xff]
      %v662 = vld [vmem:[#allocation2 + $0x68] sm:$0xff]
      %v663 = vld [vmem:[#allocation2 + $0x70] sm:$0xff]
      %v664 = vld [vmem:[#allocation2 + $0x78] sm:$0xff]
      %v665 = vld [vmem:[#allocation2 + $0x80] sm:$0xff]
      %v666 = vld [vmem:[#allocation2 + $0x88] sm:$0xff]
      %v667 = vld [vmem:[#allocation2 + $0x90] sm:$0xff]
      %v668 = vld [vmem:[#allocation2 + $0x98] sm:$0xff]
      %v669 = vld [vmem:[#allocation2 + $0xa0] sm:$0xff]
      %v670 = vld [vmem:[#allocation2 + $0xa8] sm:$0xff]
      %v671 = vld [vmem:[#allocation2 + $0xb0] sm:$0xff]
      %v672 = vld [vmem:[#allocation2 + $0xb8] sm:$0xff]
      %v673 = vld [vmem:[#allocation2 + $0xc0] sm:$0xff]
      %v674 = vld [vmem:[#allocation2 + $0xc8] sm:$0xff]
      %v675 = vld [vmem:[#allocation2 + $0xd0] sm:$0xff]
      %v676 = vld [vmem:[#allocation2 + $0xd8] sm:$0xff]
      %v677 = vld [vmem:[#allocation2 + $0xe0] sm:$0xff]
      %v678 = vld [vmem:[#allocation2 + $0xe8] sm:$0xff]
      %v679 = vld [vmem:[#allocation2 + $0xf0] sm:$0xff]
      %v680 = vld [vmem:[#allocation2 + $0xf8] sm:$0xff]
      %v681 = vld [vmem:[%s2] sm:$0xff]
      %v682 = vld [vmem:[%s2 + $0x8] sm:$0xff]
      %v683 = vld [vmem:[%s2 + $0x10] sm:$0xff]
      %v684 = vld [vmem:[%s2 + $0x18] sm:$0xff]
      %v685 = vld [vmem:[%s2 + $0x20] sm:$0xff]
      %v686 = vld [vmem:[%s2 + $0x28] sm:$0xff]
      %v687 = vld [vmem:[%s2 + $0x30] sm:$0xff]
      %v688 = vld [vmem:[%s2 + $0x38] sm:$0xff]
      %v689 = vld [vmem:[%s2 + $0x40] sm:$0xff]
      %v690 = vld [vmem:[%s2 + $0x48] sm:$0xff]
      %v691 = vld [vmem:[%s2 + $0x50] sm:$0xff]
      %v692 = vld [vmem:[%s2 + $0x58] sm:$0xff]
      %v693 = vld [vmem:[%s2 + $0x60] sm:$0xff]
      %v694 = vld [vmem:[%s2 + $0x68] sm:$0xff]
      %v695 = vld [vmem:[%s2 + $0x70] sm:$0xff]
      %v696 = vld [vmem:[%s2 + $0x78] sm:$0xff]
      %v697 = vld [vmem:[%s2 + $0x80] sm:$0xff]
      %v698 = vld [vmem:[%s2 + $0x88] sm:$0xff]
      %v699 = vld [vmem:[%s2 + $0x90] sm:$0xff]
      %v700 = vld [vmem:[%s2 + $0x98] sm:$0xff]
      %v701 = vld [vmem:[%s2 + $0xa0] sm:$0xff]
      %v702 = vld [vmem:[%s2 + $0xa8] sm:$0xff]
      %v703 = vld [vmem:[%s2 + $0xb0] sm:$0xff]
      %v704 = vld [vmem:[%s2 + $0xb8] sm:$0xff]
      %v705 = vld [vmem:[%s2 + $0xc0] sm:$0xff]
      %v706 = vld [vmem:[%s2 + $0xc8] sm:$0xff]
      %v707 = vld [vmem:[%s2 + $0xd0] sm:$0xff]
      %v708 = vld [vmem:[%s2 + $0xd8] sm:$0xff]
      %v709 = vld [vmem:[%s2 + $0xe0] sm:$0xff]
      %v710 = vld [vmem:[%s2 + $0xe8] sm:$0xff]
      %v711 = vld [vmem:[%s2 + $0xf0] sm:$0xff]
      %v712 = vld [vmem:[%s2 + $0xf8] sm:$0xff]
      %v713 = vadd.f32 %v649, %v681
      %v714 = vadd.f32 %v650, %v682
      %v715 = vadd.f32 %v651, %v683
      %v716 = vadd.f32 %v652, %v684
      %v717 = vadd.f32 %v653, %v685
      %v718 = vadd.f32 %v654, %v686
      %v719 = vadd.f32 %v655, %v687
      %v720 = vadd.f32 %v656, %v688
      %v721 = vadd.f32 %v657, %v689
      %v722 = vadd.f32 %v658, %v690
      %v723 = vadd.f32 %v659, %v691
      %v724 = vadd.f32 %v660, %v692
      %v725 = vadd.f32 %v661, %v693
      %v726 = vadd.f32 %v662, %v694
      %v727 = vadd.f32 %v663, %v695
      %v728 = vadd.f32 %v664, %v696
      %v729 = vadd.f32 %v665, %v697
      %v730 = vadd.f32 %v666, %v698
      %v731 = vadd.f32 %v667, %v699
      %v732 = vadd.f32 %v668, %v700
      %v733 = vadd.f32 %v669, %v701
      %v734 = vadd.f32 %v670, %v702
      %v735 = vadd.f32 %v671, %v703
      %v736 = vadd.f32 %v672, %v704
      %v737 = vadd.f32 %v673, %v705
      %v738 = vadd.f32 %v674, %v706
      %v739 = vadd.f32 %v675, %v707
      %v740 = vadd.f32 %v676, %v708
      %v741 = vadd.f32 %v677, %v709
      %v742 = vadd.f32 %v678, %v710
      %v743 = vadd.f32 %v679, %v711
      %v744 = vadd.f32 %v680, %v712
      %v745 = vpack.c.bf16 %v714, %v713
      %v746 = vpack.c.bf16 %v716, %v715
      %v747 = vpack.c.bf16 %v718, %v717
      %v748 = vpack.c.bf16 %v720, %v719
      %v749 = vpack.c.bf16 %v722, %v721
      %v750 = vpack.c.bf16 %v724, %v723
      %v751 = vpack.c.bf16 %v726, %v725
      %v752 = vpack.c.bf16 %v728, %v727
      %v753 = vpack.c.bf16 %v730, %v729
      %v754 = vpack.c.bf16 %v732, %v731
      %v755 = vpack.c.bf16 %v734, %v733
      %v756 = vpack.c.bf16 %v736, %v735
      %v757 = vpack.c.bf16 %v738, %v737
      %v758 = vpack.c.bf16 %v740, %v739
      %v759 = vpack.c.bf16 %v742, %v741
      %v760 = vpack.c.bf16 %v744, %v743
      %v761 = vmul.f32 %v649, %v681
      %v762 = vmul.f32 %v650, %v682
      %v763 = vmul.f32 %v651, %v683
      %v764 = vmul.f32 %v652, %v684
      %v765 = vmul.f32 %v653, %v685
      %v766 = vmul.f32 %v654, %v686
      %v767 = vmul.f32 %v655, %v687
      %v768 = vmul.f32 %v656, %v688
      %v769 = vmul.f32 %v657, %v689
      %v770 = vmul.f32 %v658, %v690
      %v771 = vmul.f32 %v659, %v691
      %v772 = vmul.f32 %v660, %v692
      %v773 = vmul.f32 %v661, %v693
      %v774 = vmul.f32 %v662, %v694
      %v775 = vmul.f32 %v663, %v695
      %v776 = vmul.f32 %v664, %v696
      %v777 = vmul.f32 %v665, %v697
      %v778 = vmul.f32 %v666, %v698
      %v779 = vmul.f32 %v667, %v699
      %v780 = vmul.f32 %v668, %v700
      %v781 = vmul.f32 %v669, %v701
      %v782 = vmul.f32 %v670, %v702
      %v783 = vmul.f32 %v671, %v703
      %v784 = vmul.f32 %v672, %v704
      %v785 = vmul.f32 %v673, %v705
      %v786 = vmul.f32 %v674, %v706
      %v787 = vmul.f32 %v675, %v707
      %v788 = vmul.f32 %v676, %v708
      %v789 = vmul.f32 %v677, %v709
      %v790 = vmul.f32 %v678, %v710
      %v791 = vmul.f32 %v679, %v711
      %v792 = vmul.f32 %v680, %v712
      %v793 = vpack.c.bf16 %v762, %v761
      %v794 = vpack.c.bf16 %v764, %v763
      %v795 = vpack.c.bf16 %v766, %v765
      %v796 = vpack.c.bf16 %v768, %v767
      %v797 = vpack.c.bf16 %v770, %v769
      %v798 = vpack.c.bf16 %v772, %v771
      %v799 = vpack.c.bf16 %v774, %v773
      %v800 = vpack.c.bf16 %v776, %v775
      %v801 = vpack.c.bf16 %v778, %v777
      %v802 = vpack.c.bf16 %v780, %v779
      %v803 = vpack.c.bf16 %v782, %v781
      %v804 = vpack.c.bf16 %v784, %v783
      %v805 = vpack.c.bf16 %v786, %v785
      %v806 = vpack.c.bf16 %v788, %v787
      %v807 = vpack.c.bf16 %v790, %v789
      %v808 = vpack.c.bf16 %v792, %v791
      %v809 = vld [vmem:[%s4] sm:$0xf]
      %v810 = vld [vmem:[%s4 + $0x4] sm:$0xf]
      %v811 = vld [vmem:[%s4 + $0x8] sm:$0xf]
      %v812 = vld [vmem:[%s4 + $0xc] sm:$0xf]
      %v813 = vld [vmem:[%s4 + $0x10] sm:$0xf]
      %v814 = vld [vmem:[%s4 + $0x14] sm:$0xf]
      %v815 = vld [vmem:[%s4 + $0x18] sm:$0xf]
      %v816 = vld [vmem:[%s4 + $0x1c] sm:$0xf]
      %v817 = vld [vmem:[%s4 + $0x20] sm:$0xf]
      %v818 = vld [vmem:[%s4 + $0x24] sm:$0xf]
      %v819 = vld [vmem:[%s4 + $0x28] sm:$0xf]
      %v820 = vld [vmem:[%s4 + $0x2c] sm:$0xf]
      %v821 = vld [vmem:[%s4 + $0x30] sm:$0xf]
      %v822 = vld [vmem:[%s4 + $0x34] sm:$0xf]
      %v823 = vld [vmem:[%s4 + $0x38] sm:$0xf]
      %v824 = vld [vmem:[%s4 + $0x3c] sm:$0xf]
      %v825 = vld [vmem:[%s5] sm:$0xf]
      %v826 = vld [vmem:[%s5 + $0x4] sm:$0xf]
      %v827 = vld [vmem:[%s5 + $0x8] sm:$0xf]
      %v828 = vld [vmem:[%s5 + $0xc] sm:$0xf]
      %v829 = vld [vmem:[%s5 + $0x10] sm:$0xf]
      %v830 = vld [vmem:[%s5 + $0x14] sm:$0xf]
      %v831 = vld [vmem:[%s5 + $0x18] sm:$0xf]
      %v832 = vld [vmem:[%s5 + $0x1c] sm:$0xf]
      %v833 = vld [vmem:[%s5 + $0x20] sm:$0xf]
      %v834 = vld [vmem:[%s5 + $0x24] sm:$0xf]
      %v835 = vld [vmem:[%s5 + $0x28] sm:$0xf]
      %v836 = vld [vmem:[%s5 + $0x2c] sm:$0xf]
      %v837 = vld [vmem:[%s5 + $0x30] sm:$0xf]
      %v838 = vld [vmem:[%s5 + $0x34] sm:$0xf]
      %v839 = vld [vmem:[%s5 + $0x38] sm:$0xf]
      %v840 = vld [vmem:[%s5 + $0x3c] sm:$0xf]
      %v857 = vunpack.c.l.b16 %v825
      %v858 = vunpack.c.l.b16 %v826
      %v859 = vunpack.c.l.b16 %v827
      %v860 = vunpack.c.l.b16 %v828
      %v861 = vunpack.c.l.b16 %v829
      %v862 = vunpack.c.l.b16 %v830
      %v863 = vunpack.c.l.b16 %v831
      %v864 = vunpack.c.l.b16 %v832
      %v865 = vunpack.c.l.b16 %v833
      %v866 = vunpack.c.l.b16 %v834
      %v867 = vunpack.c.l.b16 %v835
      %v868 = vunpack.c.l.b16 %v836
      %v869 = vunpack.c.l.b16 %v837
      %v870 = vunpack.c.l.b16 %v838
      %v871 = vunpack.c.l.b16 %v839
      %v872 = vunpack.c.l.b16 %v840
      %v873 = vpack.c.b16 %v858, %v857
      %v874 = vpack.c.b16 %v860, %v859
      %v875 = vpack.c.b16 %v862, %v861
      %v876 = vpack.c.b16 %v864, %v863
      %v877 = vpack.c.b16 %v866, %v865
      %v878 = vpack.c.b16 %v868, %v867
      %v879 = vpack.c.b16 %v870, %v869
      %v880 = vpack.c.b16 %v872, %v871
      %889 = vmatprep.subr.bf16.mxu0 0
      %890 = vmatpush1.bf16.msra.mxu0 %v873
      %891 = vmatprep.subr.bf16.mxu0 0
      %892 = vmatpush1.bf16.msra.mxu0 %v874
      %893 = vmatprep.subr.bf16.mxu0 0
      %894 = vmatpush1.bf16.msra.mxu0 %v875
      %895 = vmatprep.subr.bf16.mxu0 0
      %896 = vmatpush1.bf16.msra.mxu0 %v876
      %897 = vmatprep.subr.bf16.mxu0 0
      %898 = vmatpush1.bf16.msra.mxu0 %v877
      %899 = vmatprep.subr.bf16.mxu0 0
      %900 = vmatpush1.bf16.msra.mxu0 %v878
      %901 = vmatprep.subr.bf16.mxu0 0
      %902 = vmatpush1.bf16.msra.mxu0 %v879
      %903 = vmatprep.subr.bf16.mxu0 0
      %904 = vmatpush1.bf16.msra.mxu0 %v880
      %905 = vmatprep.subr.bf16.mxu0 0
      %906 = vmatpush1.bf16.msra.mxu0 0
      %907 = vmatprep.subr.bf16.mxu0 0
      %908 = vmatpush1.bf16.msra.mxu0 0
      %909 = vmatprep.subr.bf16.mxu0 0
      %910 = vmatpush1.bf16.msra.mxu0 0
      %911 = vmatprep.subr.bf16.mxu0 0
      %912 = vmatpush1.bf16.msra.mxu0 0
      %913 = vmatprep.subr.bf16.mxu0 0
      %914 = vmatpush1.bf16.msra.mxu0 0
      %915 = vmatprep.subr.bf16.mxu0 0
      %916 = vmatpush1.bf16.msra.mxu0 0
      %917 = vmatprep.subr.bf16.mxu0 0
      %918 = vmatpush1.bf16.msra.mxu0 0
      %919 = vmatprep.subr.bf16.mxu0 0
      %920 = vmatpush1.bf16.msra.mxu0 0
      %921 = vmatprep.mubr.bf16.mxu0 0
      %922 = vmatmul.mubr.bf16.gmra.mrb[0].mxu0 %v793
      %v923 = vpop.f32.mrb[0].mxu0
      %v924 = vadd.f32 0.0, %v923
      %v925 = vpop.f32.mrb[0].mxu0
      %v926 = vpop.f32.mrb[0].mxu0
      %v927 = vadd.f32 0.0, %v926
      %v928 = vpop.f32.mrb[0].mxu0
      %929 = vmatprep.mubr.bf16.mxu0 0
      %930 = vmatmul.mubr.bf16.gmra.mrb[0].mxu0 %v794
      %v931 = vpop.f32.mrb[0].mxu0
      %v932 = vadd.f32 0.0, %v931
      %v933 = vpop.f32.mrb[0].mxu0
      %v934 = vpop.f32.mrb[0].mxu0
      %v935 = vadd.f32 0.0, %v934
      %v936 = vpop.f32.mrb[0].mxu0
      %937 = vmatprep.mubr.bf16.mxu0 0
      %938 = vmatmul.mubr.bf16.gmra.mrb[0].mxu0 %v795
      %v939 = vpop.f32.mrb[0].mxu0
      %v940 = vadd.f32 0.0, %v939
      %v941 = vpop.f32.mrb[0].mxu0
      %v942 = vpop.f32.mrb[0].mxu0
      %v943 = vadd.f32 0.0, %v942
      %v944 = vpop.f32.mrb[0].mxu0
      %945 = vmatprep.mubr.bf16.mxu0 0
      %946 = vmatmul.mubr.bf16.gmra.mrb[0].mxu0 %v796
      %v947 = vpop.f32.mrb[0].mxu0
      %v948 = vadd.f32 0.0, %v947
      %v949 = vpop.f32.mrb[0].mxu0
      %v950 = vpop.f32.mrb[0].mxu0
      %v951 = vadd.f32 0.0, %v950
      %v952 = vpop.f32.mrb[0].mxu0
      %953 = vmatprep.mubr.bf16.mxu0 0
      %954 = vmatmul.mubr.bf16.gmra.mrb[0].mxu0 %v797
      %v955 = vpop.f32.mrb[0].mxu0
      %v956 = vadd.f32 0.0, %v955
      %v957 = vpop.f32.mrb[0].mxu0
      %v958 = vpop.f32.mrb[0].mxu0
      %v959 = vadd.f32 0.0, %v958
      %v960 = vpop.f32.mrb[0].mxu0
      %961 = vmatprep.mubr.bf16.mxu0 0
      %962 = vmatmul.mubr.bf16.gmra.mrb[0].mxu0 %v798
      %v963 = vpop.f32.mrb[0].mxu0
      %v964 = vadd.f32 0.0, %v963
      %v965 = vpop.f32.mrb[0].mxu0
      %v966 = vpop.f32.mrb[0].mxu0
      %v967 = vadd.f32 0.0, %v966
      %v968 = vpop.f32.mrb[0].mxu0
      %969 = vmatprep.mubr.bf16.mxu0 0
      %970 = vmatmul.mubr.bf16.gmra.mrb[0].mxu0 %v799
      %v971 = vpop.f32.mrb[0].mxu0
      %v972 = vadd.f32 0.0, %v971
      %v973 = vpop.f32.mrb[0].mxu0
      %v974 = vpop.f32.mrb[0].mxu0
      %v975 = vadd.f32 0.0, %v974
      %v976 = vpop.f32.mrb[0].mxu0
      %977 = vmatprep.mubr.bf16.mxu0 0
      %978 = vmatmul.mubr.bf16.gmra.mrb[0].mxu0 %v800
      %v979 = vpop.f32.mrb[0].mxu0
      %v980 = vadd.f32 0.0, %v979
      %v981 = vpop.f32.mrb[0].mxu0
      %v982 = vpop.f32.mrb[0].mxu0
      %v983 = vadd.f32 0.0, %v982
      %v984 = vpop.f32.mrb[0].mxu0
      %985 = vmatprep.mubr.bf16.mxu0 0
      %986 = vmatmul.mubr.bf16.gmra.mrb[0].mxu0 %v801
      %v987 = vpop.f32.mrb[0].mxu0
      %v988 = vadd.f32 0.0, %v987
      %v989 = vpop.f32.mrb[0].mxu0
      %v990 = vpop.f32.mrb[0].mxu0
      %v991 = vadd.f32 0.0, %v990
      %v992 = vpop.f32.mrb[0].mxu0
      %993 = vmatprep.mubr.bf16.mxu0 0
      %994 = vmatmul.mubr.bf16.gmra.mrb[0].mxu0 %v802
      %v995 = vpop.f32.mrb[0].mxu0
      %v996 = vadd.f32 0.0, %v995
      %v997 = vpop.f32.mrb[0].mxu0
      %v998 = vpop.f32.mrb[0].mxu0
      %v999 = vadd.f32 0.0, %v998
      %v1000 = vpop.f32.mrb[0].mxu0
      %1001 = vmatprep.mubr.bf16.mxu0 0
      %1002 = vmatmul.mubr.bf16.gmra.mrb[0].mxu0 %v803
      %v1003 = vpop.f32.mrb[0].mxu0
      %v1004 = vadd.f32 0.0, %v1003
      %v1005 = vpop.f32.mrb[0].mxu0
      %v1006 = vpop.f32.mrb[0].mxu0
      %v1007 = vadd.f32 0.0, %v1006
      %v1008 = vpop.f32.mrb[0].mxu0
      %1009 = vmatprep.mubr.bf16.mxu0 0
      %1010 = vmatmul.mubr.bf16.gmra.mrb[0].mxu0 %v804
      %v1011 = vpop.f32.mrb[0].mxu0
      %v1012 = vadd.f32 0.0, %v1011
      %v1013 = vpop.f32.mrb[0].mxu0
      %v1014 = vpop.f32.mrb[0].mxu0
      %v1015 = vadd.f32 0.0, %v1014
      %v1016 = vpop.f32.mrb[0].mxu0
      %1017 = vmatprep.mubr.bf16.mxu0 0
      %1018 = vmatmul.mubr.bf16.gmra.mrb[0].mxu0 %v805
      %v1019 = vpop.f32.mrb[0].mxu0
      %v1020 = vadd.f32 0.0, %v1019
      %v1021 = vpop.f32.mrb[0].mxu0
      %v1022 = vpop.f32.mrb[0].mxu0
      %v1023 = vadd.f32 0.0, %v1022
      %v1024 = vpop.f32.mrb[0].mxu0
      %1025 = vmatprep.mubr.bf16.mxu0 0
      %1026 = vmatmul.mubr.bf16.gmra.mrb[0].mxu0 %v806
      %v1027 = vpop.f32.mrb[0].mxu0
      %v1028 = vadd.f32 0.0, %v1027
      %v1029 = vpop.f32.mrb[0].mxu0
      %v1030 = vpop.f32.mrb[0].mxu0
      %v1031 = vadd.f32 0.0, %v1030
      %v1032 = vpop.f32.mrb[0].mxu0
      %1033 = vmatprep.mubr.bf16.mxu0 0
      %1034 = vmatmul.mubr.bf16.gmra.mrb[0].mxu0 %v807
      %v1035 = vpop.f32.mrb[0].mxu0
      %v1036 = vadd.f32 0.0, %v1035
      %v1037 = vpop.f32.mrb[0].mxu0
      %v1038 = vpop.f32.mrb[0].mxu0
      %v1039 = vadd.f32 0.0, %v1038
      %v1040 = vpop.f32.mrb[0].mxu0
      %1041 = vmatprep.mubr.bf16.mxu0 0
      %1042 = vmatmul.mubr.bf16.gmra.mrb[0].mxu0 %v808
      %v1043 = vpop.f32.mrb[0].mxu0
      %v1044 = vadd.f32 0.0, %v1043
      %v1045 = vpop.f32.mrb[0].mxu0
      %v1046 = vpop.f32.mrb[0].mxu0
      %v1047 = vadd.f32 0.0, %v1046
      %v1048 = vpop.f32.mrb[0].mxu0
      %1049 = vdwg.mxu0
      %v1066 = vunpack.c.l.b16 %v809
      %v1067 = vunpack.c.l.b16 %v810
      %v1068 = vunpack.c.l.b16 %v811
      %v1069 = vunpack.c.l.b16 %v812
      %v1070 = vunpack.c.l.b16 %v813
      %v1071 = vunpack.c.l.b16 %v814
      %v1072 = vunpack.c.l.b16 %v815
      %v1073 = vunpack.c.l.b16 %v816
      %v1074 = vunpack.c.l.b16 %v817
      %v1075 = vunpack.c.l.b16 %v818
      %v1076 = vunpack.c.l.b16 %v819
      %v1077 = vunpack.c.l.b16 %v820
      %v1078 = vunpack.c.l.b16 %v821
      %v1079 = vunpack.c.l.b16 %v822
      %v1080 = vunpack.c.l.b16 %v823
      %v1081 = vunpack.c.l.b16 %v824
      %v1082 = vpack.c.b16 %v1067, %v1066
      %v1083 = vpack.c.b16 %v1069, %v1068
      %v1084 = vpack.c.b16 %v1071, %v1070
      %v1085 = vpack.c.b16 %v1073, %v1072
      %v1086 = vpack.c.b16 %v1075, %v1074
      %v1087 = vpack.c.b16 %v1077, %v1076
      %v1088 = vpack.c.b16 %v1079, %v1078
      %v1089 = vpack.c.b16 %v1081, %v1080
      %1098 = vmatprep.subr.bf16.mxu0 0
      %1099 = vmatpush1.bf16.msra.mxu0 %v1082
      %1100 = vmatprep.subr.bf16.mxu0 0
      %1101 = vmatpush1.bf16.msra.mxu0 %v1083
      %1102 = vmatprep.subr.bf16.mxu0 0
      %1103 = vmatpush1.bf16.msra.mxu0 %v1084
      %1104 = vmatprep.subr.bf16.mxu0 0
      %1105 = vmatpush1.bf16.msra.mxu0 %v1085
      %1106 = vmatprep.subr.bf16.mxu0 0
      %1107 = vmatpush1.bf16.msra.mxu0 %v1086
      %1108 = vmatprep.subr.bf16.mxu0 0
      %1109 = vmatpush1.bf16.msra.mxu0 %v1087
      %1110 = vmatprep.subr.bf16.mxu0 0
      %1111 = vmatpush1.bf16.msra.mxu0 %v1088
      %1112 = vmatprep.subr.bf16.mxu0 0
      %1113 = vmatpush1.bf16.msra.mxu0 %v1089
      %1114 = vmatprep.subr.bf16.mxu0 0
      %1115 = vmatpush1.bf16.msra.mxu0 0
      %1116 = vmatprep.subr.bf16.mxu0 0
      %1117 = vmatpush1.bf16.msra.mxu0 0
      %1118 = vmatprep.subr.bf16.mxu0 0
      %1119 = vmatpush1.bf16.msra.mxu0 0
      %1120 = vmatprep.subr.bf16.mxu0 0
      %1121 = vmatpush1.bf16.msra.mxu0 0
      %1122 = vmatprep.subr.bf16.mxu0 0
      %1123 = vmatpush1.bf16.msra.mxu0 0
      %1124 = vmatprep.subr.bf16.mxu0 0
      %1125 = vmatpush1.bf16.msra.mxu0 0
      %1126 = vmatprep.subr.bf16.mxu0 0
      %1127 = vmatpush1.bf16.msra.mxu0 0
      %1128 = vmatprep.subr.bf16.mxu0 0
      %1129 = vmatpush1.bf16.msra.mxu0 0
      %1130 = vmatprep.mubr.bf16.mxu0 0
      %1131 = vmatmul.mubr.bf16.gmra.mrb[0].mxu0 %v745
      %v1132 = vpop.f32.mrb[0].mxu0
      %v1133 = vadd.f32 %v924, %v1132
      %v1134 = vpop.f32.mrb[0].mxu0
      %v1135 = vpop.f32.mrb[0].mxu0
      %v1136 = vadd.f32 %v927, %v1135
      %v1137 = vpop.f32.mrb[0].mxu0
      %1138 = vmatprep.mubr.bf16.mxu0 0
      %1139 = vmatmul.mubr.bf16.gmra.mrb[0].mxu0 %v746
      %v1140 = vpop.f32.mrb[0].mxu0
      %v1141 = vadd.f32 %v932, %v1140
      %v1142 = vpop.f32.mrb[0].mxu0
      %v1143 = vpop.f32.mrb[0].mxu0
      %v1144 = vadd.f32 %v935, %v1143
      %v1145 = vpop.f32.mrb[0].mxu0
      %1146 = vmatprep.mubr.bf16.mxu0 0
      %1147 = vmatmul.mubr.bf16.gmra.mrb[0].mxu0 %v747
      %v1148 = vpop.f32.mrb[0].mxu0
      %v1149 = vadd.f32 %v940, %v1148
      %v1150 = vpop.f32.mrb[0].mxu0
      %v1151 = vpop.f32.mrb[0].mxu0
      %v1152 = vadd.f32 %v943, %v1151
      %v1153 = vpop.f32.mrb[0].mxu0
      %1154 = vmatprep.mubr.bf16.mxu0 0
      %1155 = vmatmul.mubr.bf16.gmra.mrb[0].mxu0 %v748
      %v1156 = vpop.f32.mrb[0].mxu0
      %v1157 = vadd.f32 %v948, %v1156
      %v1158 = vpop.f32.mrb[0].mxu0
      %v1159 = vpop.f32.mrb[0].mxu0
      %v1160 = vadd.f32 %v951, %v1159
      %v1161 = vpop.f32.mrb[0].mxu0
      %1162 = vmatprep.mubr.bf16.mxu0 0
      %1163 = vmatmul.mubr.bf16.gmra.mrb[0].mxu0 %v749
      %v1164 = vpop.f32.mrb[0].mxu0
      %v1165 = vadd.f32 %v956, %v1164
      %v1166 = vpop.f32.mrb[0].mxu0
      %v1167 = vpop.f32.mrb[0].mxu0
      %v1168 = vadd.f32 %v959, %v1167
      %v1169 = vpop.f32.mrb[0].mxu0
      %1170 = vmatprep.mubr.bf16.mxu0 0
      %1171 = vmatmul.mubr.bf16.gmra.mrb[0].mxu0 %v750
      %v1172 = vpop.f32.mrb[0].mxu0
      %v1173 = vadd.f32 %v964, %v1172
      %v1174 = vpop.f32.mrb[0].mxu0
      %v1175 = vpop.f32.mrb[0].mxu0
      %v1176 = vadd.f32 %v967, %v1175
      %v1177 = vpop.f32.mrb[0].mxu0
      %1178 = vmatprep.mubr.bf16.mxu0 0
      %1179 = vmatmul.mubr.bf16.gmra.mrb[0].mxu0 %v751
      %v1180 = vpop.f32.mrb[0].mxu0
      %v1181 = vadd.f32 %v972, %v1180
      %v1182 = vpop.f32.mrb[0].mxu0
      %v1183 = vpop.f32.mrb[0].mxu0
      %v1184 = vadd.f32 %v975, %v1183
      %v1185 = vpop.f32.mrb[0].mxu0
      %1186 = vmatprep.mubr.bf16.mxu0 0
      %1187 = vmatmul.mubr.bf16.gmra.mrb[0].mxu0 %v752
      %v1188 = vpop.f32.mrb[0].mxu0
      %v1189 = vadd.f32 %v980, %v1188
      %v1190 = vpop.f32.mrb[0].mxu0
      %v1191 = vpop.f32.mrb[0].mxu0
      %v1192 = vadd.f32 %v983, %v1191
      %v1193 = vpop.f32.mrb[0].mxu0
      %1194 = vmatprep.mubr.bf16.mxu0 0
      %1195 = vmatmul.mubr.bf16.gmra.mrb[0].mxu0 %v753
      %v1196 = vpop.f32.mrb[0].mxu0
      %v1197 = vadd.f32 %v988, %v1196
      %v1198 = vpop.f32.mrb[0].mxu0
      %v1199 = vpop.f32.mrb[0].mxu0
      %v1200 = vadd.f32 %v991, %v1199
      %v1201 = vpop.f32.mrb[0].mxu0
      %1202 = vmatprep.mubr.bf16.mxu0 0
      %1203 = vmatmul.mubr.bf16.gmra.mrb[0].mxu0 %v754
      %v1204 = vpop.f32.mrb[0].mxu0
      %v1205 = vadd.f32 %v996, %v1204
      %v1206 = vpop.f32.mrb[0].mxu0
      %v1207 = vpop.f32.mrb[0].mxu0
      %v1208 = vadd.f32 %v999, %v1207
      %v1209 = vpop.f32.mrb[0].mxu0
      %1210 = vmatprep.mubr.bf16.mxu0 0
      %1211 = vmatmul.mubr.bf16.gmra.mrb[0].mxu0 %v755
      %v1212 = vpop.f32.mrb[0].mxu0
      %v1213 = vadd.f32 %v1004, %v1212
      %v1214 = vpop.f32.mrb[0].mxu0
      %v1215 = vpop.f32.mrb[0].mxu0
      %v1216 = vadd.f32 %v1007, %v1215
      %v1217 = vpop.f32.mrb[0].mxu0
      %1218 = vmatprep.mubr.bf16.mxu0 0
      %1219 = vmatmul.mubr.bf16.gmra.mrb[0].mxu0 %v756
      %v1220 = vpop.f32.mrb[0].mxu0
      %v1221 = vadd.f32 %v1012, %v1220
      %v1222 = vpop.f32.mrb[0].mxu0
      %v1223 = vpop.f32.mrb[0].mxu0
      %v1224 = vadd.f32 %v1015, %v1223
      %v1225 = vpop.f32.mrb[0].mxu0
      %1226 = vmatprep.mubr.bf16.mxu0 0
      %1227 = vmatmul.mubr.bf16.gmra.mrb[0].mxu0 %v757
      %v1228 = vpop.f32.mrb[0].mxu0
      %v1229 = vadd.f32 %v1020, %v1228
      %v1230 = vpop.f32.mrb[0].mxu0
      %v1231 = vpop.f32.mrb[0].mxu0
      %v1232 = vadd.f32 %v1023, %v1231
      %v1233 = vpop.f32.mrb[0].mxu0
      %1234 = vmatprep.mubr.bf16.mxu0 0
      %1235 = vmatmul.mubr.bf16.gmra.mrb[0].mxu0 %v758
      %v1236 = vpop.f32.mrb[0].mxu0
      %v1237 = vadd.f32 %v1028, %v1236
      %v1238 = vpop.f32.mrb[0].mxu0
      %v1239 = vpop.f32.mrb[0].mxu0
      %v1240 = vadd.f32 %v1031, %v1239
      %v1241 = vpop.f32.mrb[0].mxu0
      %1242 = vmatprep.mubr.bf16.mxu0 0
      %1243 = vmatmul.mubr.bf16.gmra.mrb[0].mxu0 %v759
      %v1244 = vpop.f32.mrb[0].mxu0
      %v1245 = vadd.f32 %v1036, %v1244
      %v1246 = vpop.f32.mrb[0].mxu0
      %v1247 = vpop.f32.mrb[0].mxu0
      %v1248 = vadd.f32 %v1039, %v1247
      %v1249 = vpop.f32.mrb[0].mxu0
      %1250 = vmatprep.mubr.bf16.mxu0 0
      %1251 = vmatmul.mubr.bf16.gmra.mrb[0].mxu0 %v760
      %v1252 = vpop.f32.mrb[0].mxu0
      %v1253 = vadd.f32 %v1044, %v1252
      %v1254 = vpop.f32.mrb[0].mxu0
      %v1255 = vpop.f32.mrb[0].mxu0
      %v1256 = vadd.f32 %v1047, %v1255
      %v1257 = vpop.f32.mrb[0].mxu0
      %1258 = vdwg.mxu0
      %v1259 = vld [vmem:[%s6] sm:$0x1]
      %v1261 = vlaneseq
      %v1262 = vshrl.u32 %v1261, 7
      %v1263 = vsub.s32 0, %v1262
      %v1264 = vrot.slane %v1259, %v1263
      %v1266 = vadd.f32 %v1133, %v1264
      %v1267 = vadd.f32 %v1136, %v1264
      %v1268 = vadd.f32 %v1141, %v1264
      %v1269 = vadd.f32 %v1144, %v1264
      %v1270 = vadd.f32 %v1149, %v1264
      %v1271 = vadd.f32 %v1152, %v1264
      %v1272 = vadd.f32 %v1157, %v1264
      %v1273 = vadd.f32 %v1160, %v1264
      %v1274 = vadd.f32 %v1165, %v1264
      %v1275 = vadd.f32 %v1168, %v1264
      %v1276 = vadd.f32 %v1173, %v1264
      %v1277 = vadd.f32 %v1176, %v1264
      %v1278 = vadd.f32 %v1181, %v1264
      %v1279 = vadd.f32 %v1184, %v1264
      %v1280 = vadd.f32 %v1189, %v1264
      %v1281 = vadd.f32 %v1192, %v1264
      %v1282 = vadd.f32 %v1197, %v1264
      %v1283 = vadd.f32 %v1200, %v1264
      %v1284 = vadd.f32 %v1205, %v1264
      %v1285 = vadd.f32 %v1208, %v1264
      %v1286 = vadd.f32 %v1213, %v1264
      %v1287 = vadd.f32 %v1216, %v1264
      %v1288 = vadd.f32 %v1221, %v1264
      %v1289 = vadd.f32 %v1224, %v1264
      %v1290 = vadd.f32 %v1229, %v1264
      %v1291 = vadd.f32 %v1232, %v1264
      %v1292 = vadd.f32 %v1237, %v1264
      %v1293 = vadd.f32 %v1240, %v1264
      %v1294 = vadd.f32 %v1245, %v1264
      %v1295 = vadd.f32 %v1248, %v1264
      %v1296 = vadd.f32 %v1253, %v1264
      %v1297 = vadd.f32 %v1256, %v1264
      %v1298 = vld [vmem:[%s3] sm:$0xff]
      %v1299 = vld [vmem:[%s3 + $0x8] sm:$0xff]
      %v1300 = vld [vmem:[%s3 + $0x10] sm:$0xff]
      %v1301 = vld [vmem:[%s3 + $0x18] sm:$0xff]
      %v1302 = vld [vmem:[%s3 + $0x20] sm:$0xff]
      %v1303 = vld [vmem:[%s3 + $0x28] sm:$0xff]
      %v1304 = vld [vmem:[%s3 + $0x30] sm:$0xff]
      %v1305 = vld [vmem:[%s3 + $0x38] sm:$0xff]
      %v1306 = vld [vmem:[%s3 + $0x40] sm:$0xff]
      %v1307 = vld [vmem:[%s3 + $0x48] sm:$0xff]
      %v1308 = vld [vmem:[%s3 + $0x50] sm:$0xff]
      %v1309 = vld [vmem:[%s3 + $0x58] sm:$0xff]
      %v1310 = vld [vmem:[%s3 + $0x60] sm:$0xff]
      %v1311 = vld [vmem:[%s3 + $0x68] sm:$0xff]
      %v1312 = vld [vmem:[%s3 + $0x70] sm:$0xff]
      %v1313 = vld [vmem:[%s3 + $0x78] sm:$0xff]
      %v1314 = vld [vmem:[%s3 + $0x80] sm:$0xff]
      %v1315 = vld [vmem:[%s3 + $0x88] sm:$0xff]
      %v1316 = vld [vmem:[%s3 + $0x90] sm:$0xff]
      %v1317 = vld [vmem:[%s3 + $0x98] sm:$0xff]
      %v1318 = vld [vmem:[%s3 + $0xa0] sm:$0xff]
      %v1319 = vld [vmem:[%s3 + $0xa8] sm:$0xff]
      %v1320 = vld [vmem:[%s3 + $0xb0] sm:$0xff]
      %v1321 = vld [vmem:[%s3 + $0xb8] sm:$0xff]
      %v1322 = vld [vmem:[%s3 + $0xc0] sm:$0xff]
      %v1323 = vld [vmem:[%s3 + $0xc8] sm:$0xff]
      %v1324 = vld [vmem:[%s3 + $0xd0] sm:$0xff]
      %v1325 = vld [vmem:[%s3 + $0xd8] sm:$0xff]
      %v1326 = vld [vmem:[%s3 + $0xe0] sm:$0xff]
      %v1327 = vld [vmem:[%s3 + $0xe8] sm:$0xff]
      %v1328 = vld [vmem:[%s3 + $0xf0] sm:$0xff]
      %v1329 = vld [vmem:[%s3 + $0xf8] sm:$0xff]
      %v1330 = vld [vmem:[%s7] sm:$0x1]
      %1332 = vset.pattern.permute.xlu0 0
      %1333 = vperm.xlu0 %1332, %v1298
      %v1334 = vpop.permute.xlu0 %1333
      %1337 = vset.pattern.permute.xlu0 0
      %1338 = vperm.xlu0 %1337, %v1299
      %v1339 = vpop.permute.xlu0 %1338
      %1342 = vset.pattern.permute.xlu0 0
      %1343 = vperm.xlu0 %1342, %v1300
      %v1344 = vpop.permute.xlu0 %1343
      %1347 = vset.pattern.permute.xlu0 0
      %1348 = vperm.xlu0 %1347, %v1301
      %v1349 = vpop.permute.xlu0 %1348
      %1352 = vset.pattern.permute.xlu0 0
      %1353 = vperm.xlu0 %1352, %v1302
      %v1354 = vpop.permute.xlu0 %1353
      %1357 = vset.pattern.permute.xlu0 0
      %1358 = vperm.xlu0 %1357, %v1303
      %v1359 = vpop.permute.xlu0 %1358
      %1362 = vset.pattern.permute.xlu0 0
      %1363 = vperm.xlu0 %1362, %v1304
      %v1364 = vpop.permute.xlu0 %1363
      %1367 = vset.pattern.permute.xlu0 0
      %1368 = vperm.xlu0 %1367, %v1305
      %v1369 = vpop.permute.xlu0 %1368
      %1372 = vset.pattern.permute.xlu0 0
      %1373 = vperm.xlu0 %1372, %v1306
      %v1374 = vpop.permute.xlu0 %1373
      %1377 = vset.pattern.permute.xlu0 0
      %1378 = vperm.xlu0 %1377, %v1307
      %v1379 = vpop.permute.xlu0 %1378
      %1382 = vset.pattern.permute.xlu0 0
      %1383 = vperm.xlu0 %1382, %v1308
      %v1384 = vpop.permute.xlu0 %1383
      %1387 = vset.pattern.permute.xlu0 0
      %1388 = vperm.xlu0 %1387, %v1309
      %v1389 = vpop.permute.xlu0 %1388
      %1392 = vset.pattern.permute.xlu0 0
      %1393 = vperm.xlu0 %1392, %v1310
      %v1394 = vpop.permute.xlu0 %1393
      %1397 = vset.pattern.permute.xlu0 0
      %1398 = vperm.xlu0 %1397, %v1311
      %v1399 = vpop.permute.xlu0 %1398
      %1402 = vset.pattern.permute.xlu0 0
      %1403 = vperm.xlu0 %1402, %v1312
      %v1404 = vpop.permute.xlu0 %1403
      %1407 = vset.pattern.permute.xlu0 0
      %1408 = vperm.xlu0 %1407, %v1313
      %v1409 = vpop.permute.xlu0 %1408
      %1412 = vset.pattern.permute.xlu0 0
      %1413 = vperm.xlu0 %1412, %v1314
      %v1414 = vpop.permute.xlu0 %1413
      %1417 = vset.pattern.permute.xlu0 0
      %1418 = vperm.xlu0 %1417, %v1315
      %v1419 = vpop.permute.xlu0 %1418
      %1422 = vset.pattern.permute.xlu0 0
      %1423 = vperm.xlu0 %1422, %v1316
      %v1424 = vpop.permute.xlu0 %1423
      %1427 = vset.pattern.permute.xlu0 0
      %1428 = vperm.xlu0 %1427, %v1317
      %v1429 = vpop.permute.xlu0 %1428
      %1432 = vset.pattern.permute.xlu0 0
      %1433 = vperm.xlu0 %1432, %v1318
      %v1434 = vpop.permute.xlu0 %1433
      %1437 = vset.pattern.permute.xlu0 0
      %1438 = vperm.xlu0 %1437, %v1319
      %v1439 = vpop.permute.xlu0 %1438
      %1442 = vset.pattern.permute.xlu0 0
      %1443 = vperm.xlu0 %1442, %v1320
      %v1444 = vpop.permute.xlu0 %1443
      %1447 = vset.pattern.permute.xlu0 0
      %1448 = vperm.xlu0 %1447, %v1321
      %v1449 = vpop.permute.xlu0 %1448
      %1452 = vset.pattern.permute.xlu0 0
      %1453 = vperm.xlu0 %1452, %v1322
      %v1454 = vpop.permute.xlu0 %1453
      %1457 = vset.pattern.permute.xlu0 0
      %1458 = vperm.xlu0 %1457, %v1323
      %v1459 = vpop.permute.xlu0 %1458
      %1462 = vset.pattern.permute.xlu0 0
      %1463 = vperm.xlu0 %1462, %v1324
      %v1464 = vpop.permute.xlu0 %1463
      %1467 = vset.pattern.permute.xlu0 0
      %1468 = vperm.xlu0 %1467, %v1325
      %v1469 = vpop.permute.xlu0 %1468
      %1472 = vset.pattern.permute.xlu0 0
      %1473 = vperm.xlu0 %1472, %v1326
      %v1474 = vpop.permute.xlu0 %1473
      %1477 = vset.pattern.permute.xlu0 0
      %1478 = vperm.xlu0 %1477, %v1327
      %v1479 = vpop.permute.xlu0 %1478
      %1482 = vset.pattern.permute.xlu0 0
      %1483 = vperm.xlu0 %1482, %v1328
      %v1484 = vpop.permute.xlu0 %1483
      %1487 = vset.pattern.permute.xlu0 0
      %1488 = vperm.xlu0 %1487, %v1329
      %v1489 = vpop.permute.xlu0 %1488
      %v1492 = vlaneseq
      %v1493 = vshrl.u32 %v1492, 7
      %v1494 = vsub.s32 0, %v1493
      %v1495 = vrot.slane %v1330, %v1494
      %v1497 = vmul.f32 %v1334, %v1495
      %v1498 = vmul.f32 %v1339, %v1495
      %v1499 = vmul.f32 %v1344, %v1495
      %v1500 = vmul.f32 %v1349, %v1495
      %v1501 = vmul.f32 %v1354, %v1495
      %v1502 = vmul.f32 %v1359, %v1495
      %v1503 = vmul.f32 %v1364, %v1495
      %v1504 = vmul.f32 %v1369, %v1495
      %v1505 = vmul.f32 %v1374, %v1495
      %v1506 = vmul.f32 %v1379, %v1495
      %v1507 = vmul.f32 %v1384, %v1495
      %v1508 = vmul.f32 %v1389, %v1495
      %v1509 = vmul.f32 %v1394, %v1495
      %v1510 = vmul.f32 %v1399, %v1495
      %v1511 = vmul.f32 %v1404, %v1495
      %v1512 = vmul.f32 %v1409, %v1495
      %v1513 = vmul.f32 %v1414, %v1495
      %v1514 = vmul.f32 %v1419, %v1495
      %v1515 = vmul.f32 %v1424, %v1495
      %v1516 = vmul.f32 %v1429, %v1495
      %v1517 = vmul.f32 %v1434, %v1495
      %v1518 = vmul.f32 %v1439, %v1495
      %v1519 = vmul.f32 %v1444, %v1495
      %v1520 = vmul.f32 %v1449, %v1495
      %v1521 = vmul.f32 %v1454, %v1495
      %v1522 = vmul.f32 %v1459, %v1495
      %v1523 = vmul.f32 %v1464, %v1495
      %v1524 = vmul.f32 %v1469, %v1495
      %v1525 = vmul.f32 %v1474, %v1495
      %v1526 = vmul.f32 %v1479, %v1495
      %v1527 = vmul.f32 %v1484, %v1495
      %v1528 = vmul.f32 %v1489, %v1495
      %v1529 = vadd.f32 %v1266, %v1497
      %v1530 = vadd.f32 %v1267, %v1498
      %v1531 = vadd.f32 %v1268, %v1499
      %v1532 = vadd.f32 %v1269, %v1500
      %v1533 = vadd.f32 %v1270, %v1501
      %v1534 = vadd.f32 %v1271, %v1502
      %v1535 = vadd.f32 %v1272, %v1503
      %v1536 = vadd.f32 %v1273, %v1504
      %v1537 = vadd.f32 %v1274, %v1505
      %v1538 = vadd.f32 %v1275, %v1506
      %v1539 = vadd.f32 %v1276, %v1507
      %v1540 = vadd.f32 %v1277, %v1508
      %v1541 = vadd.f32 %v1278, %v1509
      %v1542 = vadd.f32 %v1279, %v1510
      %v1543 = vadd.f32 %v1280, %v1511
      %v1544 = vadd.f32 %v1281, %v1512
      %v1545 = vadd.f32 %v1282, %v1513
      %v1546 = vadd.f32 %v1283, %v1514
      %v1547 = vadd.f32 %v1284, %v1515
      %v1548 = vadd.f32 %v1285, %v1516
      %v1549 = vadd.f32 %v1286, %v1517
      %v1550 = vadd.f32 %v1287, %v1518
      %v1551 = vadd.f32 %v1288, %v1519
      %v1552 = vadd.f32 %v1289, %v1520
      %v1553 = vadd.f32 %v1290, %v1521
      %v1554 = vadd.f32 %v1291, %v1522
      %v1555 = vadd.f32 %v1292, %v1523
      %v1556 = vadd.f32 %v1293, %v1524
      %v1557 = vadd.f32 %v1294, %v1525
      %v1558 = vadd.f32 %v1295, %v1526
      %v1559 = vadd.f32 %v1296, %v1527
      %v1560 = vadd.f32 %v1297, %v1528
      %vm1561 = vcmp.ge.f32.partialorder %v1529, 0.0
      %vm1562 = vcmp.ge.f32.partialorder %v1530, 0.0
      %vm1563 = vcmp.ge.f32.partialorder %v1531, 0.0
      %vm1564 = vcmp.ge.f32.partialorder %v1532, 0.0
      %vm1565 = vcmp.ge.f32.partialorder %v1533, 0.0
      %vm1566 = vcmp.ge.f32.partialorder %v1534, 0.0
      %vm1567 = vcmp.ge.f32.partialorder %v1535, 0.0
      %vm1568 = vcmp.ge.f32.partialorder %v1536, 0.0
      %vm1569 = vcmp.ge.f32.partialorder %v1537, 0.0
      %vm1570 = vcmp.ge.f32.partialorder %v1538, 0.0
      %vm1571 = vcmp.ge.f32.partialorder %v1539, 0.0
      %vm1572 = vcmp.ge.f32.partialorder %v1540, 0.0
      %vm1573 = vcmp.ge.f32.partialorder %v1541, 0.0
      %vm1574 = vcmp.ge.f32.partialorder %v1542, 0.0
      %vm1575 = vcmp.ge.f32.partialorder %v1543, 0.0
      %vm1576 = vcmp.ge.f32.partialorder %v1544, 0.0
      %vm1577 = vcmp.ge.f32.partialorder %v1545, 0.0
      %vm1578 = vcmp.ge.f32.partialorder %v1546, 0.0
      %vm1579 = vcmp.ge.f32.partialorder %v1547, 0.0
      %vm1580 = vcmp.ge.f32.partialorder %v1548, 0.0
      %vm1581 = vcmp.ge.f32.partialorder %v1549, 0.0
      %vm1582 = vcmp.ge.f32.partialorder %v1550, 0.0
      %vm1583 = vcmp.ge.f32.partialorder %v1551, 0.0
      %vm1584 = vcmp.ge.f32.partialorder %v1552, 0.0
      %vm1585 = vcmp.ge.f32.partialorder %v1553, 0.0
      %vm1586 = vcmp.ge.f32.partialorder %v1554, 0.0
      %vm1587 = vcmp.ge.f32.partialorder %v1555, 0.0
      %vm1588 = vcmp.ge.f32.partialorder %v1556, 0.0
      %vm1589 = vcmp.ge.f32.partialorder %v1557, 0.0
      %vm1590 = vcmp.ge.f32.partialorder %v1558, 0.0
      %vm1591 = vcmp.ge.f32.partialorder %v1559, 0.0
      %vm1592 = vcmp.ge.f32.partialorder %v1560, 0.0
      %v1593 = vmul.f32 %v1529, 0.2
      %v1594 = vmul.f32 %v1530, 0.2
      %v1595 = vmul.f32 %v1531, 0.2
      %v1596 = vmul.f32 %v1532, 0.2
      %v1597 = vmul.f32 %v1533, 0.2
      %v1598 = vmul.f32 %v1534, 0.2
      %v1599 = vmul.f32 %v1535, 0.2
      %v1600 = vmul.f32 %v1536, 0.2
      %v1601 = vmul.f32 %v1537, 0.2
      %v1602 = vmul.f32 %v1538, 0.2
      %v1603 = vmul.f32 %v1539, 0.2
      %v1604 = vmul.f32 %v1540, 0.2
      %v1605 = vmul.f32 %v1541, 0.2
      %v1606 = vmul.f32 %v1542, 0.2
      %v1607 = vmul.f32 %v1543, 0.2
      %v1608 = vmul.f32 %v1544, 0.2
      %v1609 = vmul.f32 %v1545, 0.2
      %v1610 = vmul.f32 %v1546, 0.2
      %v1611 = vmul.f32 %v1547, 0.2
      %v1612 = vmul.f32 %v1548, 0.2
      %v1613 = vmul.f32 %v1549, 0.2
      %v1614 = vmul.f32 %v1550, 0.2
      %v1615 = vmul.f32 %v1551, 0.2
      %v1616 = vmul.f32 %v1552, 0.2
      %v1617 = vmul.f32 %v1553, 0.2
      %v1618 = vmul.f32 %v1554, 0.2
      %v1619 = vmul.f32 %v1555, 0.2
      %v1620 = vmul.f32 %v1556, 0.2
      %v1621 = vmul.f32 %v1557, 0.2
      %v1622 = vmul.f32 %v1558, 0.2
      %v1623 = vmul.f32 %v1559, 0.2
      %v1624 = vmul.f32 %v1560, 0.2
      %v1625 = vsel %vm1561, %v1529, %v1593
      %v1626 = vsel %vm1562, %v1530, %v1594
      %v1627 = vsel %vm1563, %v1531, %v1595
      %v1628 = vsel %vm1564, %v1532, %v1596
      %v1629 = vsel %vm1565, %v1533, %v1597
      %v1630 = vsel %vm1566, %v1534, %v1598
      %v1631 = vsel %vm1567, %v1535, %v1599
      %v1632 = vsel %vm1568, %v1536, %v1600
      %v1633 = vsel %vm1569, %v1537, %v1601
      %v1634 = vsel %vm1570, %v1538, %v1602
      %v1635 = vsel %vm1571, %v1539, %v1603
      %v1636 = vsel %vm1572, %v1540, %v1604
      %v1637 = vsel %vm1573, %v1541, %v1605
      %v1638 = vsel %vm1574, %v1542, %v1606
      %v1639 = vsel %vm1575, %v1543, %v1607
      %v1640 = vsel %vm1576, %v1544, %v1608
      %v1641 = vsel %vm1577, %v1545, %v1609
      %v1642 = vsel %vm1578, %v1546, %v1610
      %v1643 = vsel %vm1579, %v1547, %v1611
      %v1644 = vsel %vm1580, %v1548, %v1612
      %v1645 = vsel %vm1581, %v1549, %v1613
      %v1646 = vsel %vm1582, %v1550, %v1614
      %v1647 = vsel %vm1583, %v1551, %v1615
      %v1648 = vsel %vm1584, %v1552, %v1616
      %v1649 = vsel %vm1585, %v1553, %v1617
      %v1650 = vsel %vm1586, %v1554, %v1618
      %v1651 = vsel %vm1587, %v1555, %v1619
      %v1652 = vsel %vm1588, %v1556, %v1620
      %v1653 = vsel %vm1589, %v1557, %v1621
      %v1654 = vsel %vm1590, %v1558, %v1622
      %v1655 = vsel %vm1591, %v1559, %v1623
      %v1656 = vsel %vm1592, %v1560, %v1624
      %v1657 = vmul.f32 %v1625, %v1625
      %v1658 = vmul.f32 %v1626, %v1626
      %v1659 = vmul.f32 %v1627, %v1627
      %v1660 = vmul.f32 %v1628, %v1628
      %v1661 = vmul.f32 %v1629, %v1629
      %v1662 = vmul.f32 %v1630, %v1630
      %v1663 = vmul.f32 %v1631, %v1631
      %v1664 = vmul.f32 %v1632, %v1632
      %v1665 = vmul.f32 %v1633, %v1633
      %v1666 = vmul.f32 %v1634, %v1634
      %v1667 = vmul.f32 %v1635, %v1635
      %v1668 = vmul.f32 %v1636, %v1636
      %v1669 = vmul.f32 %v1637, %v1637
      %v1670 = vmul.f32 %v1638, %v1638
      %v1671 = vmul.f32 %v1639, %v1639
      %v1672 = vmul.f32 %v1640, %v1640
      %v1673 = vmul.f32 %v1641, %v1641
      %v1674 = vmul.f32 %v1642, %v1642
      %v1675 = vmul.f32 %v1643, %v1643
      %v1676 = vmul.f32 %v1644, %v1644
      %v1677 = vmul.f32 %v1645, %v1645
      %v1678 = vmul.f32 %v1646, %v1646
      %v1679 = vmul.f32 %v1647, %v1647
      %v1680 = vmul.f32 %v1648, %v1648
      %v1681 = vmul.f32 %v1649, %v1649
      %v1682 = vmul.f32 %v1650, %v1650
      %v1683 = vmul.f32 %v1651, %v1651
      %v1684 = vmul.f32 %v1652, %v1652
      %v1685 = vmul.f32 %v1653, %v1653
      %v1686 = vmul.f32 %v1654, %v1654
      %v1687 = vmul.f32 %v1655, %v1655
      %v1688 = vmul.f32 %v1656, %v1656
      %1689 = vadd.xlane.f32.xlu0 %v1657
      %v1690 = vpop.xlane.xlu0 %1689
      %1691 = vadd.xlane.f32.xlu0 %v1658
      %v1692 = vpop.xlane.xlu0 %1691
      %1693 = vadd.xlane.f32.xlu0 %v1659
      %v1694 = vpop.xlane.xlu0 %1693
      %1695 = vadd.xlane.f32.xlu0 %v1660
      %v1696 = vpop.xlane.xlu0 %1695
      %1697 = vadd.xlane.f32.xlu0 %v1661
      %v1698 = vpop.xlane.xlu0 %1697
      %1699 = vadd.xlane.f32.xlu0 %v1662
      %v1700 = vpop.xlane.xlu0 %1699
      %1701 = vadd.xlane.f32.xlu0 %v1663
      %v1702 = vpop.xlane.xlu0 %1701
      %1703 = vadd.xlane.f32.xlu0 %v1664
      %v1704 = vpop.xlane.xlu0 %1703
      %1705 = vadd.xlane.f32.xlu0 %v1665
      %v1706 = vpop.xlane.xlu0 %1705
      %1707 = vadd.xlane.f32.xlu0 %v1666
      %v1708 = vpop.xlane.xlu0 %1707
      %1709 = vadd.xlane.f32.xlu0 %v1667
      %v1710 = vpop.xlane.xlu0 %1709
      %1711 = vadd.xlane.f32.xlu0 %v1668
      %v1712 = vpop.xlane.xlu0 %1711
      %1713 = vadd.xlane.f32.xlu0 %v1669
      %v1714 = vpop.xlane.xlu0 %1713
      %1715 = vadd.xlane.f32.xlu0 %v1670
      %v1716 = vpop.xlane.xlu0 %1715
      %1717 = vadd.xlane.f32.xlu0 %v1671
      %v1718 = vpop.xlane.xlu0 %1717
      %1719 = vadd.xlane.f32.xlu0 %v1672
      %v1720 = vpop.xlane.xlu0 %1719
      %1721 = vadd.xlane.f32.xlu0 %v1673
      %v1722 = vpop.xlane.xlu0 %1721
      %1723 = vadd.xlane.f32.xlu0 %v1674
      %v1724 = vpop.xlane.xlu0 %1723
      %1725 = vadd.xlane.f32.xlu0 %v1675
      %v1726 = vpop.xlane.xlu0 %1725
      %1727 = vadd.xlane.f32.xlu0 %v1676
      %v1728 = vpop.xlane.xlu0 %1727
      %1729 = vadd.xlane.f32.xlu0 %v1677
      %v1730 = vpop.xlane.xlu0 %1729
      %1731 = vadd.xlane.f32.xlu0 %v1678
      %v1732 = vpop.xlane.xlu0 %1731
      %1733 = vadd.xlane.f32.xlu0 %v1679
      %v1734 = vpop.xlane.xlu0 %1733
      %1735 = vadd.xlane.f32.xlu0 %v1680
      %v1736 = vpop.xlane.xlu0 %1735
      %1737 = vadd.xlane.f32.xlu0 %v1681
      %v1738 = vpop.xlane.xlu0 %1737
      %1739 = vadd.xlane.f32.xlu0 %v1682
      %v1740 = vpop.xlane.xlu0 %1739
      %1741 = vadd.xlane.f32.xlu0 %v1683
      %v1742 = vpop.xlane.xlu0 %1741
      %1743 = vadd.xlane.f32.xlu0 %v1684
      %v1744 = vpop.xlane.xlu0 %1743
      %1745 = vadd.xlane.f32.xlu0 %v1685
      %v1746 = vpop.xlane.xlu0 %1745
      %1747 = vadd.xlane.f32.xlu0 %v1686
      %v1748 = vpop.xlane.xlu0 %1747
      %1749 = vadd.xlane.f32.xlu0 %v1687
      %v1750 = vpop.xlane.xlu0 %1749
      %1751 = vadd.xlane.f32.xlu0 %v1688
      %v1752 = vpop.xlane.xlu0 %1751
      %v1753 = vmax.f32 %v1690, 1e-24
      %v1754 = vmax.f32 %v1692, 1e-24
      %v1755 = vmax.f32 %v1694, 1e-24
      %v1756 = vmax.f32 %v1696, 1e-24
      %v1757 = vmax.f32 %v1698, 1e-24
      %v1758 = vmax.f32 %v1700, 1e-24
      %v1759 = vmax.f32 %v1702, 1e-24
      %v1760 = vmax.f32 %v1704, 1e-24
      %v1761 = vmax.f32 %v1706, 1e-24
      %v1762 = vmax.f32 %v1708, 1e-24
      %v1763 = vmax.f32 %v1710, 1e-24
      %v1764 = vmax.f32 %v1712, 1e-24
      %v1765 = vmax.f32 %v1714, 1e-24
      %v1766 = vmax.f32 %v1716, 1e-24
      %v1767 = vmax.f32 %v1718, 1e-24
      %v1768 = vmax.f32 %v1720, 1e-24
      %v1769 = vmax.f32 %v1722, 1e-24
      %v1770 = vmax.f32 %v1724, 1e-24
      %v1771 = vmax.f32 %v1726, 1e-24
      %v1772 = vmax.f32 %v1728, 1e-24
      %v1773 = vmax.f32 %v1730, 1e-24
      %v1774 = vmax.f32 %v1732, 1e-24
      %v1775 = vmax.f32 %v1734, 1e-24
      %v1776 = vmax.f32 %v1736, 1e-24
      %v1777 = vmax.f32 %v1738, 1e-24
      %v1778 = vmax.f32 %v1740, 1e-24
      %v1779 = vmax.f32 %v1742, 1e-24
      %v1780 = vmax.f32 %v1744, 1e-24
      %v1781 = vmax.f32 %v1746, 1e-24
      %v1782 = vmax.f32 %v1748, 1e-24
      %v1783 = vmax.f32 %v1750, 1e-24
      %v1784 = vmax.f32 %v1752, 1e-24
      %v1785 = vrsqrt.pop %v1753
      %v1786 = vrsqrt.pop %v1754
      %v1787 = vrsqrt.pop %v1755
      %v1788 = vrsqrt.pop %v1756
      %v1789 = vrsqrt.pop %v1757
      %v1790 = vrsqrt.pop %v1758
      %v1791 = vrsqrt.pop %v1759
      %v1792 = vrsqrt.pop %v1760
      %v1793 = vrsqrt.pop %v1761
      %v1794 = vrsqrt.pop %v1762
      %v1795 = vrsqrt.pop %v1763
      %v1796 = vrsqrt.pop %v1764
      %v1797 = vrsqrt.pop %v1765
      %v1798 = vrsqrt.pop %v1766
      %v1799 = vrsqrt.pop %v1767
      %v1800 = vrsqrt.pop %v1768
      %v1801 = vrsqrt.pop %v1769
      %v1802 = vrsqrt.pop %v1770
      %v1803 = vrsqrt.pop %v1771
      %v1804 = vrsqrt.pop %v1772
      %v1805 = vrsqrt.pop %v1773
      %v1806 = vrsqrt.pop %v1774
      %v1807 = vrsqrt.pop %v1775
      %v1808 = vrsqrt.pop %v1776
      %v1809 = vrsqrt.pop %v1777
      %v1810 = vrsqrt.pop %v1778
      %v1811 = vrsqrt.pop %v1779
      %v1812 = vrsqrt.pop %v1780
      %v1813 = vrsqrt.pop %v1781
      %v1814 = vrsqrt.pop %v1782
      %v1815 = vrsqrt.pop %v1783
      %v1816 = vrsqrt.pop %v1784
      %v1817 = vmul.f32 %v1625, %v1785
      %v1818 = vmul.f32 %v1626, %v1786
      %v1819 = vmul.f32 %v1627, %v1787
      %v1820 = vmul.f32 %v1628, %v1788
      %v1821 = vmul.f32 %v1629, %v1789
      %v1822 = vmul.f32 %v1630, %v1790
      %v1823 = vmul.f32 %v1631, %v1791
      %v1824 = vmul.f32 %v1632, %v1792
      %v1825 = vmul.f32 %v1633, %v1793
      %v1826 = vmul.f32 %v1634, %v1794
      %v1827 = vmul.f32 %v1635, %v1795
      %v1828 = vmul.f32 %v1636, %v1796
      %v1829 = vmul.f32 %v1637, %v1797
      %v1830 = vmul.f32 %v1638, %v1798
      %v1831 = vmul.f32 %v1639, %v1799
      %v1832 = vmul.f32 %v1640, %v1800
      %v1833 = vmul.f32 %v1641, %v1801
      %v1834 = vmul.f32 %v1642, %v1802
      %v1835 = vmul.f32 %v1643, %v1803
      %v1836 = vmul.f32 %v1644, %v1804
      %v1837 = vmul.f32 %v1645, %v1805
      %v1838 = vmul.f32 %v1646, %v1806
      %v1839 = vmul.f32 %v1647, %v1807
      %v1840 = vmul.f32 %v1648, %v1808
      %v1841 = vmul.f32 %v1649, %v1809
      %v1842 = vmul.f32 %v1650, %v1810
      %v1843 = vmul.f32 %v1651, %v1811
      %v1844 = vmul.f32 %v1652, %v1812
      %v1845 = vmul.f32 %v1653, %v1813
      %v1846 = vmul.f32 %v1654, %v1814
      %v1847 = vmul.f32 %v1655, %v1815
      %v1848 = vmul.f32 %v1656, %v1816
      %1849 = vst [vmem:[%s8] sm:$0xff] %v1817
      %1850 = vst [vmem:[%s8 + $0x8] sm:$0xff] %v1818
      %1851 = vst [vmem:[%s8 + $0x10] sm:$0xff] %v1819
      %1852 = vst [vmem:[%s8 + $0x18] sm:$0xff] %v1820
      %1853 = vst [vmem:[%s8 + $0x20] sm:$0xff] %v1821
      %1854 = vst [vmem:[%s8 + $0x28] sm:$0xff] %v1822
      %1855 = vst [vmem:[%s8 + $0x30] sm:$0xff] %v1823
      %1856 = vst [vmem:[%s8 + $0x38] sm:$0xff] %v1824
      %1857 = vst [vmem:[%s8 + $0x40] sm:$0xff] %v1825
      %1858 = vst [vmem:[%s8 + $0x48] sm:$0xff] %v1826
      %1859 = vst [vmem:[%s8 + $0x50] sm:$0xff] %v1827
      %1860 = vst [vmem:[%s8 + $0x58] sm:$0xff] %v1828
      %1861 = vst [vmem:[%s8 + $0x60] sm:$0xff] %v1829
      %1862 = vst [vmem:[%s8 + $0x68] sm:$0xff] %v1830
      %1863 = vst [vmem:[%s8 + $0x70] sm:$0xff] %v1831
      %1864 = vst [vmem:[%s8 + $0x78] sm:$0xff] %v1832
      %1865 = vst [vmem:[%s8 + $0x80] sm:$0xff] %v1833
      %1866 = vst [vmem:[%s8 + $0x88] sm:$0xff] %v1834
      %1867 = vst [vmem:[%s8 + $0x90] sm:$0xff] %v1835
      %1868 = vst [vmem:[%s8 + $0x98] sm:$0xff] %v1836
      %1869 = vst [vmem:[%s8 + $0xa0] sm:$0xff] %v1837
      %1870 = vst [vmem:[%s8 + $0xa8] sm:$0xff] %v1838
      %1871 = vst [vmem:[%s8 + $0xb0] sm:$0xff] %v1839
      %1872 = vst [vmem:[%s8 + $0xb8] sm:$0xff] %v1840
      %1873 = vst [vmem:[%s8 + $0xc0] sm:$0xff] %v1841
      %1874 = vst [vmem:[%s8 + $0xc8] sm:$0xff] %v1842
      %1875 = vst [vmem:[%s8 + $0xd0] sm:$0xff] %v1843
      %1876 = vst [vmem:[%s8 + $0xd8] sm:$0xff] %v1844
      %1877 = vst [vmem:[%s8 + $0xe0] sm:$0xff] %v1845
      %1878 = vst [vmem:[%s8 + $0xe8] sm:$0xff] %v1846
      %1879 = vst [vmem:[%s8 + $0xf0] sm:$0xff] %v1847
      %1880 = vst [vmem:[%s8 + $0xf8] sm:$0xff] %v1848
      %v1881 = vpack.c.bf16 %v1818, %v1817
      %v1882 = vpack.c.bf16 %v1820, %v1819
      %v1883 = vpack.c.bf16 %v1822, %v1821
      %v1884 = vpack.c.bf16 %v1824, %v1823
      %v1885 = vpack.c.bf16 %v1826, %v1825
      %v1886 = vpack.c.bf16 %v1828, %v1827
      %v1887 = vpack.c.bf16 %v1830, %v1829
      %v1888 = vpack.c.bf16 %v1832, %v1831
      %v1889 = vpack.c.bf16 %v1834, %v1833
      %v1890 = vpack.c.bf16 %v1836, %v1835
      %v1891 = vpack.c.bf16 %v1838, %v1837
      %v1892 = vpack.c.bf16 %v1840, %v1839
      %v1893 = vpack.c.bf16 %v1842, %v1841
      %v1894 = vpack.c.bf16 %v1844, %v1843
      %v1895 = vpack.c.bf16 %v1846, %v1845
      %v1896 = vpack.c.bf16 %v1848, %v1847
      %v1913 = vunpack.c.l.b16 %v1881
      %v1914 = vunpack.c.h.b16 %v1881
      %v1915 = vunpack.c.l.b16 %v1882
      %v1916 = vunpack.c.h.b16 %v1882
      %v1917 = vunpack.c.l.b16 %v1883
      %v1918 = vunpack.c.h.b16 %v1883
      %v1919 = vunpack.c.l.b16 %v1884
      %v1920 = vunpack.c.h.b16 %v1884
      %v1921 = vunpack.c.l.b16 %v1885
      %v1922 = vunpack.c.h.b16 %v1885
      %v1923 = vunpack.c.l.b16 %v1886
      %v1924 = vunpack.c.h.b16 %v1886
      %v1925 = vunpack.c.l.b16 %v1887
      %v1926 = vunpack.c.h.b16 %v1887
      %v1927 = vunpack.c.l.b16 %v1888
      %v1928 = vunpack.c.h.b16 %v1888
      %v1929 = vunpack.c.l.b16 %v1889
      %v1930 = vunpack.c.h.b16 %v1889
      %v1931 = vunpack.c.l.b16 %v1890
      %v1932 = vunpack.c.h.b16 %v1890
      %v1933 = vunpack.c.l.b16 %v1891
      %v1934 = vunpack.c.h.b16 %v1891
      %v1935 = vunpack.c.l.b16 %v1892
      %v1936 = vunpack.c.h.b16 %v1892
      %v1937 = vunpack.c.l.b16 %v1893
      %v1938 = vunpack.c.h.b16 %v1893
      %v1939 = vunpack.c.l.b16 %v1894
      %v1940 = vunpack.c.h.b16 %v1894
      %v1941 = vunpack.c.l.b16 %v1895
      %v1942 = vunpack.c.h.b16 %v1895
      %v1943 = vunpack.c.l.b16 %v1896
      %v1944 = vunpack.c.h.b16 %v1896
      %v1945 = vpack.c.b16 %v1913, %v1913
      %v1946 = vpack.c.b16 %v1914, %v1914
      %v1947 = vpack.c.b16 %v1915, %v1915
      %v1948 = vpack.c.b16 %v1916, %v1916
      %v1949 = vpack.c.b16 %v1917, %v1917
      %v1950 = vpack.c.b16 %v1918, %v1918
      %v1951 = vpack.c.b16 %v1919, %v1919
      %v1952 = vpack.c.b16 %v1920, %v1920
      %v1953 = vpack.c.b16 %v1921, %v1921
      %v1954 = vpack.c.b16 %v1922, %v1922
      %v1955 = vpack.c.b16 %v1923, %v1923
      %v1956 = vpack.c.b16 %v1924, %v1924
      %v1957 = vpack.c.b16 %v1925, %v1925
      %v1958 = vpack.c.b16 %v1926, %v1926
      %v1959 = vpack.c.b16 %v1927, %v1927
      %v1960 = vpack.c.b16 %v1928, %v1928
      %v1961 = vpack.c.b16 %v1929, %v1929
      %v1962 = vpack.c.b16 %v1930, %v1930
      %v1963 = vpack.c.b16 %v1931, %v1931
      %v1964 = vpack.c.b16 %v1932, %v1932
      %v1965 = vpack.c.b16 %v1933, %v1933
      %v1966 = vpack.c.b16 %v1934, %v1934
      %v1967 = vpack.c.b16 %v1935, %v1935
      %v1968 = vpack.c.b16 %v1936, %v1936
      %v1969 = vpack.c.b16 %v1937, %v1937
      %v1970 = vpack.c.b16 %v1938, %v1938
      %v1971 = vpack.c.b16 %v1939, %v1939
      %v1972 = vpack.c.b16 %v1940, %v1940
      %v1973 = vpack.c.b16 %v1941, %v1941
      %v1974 = vpack.c.b16 %v1942, %v1942
      %v1975 = vpack.c.b16 %v1943, %v1943
      %v1976 = vpack.c.b16 %v1944, %v1944
      %2009 = vst [vmem:[#allocation3] sm:$0xf] %v1945
      %2010 = vst [vmem:[#allocation3 + $0x4] sm:$0xf] %v1946
      %2011 = vst [vmem:[#allocation3 + $0x8] sm:$0xf] %v1947
      %2012 = vst [vmem:[#allocation3 + $0xc] sm:$0xf] %v1948
      %2013 = vst [vmem:[#allocation3 + $0x10] sm:$0xf] %v1949
      %2014 = vst [vmem:[#allocation3 + $0x14] sm:$0xf] %v1950
      %2015 = vst [vmem:[#allocation3 + $0x18] sm:$0xf] %v1951
      %2016 = vst [vmem:[#allocation3 + $0x1c] sm:$0xf] %v1952
      %2017 = vst [vmem:[#allocation3 + $0x20] sm:$0xf] %v1953
      %2018 = vst [vmem:[#allocation3 + $0x24] sm:$0xf] %v1954
      %2019 = vst [vmem:[#allocation3 + $0x28] sm:$0xf] %v1955
      %2020 = vst [vmem:[#allocation3 + $0x2c] sm:$0xf] %v1956
      %2021 = vst [vmem:[#allocation3 + $0x30] sm:$0xf] %v1957
      %2022 = vst [vmem:[#allocation3 + $0x34] sm:$0xf] %v1958
      %2023 = vst [vmem:[#allocation3 + $0x38] sm:$0xf] %v1959
      %2024 = vst [vmem:[#allocation3 + $0x3c] sm:$0xf] %v1960
      %2025 = vst [vmem:[#allocation3 + $0x40] sm:$0xf] %v1961
      %2026 = vst [vmem:[#allocation3 + $0x44] sm:$0xf] %v1962
      %2027 = vst [vmem:[#allocation3 + $0x48] sm:$0xf] %v1963
      %2028 = vst [vmem:[#allocation3 + $0x4c] sm:$0xf] %v1964
      %2029 = vst [vmem:[#allocation3 + $0x50] sm:$0xf] %v1965
      %2030 = vst [vmem:[#allocation3 + $0x54] sm:$0xf] %v1966
      %2031 = vst [vmem:[#allocation3 + $0x58] sm:$0xf] %v1967
      %2032 = vst [vmem:[#allocation3 + $0x5c] sm:$0xf] %v1968
      %2033 = vst [vmem:[#allocation3 + $0x60] sm:$0xf] %v1969
      %2034 = vst [vmem:[#allocation3 + $0x64] sm:$0xf] %v1970
      %2035 = vst [vmem:[#allocation3 + $0x68] sm:$0xf] %v1971
      %2036 = vst [vmem:[#allocation3 + $0x6c] sm:$0xf] %v1972
      %2037 = vst [vmem:[#allocation3 + $0x70] sm:$0xf] %v1973
      %2038 = vst [vmem:[#allocation3 + $0x74] sm:$0xf] %v1974
      %2039 = vst [vmem:[#allocation3 + $0x78] sm:$0xf] %v1975
      %2040 = vst [vmem:[#allocation3 + $0x7c] sm:$0xf] %v1976
    $region41: #{ngcf_forward.7} parent=1 // pred_fallthru
      _
    // Predicated region
    $region42: #{ngcf_forward.7} parent=1 // pred_check
      _
    $region43: #{ngcf_forward.7} parent=1 // pred_check_branch
      %2042 = sbr.rel (0) target = $region45
    $region44: #{ngcf_forward.7} parent=1 // pred_region
      _
    $region45: #{ngcf_forward.7} parent=1 // pred_fallthru
      _
    // Predicated region
    $region46: #{ngcf_forward.7} parent=1 // pred_check
      _
    $region47: #{ngcf_forward.7} parent=1 // pred_check_branch
      %2044 = sbr.rel (0) target = $region49
    $region48: #{ngcf_forward.7} parent=1 // pred_region
      %s2046 = ssub.s32 2048, 2048
      %2047 = vsyncadd [#allocation4], %s2046
      %s2048 = sshll.u32 [#allocation3], 4
      %s2049 = int_to_ptr.vmem [resolvable:$true] %s2048
      %2054 = dma.vmem_to_hbm [thread:$0]  %s2049, 2048, %s9, [#allocation4], 64, 64, 4
    $region49: #{ngcf_forward.7} parent=1 // pred_fallthru
      _
    // Predicated region
    $region50: #{ngcf_forward.7} parent=1 // pred_check
      _
    $region51: #{ngcf_forward.7} parent=1 // pred_check_branch
      %2056 = sbr.rel (0) target = $region53
    $region52: #{ngcf_forward.7} parent=1 // pred_region
      _
    $region53: #{ngcf_forward.7} parent=1 // pred_fallthru
      _
    // Predicated region
    $region54: #{ngcf_forward.7} parent=1 // pred_check
      _
    $region55: #{ngcf_forward.7} parent=1 // pred_check_branch
      %2058 = sbr.rel (0) target = $region57
    $region56: #{ngcf_forward.7} parent=1 // pred_region
      %2059 = dma.done [#allocation4], 2048
    $region57: #{ngcf_forward.7} parent=1 // pred_fallthru
      _
    %2060 = vsyncpa [#allocation4], 1

// kernel: ngcf_forward.5
$region0: #{ngcf_forward.5}
  #allocation0 [shape = 'u32[]', space=smem, size = 0x4, offset = 0x4, fixed_abs, tag = 'smem constant byte address 0x4 - core index']
  #allocation1 [shape = 'u32[144,128]{1,0:T(1,128)}', space=vmem, size = 0x12000, scoped, tag = 'internal scratch']
  #allocation2 [shape = 'f32[256,128]{1,0:T(8,128)}', space=vmem, size = 0x20000, scoped, tag = 'scratch operand']
  %s0 = inlined_call_operand.vmem [shape: bf16[256,256], index: 0, kind: input, shape index: {}]
  %s1 = inlined_call_operand.vmem [shape: bf16[256,128], index: 1, kind: input, shape index: {}]
  %s2 = inlined_call_operand.vmem [shape: f32[256,128], index: 2, kind: input, shape index: {}]
  %s3 = inlined_call_operand.vmem [shape: f32[256,1], index: 3, kind: input, shape index: {}]
  %s4 = inlined_call_operand.vmem [shape: bf16[128,128], index: 4, kind: input, shape index: {}]
  %s5 = inlined_call_operand.vmem [shape: bf16[128,128], index: 5, kind: input, shape index: {}]
  %s6 = inlined_call_operand.vmem [shape: f32[1,128], index: 6, kind: input, shape index: {}]
  %s7 = inlined_call_operand.vmem [shape: f32[1,128], index: 7, kind: input, shape index: {}]
  %s8 = inlined_call_operand.vmem [shape: f32[256,128], index: 8, kind: output, shape index: {0}]
  %s9 = inlined_call_operand.vmem [shape: bf16[256,128], index: 9, kind: output, shape index: {1}]
  %10 = xla_tuple %s8, %s9
  %s11 = sld [smem:[#allocation0]]
  $region58: #{ngcf_forward.5} parent=0
    _
  %s13 = ssub.s32 1, %s11
  %s14 = scalar_select 0, %s13, %s11
  // Predicated region
  $region2: #{ngcf_forward.5} parent=0 // pred_check
    _
  $region3: #{ngcf_forward.5} parent=0 // pred_check_branch
    %16 = sbr.rel (0) target = $region5
  $region4: #{ngcf_forward.5} parent=0 // pred_region
    _
  $region5: #{ngcf_forward.5} parent=0 // pred_fallthru
    _
  // Predicated region
  $region6: #{ngcf_forward.5} parent=0 // pred_check
    _
  $region7: #{ngcf_forward.5} parent=0 // pred_check_branch
    %18 = sbr.rel (0) target = $region9
  $region8: #{ngcf_forward.5} parent=0 // pred_region
    _
  $region9: #{ngcf_forward.5} parent=0 // pred_fallthru
    _
  // Predicated region
  $region10: #{ngcf_forward.5} parent=0 // pred_check
    _
  $region11: #{ngcf_forward.5} parent=0 // pred_check_branch
    %20 = sbr.rel (0) target = $region13
  $region12: #{ngcf_forward.5} parent=0 // pred_region
    _
  $region13: #{ngcf_forward.5} parent=0 // pred_fallthru
    _
  // Predicated region
  $region14: #{ngcf_forward.5} parent=0 // pred_check
    _
  $region15: #{ngcf_forward.5} parent=0 // pred_check_branch
    %22 = sbr.rel (0) target = $region17
  $region16: #{ngcf_forward.5} parent=0 // pred_region
    _
  $region17: #{ngcf_forward.5} parent=0 // pred_fallthru
    _
  // Predicated region
  $region18: #{ngcf_forward.5} parent=0 // pred_check
    _
  $region19: #{ngcf_forward.5} parent=0 // pred_check_branch
    %24 = sbr.rel (0) target = $region21
  $region20: #{ngcf_forward.5} parent=0 // pred_region
    _
  $region21: #{ngcf_forward.5} parent=0 // pred_fallthru
    _
  // Predicated region
  $region22: #{ngcf_forward.5} parent=0 // pred_check
    _
  $region23: #{ngcf_forward.5} parent=0 // pred_check_branch
    %26 = sbr.rel (0) target = $region25
  $region24: #{ngcf_forward.5} parent=0 // pred_region
    _
  $region25: #{ngcf_forward.5} parent=0 // pred_fallthru
    _
  // Predicated region
  $region26: #{ngcf_forward.5} parent=0 // pred_check
    _
  $region27: #{ngcf_forward.5} parent=0 // pred_check_branch
    %28 = sbr.rel (0) target = $region29
  $region28: #{ngcf_forward.5} parent=0 // pred_region
    _
  $region29: #{ngcf_forward.5} parent=0 // pred_fallthru
    _
  // Predicated region
  $region30: #{ngcf_forward.5} parent=0 // pred_check
    _
  $region31: #{ngcf_forward.5} parent=0 // pred_check_branch
    %30 = sbr.rel (0) target = $region33
  $region32: #{ngcf_forward.5} parent=0 // pred_region
    _
  $region33: #{ngcf_forward.5} parent=0 // pred_fallthru
    _
  %p32 = scmp.eq.s32.totalorder 0, 0
  // Predicated region
  $region34: #{ngcf_forward.5} parent=0 // pred_check
    %p33 = pneg %p32
  $region35: #{ngcf_forward.5} parent=0 // pred_check_branch
    %35 = sbr.rel (%p33) target = $region37
  $region36: #{ngcf_forward.5} parent=0 // pred_region
    %36 = vst [vmem:[#allocation2] sm:$0xff] 0.0
    %37 = vst [vmem:[#allocation2 + $0x8] sm:$0xff] 0.0
    %38 = vst [vmem:[#allocation2 + $0x10] sm:$0xff] 0.0
    %39 = vst [vmem:[#allocation2 + $0x18] sm:$0xff] 0.0
    %40 = vst [vmem:[#allocation2 + $0x20] sm:$0xff] 0.0
    %41 = vst [vmem:[#allocation2 + $0x28] sm:$0xff] 0.0
    %42 = vst [vmem:[#allocation2 + $0x30] sm:$0xff] 0.0
    %43 = vst [vmem:[#allocation2 + $0x38] sm:$0xff] 0.0
    %44 = vst [vmem:[#allocation2 + $0x40] sm:$0xff] 0.0
    %45 = vst [vmem:[#allocation2 + $0x48] sm:$0xff] 0.0
    %46 = vst [vmem:[#allocation2 + $0x50] sm:$0xff] 0.0
    %47 = vst [vmem:[#allocation2 + $0x58] sm:$0xff] 0.0
    %48 = vst [vmem:[#allocation2 + $0x60] sm:$0xff] 0.0
    %49 = vst [vmem:[#allocation2 + $0x68] sm:$0xff] 0.0
    %50 = vst [vmem:[#allocation2 + $0x70] sm:$0xff] 0.0
    %51 = vst [vmem:[#allocation2 + $0x78] sm:$0xff] 0.0
    %52 = vst [vmem:[#allocation2 + $0x80] sm:$0xff] 0.0
    %53 = vst [vmem:[#allocation2 + $0x88] sm:$0xff] 0.0
    %54 = vst [vmem:[#allocation2 + $0x90] sm:$0xff] 0.0
    %55 = vst [vmem:[#allocation2 + $0x98] sm:$0xff] 0.0
    %56 = vst [vmem:[#allocation2 + $0xa0] sm:$0xff] 0.0
    %57 = vst [vmem:[#allocation2 + $0xa8] sm:$0xff] 0.0
    %58 = vst [vmem:[#allocation2 + $0xb0] sm:$0xff] 0.0
    %59 = vst [vmem:[#allocation2 + $0xb8] sm:$0xff] 0.0
    %60 = vst [vmem:[#allocation2 + $0xc0] sm:$0xff] 0.0
    %61 = vst [vmem:[#allocation2 + $0xc8] sm:$0xff] 0.0
    %62 = vst [vmem:[#allocation2 + $0xd0] sm:$0xff] 0.0
    %63 = vst [vmem:[#allocation2 + $0xd8] sm:$0xff] 0.0
    %64 = vst [vmem:[#allocation2 + $0xe0] sm:$0xff] 0.0
    %65 = vst [vmem:[#allocation2 + $0xe8] sm:$0xff] 0.0
    %66 = vst [vmem:[#allocation2 + $0xf0] sm:$0xff] 0.0
    %67 = vst [vmem:[#allocation2 + $0xf8] sm:$0xff] 0.0
  $region37: #{ngcf_forward.5} parent=0 // pred_fallthru
    _
  %v68 = vld [vmem:[#allocation2] sm:$0xff]
  %v69 = vld [vmem:[#allocation2 + $0x8] sm:$0xff]
  %v70 = vld [vmem:[#allocation2 + $0x10] sm:$0xff]
  %v71 = vld [vmem:[#allocation2 + $0x18] sm:$0xff]
  %v72 = vld [vmem:[#allocation2 + $0x20] sm:$0xff]
  %v73 = vld [vmem:[#allocation2 + $0x28] sm:$0xff]
  %v74 = vld [vmem:[#allocation2 + $0x30] sm:$0xff]
  %v75 = vld [vmem:[#allocation2 + $0x38] sm:$0xff]
  %v76 = vld [vmem:[#allocation2 + $0x40] sm:$0xff]
  %v77 = vld [vmem:[#allocation2 + $0x48] sm:$0xff]
  %v78 = vld [vmem:[#allocation2 + $0x50] sm:$0xff]
  %v79 = vld [vmem:[#allocation2 + $0x58] sm:$0xff]
  %v80 = vld [vmem:[#allocation2 + $0x60] sm:$0xff]
  %v81 = vld [vmem:[#allocation2 + $0x68] sm:$0xff]
  %v82 = vld [vmem:[#allocation2 + $0x70] sm:$0xff]
  %v83 = vld [vmem:[#allocation2 + $0x78] sm:$0xff]
  %v84 = vld [vmem:[#allocation2 + $0x80] sm:$0xff]
  %v85 = vld [vmem:[#allocation2 + $0x88] sm:$0xff]
  %v86 = vld [vmem:[#allocation2 + $0x90] sm:$0xff]
  %v87 = vld [vmem:[#allocation2 + $0x98] sm:$0xff]
  %v88 = vld [vmem:[#allocation2 + $0xa0] sm:$0xff]
  %v89 = vld [vmem:[#allocation2 + $0xa8] sm:$0xff]
  %v90 = vld [vmem:[#allocation2 + $0xb0] sm:$0xff]
  %v91 = vld [vmem:[#allocation2 + $0xb8] sm:$0xff]
  %v92 = vld [vmem:[#allocation2 + $0xc0] sm:$0xff]
  %v93 = vld [vmem:[#allocation2 + $0xc8] sm:$0xff]
  %v94 = vld [vmem:[#allocation2 + $0xd0] sm:$0xff]
  %v95 = vld [vmem:[#allocation2 + $0xd8] sm:$0xff]
  %v96 = vld [vmem:[#allocation2 + $0xe0] sm:$0xff]
  %v97 = vld [vmem:[#allocation2 + $0xe8] sm:$0xff]
  %v98 = vld [vmem:[#allocation2 + $0xf0] sm:$0xff]
  %v99 = vld [vmem:[#allocation2 + $0xf8] sm:$0xff]
  %v100 = vld [vmem:[%s0] sm:$0xff]
  %v101 = vld [vmem:[%s0 + $0x8] sm:$0xff]
  %v102 = vld [vmem:[%s0 + $0x10] sm:$0xff]
  %v103 = vld [vmem:[%s0 + $0x18] sm:$0xff]
  %v104 = vld [vmem:[%s0 + $0x20] sm:$0xff]
  %v105 = vld [vmem:[%s0 + $0x28] sm:$0xff]
  %v106 = vld [vmem:[%s0 + $0x30] sm:$0xff]
  %v107 = vld [vmem:[%s0 + $0x38] sm:$0xff]
  %v108 = vld [vmem:[%s0 + $0x40] sm:$0xff]
  %v109 = vld [vmem:[%s0 + $0x48] sm:$0xff]
  %v110 = vld [vmem:[%s0 + $0x50] sm:$0xff]
  %v111 = vld [vmem:[%s0 + $0x58] sm:$0xff]
  %v112 = vld [vmem:[%s0 + $0x60] sm:$0xff]
  %v113 = vld [vmem:[%s0 + $0x68] sm:$0xff]
  %v114 = vld [vmem:[%s0 + $0x70] sm:$0xff]
  %v115 = vld [vmem:[%s0 + $0x78] sm:$0xff]
  %v116 = vld [vmem:[%s0 + $0x80] sm:$0xff]
  %v117 = vld [vmem:[%s0 + $0x88] sm:$0xff]
  %v118 = vld [vmem:[%s0 + $0x90] sm:$0xff]
  %v119 = vld [vmem:[%s0 + $0x98] sm:$0xff]
  %v120 = vld [vmem:[%s0 + $0xa0] sm:$0xff]
  %v121 = vld [vmem:[%s0 + $0xa8] sm:$0xff]
  %v122 = vld [vmem:[%s0 + $0xb0] sm:$0xff]
  %v123 = vld [vmem:[%s0 + $0xb8] sm:$0xff]
  %v124 = vld [vmem:[%s0 + $0xc0] sm:$0xff]
  %v125 = vld [vmem:[%s0 + $0xc8] sm:$0xff]
  %v126 = vld [vmem:[%s0 + $0xd0] sm:$0xff]
  %v127 = vld [vmem:[%s0 + $0xd8] sm:$0xff]
  %v128 = vld [vmem:[%s0 + $0xe0] sm:$0xff]
  %v129 = vld [vmem:[%s0 + $0xe8] sm:$0xff]
  %v130 = vld [vmem:[%s0 + $0xf0] sm:$0xff]
  %v131 = vld [vmem:[%s0 + $0xf8] sm:$0xff]
  %v132 = vld [vmem:[%s1] sm:$0xf]
  %v133 = vld [vmem:[%s1 + $0x4] sm:$0xf]
  %v134 = vld [vmem:[%s1 + $0x8] sm:$0xf]
  %v135 = vld [vmem:[%s1 + $0xc] sm:$0xf]
  %v136 = vld [vmem:[%s1 + $0x10] sm:$0xf]
  %v137 = vld [vmem:[%s1 + $0x14] sm:$0xf]
  %v138 = vld [vmem:[%s1 + $0x18] sm:$0xf]
  %v139 = vld [vmem:[%s1 + $0x1c] sm:$0xf]
  %v140 = vld [vmem:[%s1 + $0x20] sm:$0xf]
  %v141 = vld [vmem:[%s1 + $0x24] sm:$0xf]
  %v142 = vld [vmem:[%s1 + $0x28] sm:$0xf]
  %v143 = vld [vmem:[%s1 + $0x2c] sm:$0xf]
  %v144 = vld [vmem:[%s1 + $0x30] sm:$0xf]
  %v145 = vld [vmem:[%s1 + $0x34] sm:$0xf]
  %v146 = vld [vmem:[%s1 + $0x38] sm:$0xf]
  %v147 = vld [vmem:[%s1 + $0x3c] sm:$0xf]
  %v148 = vld [vmem:[%s1 + $0x40] sm:$0xf]
  %v149 = vld [vmem:[%s1 + $0x44] sm:$0xf]
  %v150 = vld [vmem:[%s1 + $0x48] sm:$0xf]
  %v151 = vld [vmem:[%s1 + $0x4c] sm:$0xf]
  %v152 = vld [vmem:[%s1 + $0x50] sm:$0xf]
  %v153 = vld [vmem:[%s1 + $0x54] sm:$0xf]
  %v154 = vld [vmem:[%s1 + $0x58] sm:$0xf]
  %v155 = vld [vmem:[%s1 + $0x5c] sm:$0xf]
  %v156 = vld [vmem:[%s1 + $0x60] sm:$0xf]
  %v157 = vld [vmem:[%s1 + $0x64] sm:$0xf]
  %v158 = vld [vmem:[%s1 + $0x68] sm:$0xf]
  %v159 = vld [vmem:[%s1 + $0x6c] sm:$0xf]
  %v160 = vld [vmem:[%s1 + $0x70] sm:$0xf]
  %v161 = vld [vmem:[%s1 + $0x74] sm:$0xf]
  %v162 = vld [vmem:[%s1 + $0x78] sm:$0xf]
  %v163 = vld [vmem:[%s1 + $0x7c] sm:$0xf]
  %v196 = vunpack.c.l.b16 %v100
  %v197 = vunpack.c.h.b16 %v100
  %v198 = vunpack.c.l.b16 %v101
  %v199 = vunpack.c.h.b16 %v101
  %v200 = vunpack.c.l.b16 %v102
  %v201 = vunpack.c.h.b16 %v102
  %v202 = vunpack.c.l.b16 %v103
  %v203 = vunpack.c.h.b16 %v103
  %v204 = vunpack.c.l.b16 %v104
  %v205 = vunpack.c.h.b16 %v104
  %v206 = vunpack.c.l.b16 %v105
  %v207 = vunpack.c.h.b16 %v105
  %v208 = vunpack.c.l.b16 %v106
  %v209 = vunpack.c.h.b16 %v106
  %v210 = vunpack.c.l.b16 %v107
  %v211 = vunpack.c.h.b16 %v107
  %v212 = vunpack.c.l.b16 %v108
  %v213 = vunpack.c.h.b16 %v108
  %v214 = vunpack.c.l.b16 %v109
  %v215 = vunpack.c.h.b16 %v109
  %v216 = vunpack.c.l.b16 %v110
  %v217 = vunpack.c.h.b16 %v110
  %v218 = vunpack.c.l.b16 %v111
  %v219 = vunpack.c.h.b16 %v111
  %v220 = vunpack.c.l.b16 %v112
  %v221 = vunpack.c.h.b16 %v112
  %v222 = vunpack.c.l.b16 %v113
  %v223 = vunpack.c.h.b16 %v113
  %v224 = vunpack.c.l.b16 %v114
  %v225 = vunpack.c.h.b16 %v114
  %v226 = vunpack.c.l.b16 %v115
  %v227 = vunpack.c.h.b16 %v115
  %v228 = vunpack.c.l.b16 %v116
  %v229 = vunpack.c.h.b16 %v116
  %v230 = vunpack.c.l.b16 %v117
  %v231 = vunpack.c.h.b16 %v117
  %v232 = vunpack.c.l.b16 %v118
  %v233 = vunpack.c.h.b16 %v118
  %v234 = vunpack.c.l.b16 %v119
  %v235 = vunpack.c.h.b16 %v119
  %v236 = vunpack.c.l.b16 %v120
  %v237 = vunpack.c.h.b16 %v120
  %v238 = vunpack.c.l.b16 %v121
  %v239 = vunpack.c.h.b16 %v121
  %v240 = vunpack.c.l.b16 %v122
  %v241 = vunpack.c.h.b16 %v122
  %v242 = vunpack.c.l.b16 %v123
  %v243 = vunpack.c.h.b16 %v123
  %v244 = vunpack.c.l.b16 %v124
  %v245 = vunpack.c.h.b16 %v124
  %v246 = vunpack.c.l.b16 %v125
  %v247 = vunpack.c.h.b16 %v125
  %v248 = vunpack.c.l.b16 %v126
  %v249 = vunpack.c.h.b16 %v126
  %v250 = vunpack.c.l.b16 %v127
  %v251 = vunpack.c.h.b16 %v127
  %v252 = vunpack.c.l.b16 %v128
  %v253 = vunpack.c.h.b16 %v128
  %v254 = vunpack.c.l.b16 %v129
  %v255 = vunpack.c.h.b16 %v129
  %v256 = vunpack.c.l.b16 %v130
  %v257 = vunpack.c.h.b16 %v130
  %v258 = vunpack.c.l.b16 %v131
  %v259 = vunpack.c.h.b16 %v131
  %v260 = vpack.c.b16 %v198, %v196
  %v261 = vpack.c.b16 %v199, %v197
  %v262 = vpack.c.b16 %v202, %v200
  %v263 = vpack.c.b16 %v203, %v201
  %v264 = vpack.c.b16 %v206, %v204
  %v265 = vpack.c.b16 %v207, %v205
  %v266 = vpack.c.b16 %v210, %v208
  %v267 = vpack.c.b16 %v211, %v209
  %v268 = vpack.c.b16 %v214, %v212
  %v269 = vpack.c.b16 %v215, %v213
  %v270 = vpack.c.b16 %v218, %v216
  %v271 = vpack.c.b16 %v219, %v217
  %v272 = vpack.c.b16 %v222, %v220
  %v273 = vpack.c.b16 %v223, %v221
  %v274 = vpack.c.b16 %v226, %v224
  %v275 = vpack.c.b16 %v227, %v225
  %v276 = vpack.c.b16 %v230, %v228
  %v277 = vpack.c.b16 %v231, %v229
  %v278 = vpack.c.b16 %v234, %v232
  %v279 = vpack.c.b16 %v235, %v233
  %v280 = vpack.c.b16 %v238, %v236
  %v281 = vpack.c.b16 %v239, %v237
  %v282 = vpack.c.b16 %v242, %v240
  %v283 = vpack.c.b16 %v243, %v241
  %v284 = vpack.c.b16 %v246, %v244
  %v285 = vpack.c.b16 %v247, %v245
  %v286 = vpack.c.b16 %v250, %v248
  %v287 = vpack.c.b16 %v251, %v249
  %v288 = vpack.c.b16 %v254, %v252
  %v289 = vpack.c.b16 %v255, %v253
  %v290 = vpack.c.b16 %v258, %v256
  %v291 = vpack.c.b16 %v259, %v257
  %v356 = vunpack.c.l.b16 %v132
  %v357 = vunpack.c.l.b16 %v133
  %v358 = vunpack.c.l.b16 %v134
  %v359 = vunpack.c.l.b16 %v135
  %v360 = vunpack.c.l.b16 %v136
  %v361 = vunpack.c.l.b16 %v137
  %v362 = vunpack.c.l.b16 %v138
  %v363 = vunpack.c.l.b16 %v139
  %v364 = vunpack.c.l.b16 %v140
  %v365 = vunpack.c.l.b16 %v141
  %v366 = vunpack.c.l.b16 %v142
  %v367 = vunpack.c.l.b16 %v143
  %v368 = vunpack.c.l.b16 %v144
  %v369 = vunpack.c.l.b16 %v145
  %v370 = vunpack.c.l.b16 %v146
  %v371 = vunpack.c.l.b16 %v147
  %v372 = vunpack.c.l.b16 %v148
  %v373 = vunpack.c.l.b16 %v149
  %v374 = vunpack.c.l.b16 %v150
  %v375 = vunpack.c.l.b16 %v151
  %v376 = vunpack.c.l.b16 %v152
  %v377 = vunpack.c.l.b16 %v153
  %v378 = vunpack.c.l.b16 %v154
  %v379 = vunpack.c.l.b16 %v155
  %v380 = vunpack.c.l.b16 %v156
  %v381 = vunpack.c.l.b16 %v157
  %v382 = vunpack.c.l.b16 %v158
  %v383 = vunpack.c.l.b16 %v159
  %v384 = vunpack.c.l.b16 %v160
  %v385 = vunpack.c.l.b16 %v161
  %v386 = vunpack.c.l.b16 %v162
  %v387 = vunpack.c.l.b16 %v163
  %v388 = vpack.c.b16 %v357, %v356
  %v389 = vpack.c.b16 %v359, %v358
  %v390 = vpack.c.b16 %v361, %v360
  %v391 = vpack.c.b16 %v363, %v362
  %v392 = vpack.c.b16 %v365, %v364
  %v393 = vpack.c.b16 %v367, %v366
  %v394 = vpack.c.b16 %v369, %v368
  %v395 = vpack.c.b16 %v371, %v370
  %v396 = vpack.c.b16 %v373, %v372
  %v397 = vpack.c.b16 %v375, %v374
  %v398 = vpack.c.b16 %v377, %v376
  %v399 = vpack.c.b16 %v379, %v378
  %v400 = vpack.c.b16 %v381, %v380
  %v401 = vpack.c.b16 %v383, %v382
  %v402 = vpack.c.b16 %v385, %v384
  %v403 = vpack.c.b16 %v387, %v386
  %420 = vmatprep.subr.bf16.mxu0 0
  %421 = vmatpush1.bf16.msra.mxu0 %v388
  %422 = vmatprep.subr.bf16.mxu0 0
  %423 = vmatpush1.bf16.msra.mxu0 %v389
  %424 = vmatprep.subr.bf16.mxu0 0
  %425 = vmatpush1.bf16.msra.mxu0 %v390
  %426 = vmatprep.subr.bf16.mxu0 0
  %427 = vmatpush1.bf16.msra.mxu0 %v391
  %428 = vmatprep.subr.bf16.mxu0 0
  %429 = vmatpush1.bf16.msra.mxu0 %v392
  %430 = vmatprep.subr.bf16.mxu0 0
  %431 = vmatpush1.bf16.msra.mxu0 %v393
  %432 = vmatprep.subr.bf16.mxu0 0
  %433 = vmatpush1.bf16.msra.mxu0 %v394
  %434 = vmatprep.subr.bf16.mxu0 0
  %435 = vmatpush1.bf16.msra.mxu0 %v395
  %436 = vmatprep.subr.bf16.mxu0 0
  %437 = vmatpush1.bf16.msra.mxu0 %v396
  %438 = vmatprep.subr.bf16.mxu0 0
  %439 = vmatpush1.bf16.msra.mxu0 %v397
  %440 = vmatprep.subr.bf16.mxu0 0
  %441 = vmatpush1.bf16.msra.mxu0 %v398
  %442 = vmatprep.subr.bf16.mxu0 0
  %443 = vmatpush1.bf16.msra.mxu0 %v399
  %444 = vmatprep.subr.bf16.mxu0 0
  %445 = vmatpush1.bf16.msra.mxu0 %v400
  %446 = vmatprep.subr.bf16.mxu0 0
  %447 = vmatpush1.bf16.msra.mxu0 %v401
  %448 = vmatprep.subr.bf16.mxu0 0
  %449 = vmatpush1.bf16.msra.mxu0 %v402
  %450 = vmatprep.subr.bf16.mxu0 0
  %451 = vmatpush1.bf16.msra.mxu0 %v403
  %452 = vmatprep.mubr.bf16.mxu0 %v261
  %453 = vmatmul.mubr.bf16.gmra.mrb[0].mxu0 %v260
  %v454 = vpop.f32.mrb[0].mxu0
  %v455 = vadd.f32 0.0, %v454
  %v456 = vpop.f32.mrb[0].mxu0
  %v457 = vpop.f32.mrb[0].mxu0
  %v458 = vadd.f32 0.0, %v457
  %v459 = vpop.f32.mrb[0].mxu0
  %460 = vmatprep.mubr.bf16.mxu0 %v263
  %461 = vmatmul.mubr.bf16.gmra.mrb[0].mxu0 %v262
  %v462 = vpop.f32.mrb[0].mxu0
  %v463 = vadd.f32 0.0, %v462
  %v464 = vpop.f32.mrb[0].mxu0
  %v465 = vpop.f32.mrb[0].mxu0
  %v466 = vadd.f32 0.0, %v465
  %v467 = vpop.f32.mrb[0].mxu0
  %468 = vmatprep.mubr.bf16.mxu0 %v265
  %469 = vmatmul.mubr.bf16.gmra.mrb[0].mxu0 %v264
  %v470 = vpop.f32.mrb[0].mxu0
  %v471 = vadd.f32 0.0, %v470
  %v472 = vpop.f32.mrb[0].mxu0
  %v473 = vpop.f32.mrb[0].mxu0
  %v474 = vadd.f32 0.0, %v473
  %v475 = vpop.f32.mrb[0].mxu0
  %476 = vmatprep.mubr.bf16.mxu0 %v267
  %477 = vmatmul.mubr.bf16.gmra.mrb[0].mxu0 %v266
  %v478 = vpop.f32.mrb[0].mxu0
  %v479 = vadd.f32 0.0, %v478
  %v480 = vpop.f32.mrb[0].mxu0
  %v481 = vpop.f32.mrb[0].mxu0
  %v482 = vadd.f32 0.0, %v481
  %v483 = vpop.f32.mrb[0].mxu0
  %484 = vmatprep.mubr.bf16.mxu0 %v269
  %485 = vmatmul.mubr.bf16.gmra.mrb[0].mxu0 %v268
  %v486 = vpop.f32.mrb[0].mxu0
  %v487 = vadd.f32 0.0, %v486
  %v488 = vpop.f32.mrb[0].mxu0
  %v489 = vpop.f32.mrb[0].mxu0
  %v490 = vadd.f32 0.0, %v489
  %v491 = vpop.f32.mrb[0].mxu0
  %492 = vmatprep.mubr.bf16.mxu0 %v271
  %493 = vmatmul.mubr.bf16.gmra.mrb[0].mxu0 %v270
  %v494 = vpop.f32.mrb[0].mxu0
  %v495 = vadd.f32 0.0, %v494
  %v496 = vpop.f32.mrb[0].mxu0
  %v497 = vpop.f32.mrb[0].mxu0
  %v498 = vadd.f32 0.0, %v497
  %v499 = vpop.f32.mrb[0].mxu0
  %500 = vmatprep.mubr.bf16.mxu0 %v273
  %501 = vmatmul.mubr.bf16.gmra.mrb[0].mxu0 %v272
  %v502 = vpop.f32.mrb[0].mxu0
  %v503 = vadd.f32 0.0, %v502
  %v504 = vpop.f32.mrb[0].mxu0
  %v505 = vpop.f32.mrb[0].mxu0
  %v506 = vadd.f32 0.0, %v505
  %v507 = vpop.f32.mrb[0].mxu0
  %508 = vmatprep.mubr.bf16.mxu0 %v275
  %509 = vmatmul.mubr.bf16.gmra.mrb[0].mxu0 %v274
  %v510 = vpop.f32.mrb[0].mxu0
  %v511 = vadd.f32 0.0, %v510
  %v512 = vpop.f32.mrb[0].mxu0
  %v513 = vpop.f32.mrb[0].mxu0
  %v514 = vadd.f32 0.0, %v513
  %v515 = vpop.f32.mrb[0].mxu0
  %516 = vmatprep.mubr.bf16.mxu0 %v277
  %517 = vmatmul.mubr.bf16.gmra.mrb[0].mxu0 %v276
  %v518 = vpop.f32.mrb[0].mxu0
  %v519 = vadd.f32 0.0, %v518
  %v520 = vpop.f32.mrb[0].mxu0
  %v521 = vpop.f32.mrb[0].mxu0
  %v522 = vadd.f32 0.0, %v521
  %v523 = vpop.f32.mrb[0].mxu0
  %524 = vmatprep.mubr.bf16.mxu0 %v279
  %525 = vmatmul.mubr.bf16.gmra.mrb[0].mxu0 %v278
  %v526 = vpop.f32.mrb[0].mxu0
  %v527 = vadd.f32 0.0, %v526
  %v528 = vpop.f32.mrb[0].mxu0
  %v529 = vpop.f32.mrb[0].mxu0
  %v530 = vadd.f32 0.0, %v529
  %v531 = vpop.f32.mrb[0].mxu0
  %532 = vmatprep.mubr.bf16.mxu0 %v281
  %533 = vmatmul.mubr.bf16.gmra.mrb[0].mxu0 %v280
  %v534 = vpop.f32.mrb[0].mxu0
  %v535 = vadd.f32 0.0, %v534
  %v536 = vpop.f32.mrb[0].mxu0
  %v537 = vpop.f32.mrb[0].mxu0
  %v538 = vadd.f32 0.0, %v537
  %v539 = vpop.f32.mrb[0].mxu0
  %540 = vmatprep.mubr.bf16.mxu0 %v283
  %541 = vmatmul.mubr.bf16.gmra.mrb[0].mxu0 %v282
  %v542 = vpop.f32.mrb[0].mxu0
  %v543 = vadd.f32 0.0, %v542
  %v544 = vpop.f32.mrb[0].mxu0
  %v545 = vpop.f32.mrb[0].mxu0
  %v546 = vadd.f32 0.0, %v545
  %v547 = vpop.f32.mrb[0].mxu0
  %548 = vmatprep.mubr.bf16.mxu0 %v285
  %549 = vmatmul.mubr.bf16.gmra.mrb[0].mxu0 %v284
  %v550 = vpop.f32.mrb[0].mxu0
  %v551 = vadd.f32 0.0, %v550
  %v552 = vpop.f32.mrb[0].mxu0
  %v553 = vpop.f32.mrb[0].mxu0
  %v554 = vadd.f32 0.0, %v553
  %v555 = vpop.f32.mrb[0].mxu0
  %556 = vmatprep.mubr.bf16.mxu0 %v287
  %557 = vmatmul.mubr.bf16.gmra.mrb[0].mxu0 %v286
  %v558 = vpop.f32.mrb[0].mxu0
  %v559 = vadd.f32 0.0, %v558
  %v560 = vpop.f32.mrb[0].mxu0
  %v561 = vpop.f32.mrb[0].mxu0
  %v562 = vadd.f32 0.0, %v561
  %v563 = vpop.f32.mrb[0].mxu0
  %564 = vmatprep.mubr.bf16.mxu0 %v289
  %565 = vmatmul.mubr.bf16.gmra.mrb[0].mxu0 %v288
  %v566 = vpop.f32.mrb[0].mxu0
  %v567 = vadd.f32 0.0, %v566
  %v568 = vpop.f32.mrb[0].mxu0
  %v569 = vpop.f32.mrb[0].mxu0
  %v570 = vadd.f32 0.0, %v569
  %v571 = vpop.f32.mrb[0].mxu0
  %572 = vmatprep.mubr.bf16.mxu0 %v291
  %573 = vmatmul.mubr.bf16.gmra.mrb[0].mxu0 %v290
  %v574 = vpop.f32.mrb[0].mxu0
  %v575 = vadd.f32 0.0, %v574
  %v576 = vpop.f32.mrb[0].mxu0
  %v577 = vpop.f32.mrb[0].mxu0
  %v578 = vadd.f32 0.0, %v577
  %v579 = vpop.f32.mrb[0].mxu0
  %580 = vdwg.mxu0
  %v581 = vadd.f32 %v68, %v455
  %v582 = vadd.f32 %v69, %v458
  %v583 = vadd.f32 %v70, %v463
  %v584 = vadd.f32 %v71, %v466
  %v585 = vadd.f32 %v72, %v471
  %v586 = vadd.f32 %v73, %v474
  %v587 = vadd.f32 %v74, %v479
  %v588 = vadd.f32 %v75, %v482
  %v589 = vadd.f32 %v76, %v487
  %v590 = vadd.f32 %v77, %v490
  %v591 = vadd.f32 %v78, %v495
  %v592 = vadd.f32 %v79, %v498
  %v593 = vadd.f32 %v80, %v503
  %v594 = vadd.f32 %v81, %v506
  %v595 = vadd.f32 %v82, %v511
  %v596 = vadd.f32 %v83, %v514
  %v597 = vadd.f32 %v84, %v519
  %v598 = vadd.f32 %v85, %v522
  %v599 = vadd.f32 %v86, %v527
  %v600 = vadd.f32 %v87, %v530
  %v601 = vadd.f32 %v88, %v535
  %v602 = vadd.f32 %v89, %v538
  %v603 = vadd.f32 %v90, %v543
  %v604 = vadd.f32 %v91, %v546
  %v605 = vadd.f32 %v92, %v551
  %v606 = vadd.f32 %v93, %v554
  %v607 = vadd.f32 %v94, %v559
  %v608 = vadd.f32 %v95, %v562
  %v609 = vadd.f32 %v96, %v567
  %v610 = vadd.f32 %v97, %v570
  %v611 = vadd.f32 %v98, %v575
  %v612 = vadd.f32 %v99, %v578
  %613 = vst [vmem:[#allocation2] sm:$0xff] %v581
  %614 = vst [vmem:[#allocation2 + $0x8] sm:$0xff] %v582
  %615 = vst [vmem:[#allocation2 + $0x10] sm:$0xff] %v583
  %616 = vst [vmem:[#allocation2 + $0x18] sm:$0xff] %v584
  %617 = vst [vmem:[#allocation2 + $0x20] sm:$0xff] %v585
  %618 = vst [vmem:[#allocation2 + $0x28] sm:$0xff] %v586
  %619 = vst [vmem:[#allocation2 + $0x30] sm:$0xff] %v587
  %620 = vst [vmem:[#allocation2 + $0x38] sm:$0xff] %v588
  %621 = vst [vmem:[#allocation2 + $0x40] sm:$0xff] %v589
  %622 = vst [vmem:[#allocation2 + $0x48] sm:$0xff] %v590
  %623 = vst [vmem:[#allocation2 + $0x50] sm:$0xff] %v591
  %624 = vst [vmem:[#allocation2 + $0x58] sm:$0xff] %v592
  %625 = vst [vmem:[#allocation2 + $0x60] sm:$0xff] %v593
  %626 = vst [vmem:[#allocation2 + $0x68] sm:$0xff] %v594
  %627 = vst [vmem:[#allocation2 + $0x70] sm:$0xff] %v595
  %628 = vst [vmem:[#allocation2 + $0x78] sm:$0xff] %v596
  %629 = vst [vmem:[#allocation2 + $0x80] sm:$0xff] %v597
  %630 = vst [vmem:[#allocation2 + $0x88] sm:$0xff] %v598
  %631 = vst [vmem:[#allocation2 + $0x90] sm:$0xff] %v599
  %632 = vst [vmem:[#allocation2 + $0x98] sm:$0xff] %v600
  %633 = vst [vmem:[#allocation2 + $0xa0] sm:$0xff] %v601
  %634 = vst [vmem:[#allocation2 + $0xa8] sm:$0xff] %v602
  %635 = vst [vmem:[#allocation2 + $0xb0] sm:$0xff] %v603
  %636 = vst [vmem:[#allocation2 + $0xb8] sm:$0xff] %v604
  %637 = vst [vmem:[#allocation2 + $0xc0] sm:$0xff] %v605
  %638 = vst [vmem:[#allocation2 + $0xc8] sm:$0xff] %v606
  %639 = vst [vmem:[#allocation2 + $0xd0] sm:$0xff] %v607
  %640 = vst [vmem:[#allocation2 + $0xd8] sm:$0xff] %v608
  %641 = vst [vmem:[#allocation2 + $0xe0] sm:$0xff] %v609
  %642 = vst [vmem:[#allocation2 + $0xe8] sm:$0xff] %v610
  %643 = vst [vmem:[#allocation2 + $0xf0] sm:$0xff] %v611
  %644 = vst [vmem:[#allocation2 + $0xf8] sm:$0xff] %v612
  // Predicated region
  $region38: #{ngcf_forward.5} parent=0 // pred_check
    %p645 = pneg %p32
  $region39: #{ngcf_forward.5} parent=0 // pred_check_branch
    %647 = sbr.rel (%p645) target = $region41
  $region40: #{ngcf_forward.5} parent=0 // pred_region
    %v648 = vld [vmem:[#allocation2] sm:$0xff]
    %v649 = vld [vmem:[#allocation2 + $0x8] sm:$0xff]
    %v650 = vld [vmem:[#allocation2 + $0x10] sm:$0xff]
    %v651 = vld [vmem:[#allocation2 + $0x18] sm:$0xff]
    %v652 = vld [vmem:[#allocation2 + $0x20] sm:$0xff]
    %v653 = vld [vmem:[#allocation2 + $0x28] sm:$0xff]
    %v654 = vld [vmem:[#allocation2 + $0x30] sm:$0xff]
    %v655 = vld [vmem:[#allocation2 + $0x38] sm:$0xff]
    %v656 = vld [vmem:[#allocation2 + $0x40] sm:$0xff]
    %v657 = vld [vmem:[#allocation2 + $0x48] sm:$0xff]
    %v658 = vld [vmem:[#allocation2 + $0x50] sm:$0xff]
    %v659 = vld [vmem:[#allocation2 + $0x58] sm:$0xff]
    %v660 = vld [vmem:[#allocation2 + $0x60] sm:$0xff]
    %v661 = vld [vmem:[#allocation2 + $0x68] sm:$0xff]
    %v662 = vld [vmem:[#allocation2 + $0x70] sm:$0xff]
    %v663 = vld [vmem:[#allocation2 + $0x78] sm:$0xff]
    %v664 = vld [vmem:[#allocation2 + $0x80] sm:$0xff]
    %v665 = vld [vmem:[#allocation2 + $0x88] sm:$0xff]
    %v666 = vld [vmem:[#allocation2 + $0x90] sm:$0xff]
    %v667 = vld [vmem:[#allocation2 + $0x98] sm:$0xff]
    %v668 = vld [vmem:[#allocation2 + $0xa0] sm:$0xff]
    %v669 = vld [vmem:[#allocation2 + $0xa8] sm:$0xff]
    %v670 = vld [vmem:[#allocation2 + $0xb0] sm:$0xff]
    %v671 = vld [vmem:[#allocation2 + $0xb8] sm:$0xff]
    %v672 = vld [vmem:[#allocation2 + $0xc0] sm:$0xff]
    %v673 = vld [vmem:[#allocation2 + $0xc8] sm:$0xff]
    %v674 = vld [vmem:[#allocation2 + $0xd0] sm:$0xff]
    %v675 = vld [vmem:[#allocation2 + $0xd8] sm:$0xff]
    %v676 = vld [vmem:[#allocation2 + $0xe0] sm:$0xff]
    %v677 = vld [vmem:[#allocation2 + $0xe8] sm:$0xff]
    %v678 = vld [vmem:[#allocation2 + $0xf0] sm:$0xff]
    %v679 = vld [vmem:[#allocation2 + $0xf8] sm:$0xff]
    %v680 = vld [vmem:[%s2] sm:$0xff]
    %v681 = vld [vmem:[%s2 + $0x8] sm:$0xff]
    %v682 = vld [vmem:[%s2 + $0x10] sm:$0xff]
    %v683 = vld [vmem:[%s2 + $0x18] sm:$0xff]
    %v684 = vld [vmem:[%s2 + $0x20] sm:$0xff]
    %v685 = vld [vmem:[%s2 + $0x28] sm:$0xff]
    %v686 = vld [vmem:[%s2 + $0x30] sm:$0xff]
    %v687 = vld [vmem:[%s2 + $0x38] sm:$0xff]
    %v688 = vld [vmem:[%s2 + $0x40] sm:$0xff]
    %v689 = vld [vmem:[%s2 + $0x48] sm:$0xff]
    %v690 = vld [vmem:[%s2 + $0x50] sm:$0xff]
    %v691 = vld [vmem:[%s2 + $0x58] sm:$0xff]
    %v692 = vld [vmem:[%s2 + $0x60] sm:$0xff]
    %v693 = vld [vmem:[%s2 + $0x68] sm:$0xff]
    %v694 = vld [vmem:[%s2 + $0x70] sm:$0xff]
    %v695 = vld [vmem:[%s2 + $0x78] sm:$0xff]
    %v696 = vld [vmem:[%s2 + $0x80] sm:$0xff]
    %v697 = vld [vmem:[%s2 + $0x88] sm:$0xff]
    %v698 = vld [vmem:[%s2 + $0x90] sm:$0xff]
    %v699 = vld [vmem:[%s2 + $0x98] sm:$0xff]
    %v700 = vld [vmem:[%s2 + $0xa0] sm:$0xff]
    %v701 = vld [vmem:[%s2 + $0xa8] sm:$0xff]
    %v702 = vld [vmem:[%s2 + $0xb0] sm:$0xff]
    %v703 = vld [vmem:[%s2 + $0xb8] sm:$0xff]
    %v704 = vld [vmem:[%s2 + $0xc0] sm:$0xff]
    %v705 = vld [vmem:[%s2 + $0xc8] sm:$0xff]
    %v706 = vld [vmem:[%s2 + $0xd0] sm:$0xff]
    %v707 = vld [vmem:[%s2 + $0xd8] sm:$0xff]
    %v708 = vld [vmem:[%s2 + $0xe0] sm:$0xff]
    %v709 = vld [vmem:[%s2 + $0xe8] sm:$0xff]
    %v710 = vld [vmem:[%s2 + $0xf0] sm:$0xff]
    %v711 = vld [vmem:[%s2 + $0xf8] sm:$0xff]
    %v712 = vadd.f32 %v648, %v680
    %v713 = vadd.f32 %v649, %v681
    %v714 = vadd.f32 %v650, %v682
    %v715 = vadd.f32 %v651, %v683
    %v716 = vadd.f32 %v652, %v684
    %v717 = vadd.f32 %v653, %v685
    %v718 = vadd.f32 %v654, %v686
    %v719 = vadd.f32 %v655, %v687
    %v720 = vadd.f32 %v656, %v688
    %v721 = vadd.f32 %v657, %v689
    %v722 = vadd.f32 %v658, %v690
    %v723 = vadd.f32 %v659, %v691
    %v724 = vadd.f32 %v660, %v692
    %v725 = vadd.f32 %v661, %v693
    %v726 = vadd.f32 %v662, %v694
    %v727 = vadd.f32 %v663, %v695
    %v728 = vadd.f32 %v664, %v696
    %v729 = vadd.f32 %v665, %v697
    %v730 = vadd.f32 %v666, %v698
    %v731 = vadd.f32 %v667, %v699
    %v732 = vadd.f32 %v668, %v700
    %v733 = vadd.f32 %v669, %v701
    %v734 = vadd.f32 %v670, %v702
    %v735 = vadd.f32 %v671, %v703
    %v736 = vadd.f32 %v672, %v704
    %v737 = vadd.f32 %v673, %v705
    %v738 = vadd.f32 %v674, %v706
    %v739 = vadd.f32 %v675, %v707
    %v740 = vadd.f32 %v676, %v708
    %v741 = vadd.f32 %v677, %v709
    %v742 = vadd.f32 %v678, %v710
    %v743 = vadd.f32 %v679, %v711
    %v744 = vpack.c.bf16 %v713, %v712
    %v745 = vpack.c.bf16 %v715, %v714
    %v746 = vpack.c.bf16 %v717, %v716
    %v747 = vpack.c.bf16 %v719, %v718
    %v748 = vpack.c.bf16 %v721, %v720
    %v749 = vpack.c.bf16 %v723, %v722
    %v750 = vpack.c.bf16 %v725, %v724
    %v751 = vpack.c.bf16 %v727, %v726
    %v752 = vpack.c.bf16 %v729, %v728
    %v753 = vpack.c.bf16 %v731, %v730
    %v754 = vpack.c.bf16 %v733, %v732
    %v755 = vpack.c.bf16 %v735, %v734
    %v756 = vpack.c.bf16 %v737, %v736
    %v757 = vpack.c.bf16 %v739, %v738
    %v758 = vpack.c.bf16 %v741, %v740
    %v759 = vpack.c.bf16 %v743, %v742
    %v760 = vmul.f32 %v648, %v680
    %v761 = vmul.f32 %v649, %v681
    %v762 = vmul.f32 %v650, %v682
    %v763 = vmul.f32 %v651, %v683
    %v764 = vmul.f32 %v652, %v684
    %v765 = vmul.f32 %v653, %v685
    %v766 = vmul.f32 %v654, %v686
    %v767 = vmul.f32 %v655, %v687
    %v768 = vmul.f32 %v656, %v688
    %v769 = vmul.f32 %v657, %v689
    %v770 = vmul.f32 %v658, %v690
    %v771 = vmul.f32 %v659, %v691
    %v772 = vmul.f32 %v660, %v692
    %v773 = vmul.f32 %v661, %v693
    %v774 = vmul.f32 %v662, %v694
    %v775 = vmul.f32 %v663, %v695
    %v776 = vmul.f32 %v664, %v696
    %v777 = vmul.f32 %v665, %v697
    %v778 = vmul.f32 %v666, %v698
    %v779 = vmul.f32 %v667, %v699
    %v780 = vmul.f32 %v668, %v700
    %v781 = vmul.f32 %v669, %v701
    %v782 = vmul.f32 %v670, %v702
    %v783 = vmul.f32 %v671, %v703
    %v784 = vmul.f32 %v672, %v704
    %v785 = vmul.f32 %v673, %v705
    %v786 = vmul.f32 %v674, %v706
    %v787 = vmul.f32 %v675, %v707
    %v788 = vmul.f32 %v676, %v708
    %v789 = vmul.f32 %v677, %v709
    %v790 = vmul.f32 %v678, %v710
    %v791 = vmul.f32 %v679, %v711
    %v792 = vpack.c.bf16 %v761, %v760
    %v793 = vpack.c.bf16 %v763, %v762
    %v794 = vpack.c.bf16 %v765, %v764
    %v795 = vpack.c.bf16 %v767, %v766
    %v796 = vpack.c.bf16 %v769, %v768
    %v797 = vpack.c.bf16 %v771, %v770
    %v798 = vpack.c.bf16 %v773, %v772
    %v799 = vpack.c.bf16 %v775, %v774
    %v800 = vpack.c.bf16 %v777, %v776
    %v801 = vpack.c.bf16 %v779, %v778
    %v802 = vpack.c.bf16 %v781, %v780
    %v803 = vpack.c.bf16 %v783, %v782
    %v804 = vpack.c.bf16 %v785, %v784
    %v805 = vpack.c.bf16 %v787, %v786
    %v806 = vpack.c.bf16 %v789, %v788
    %v807 = vpack.c.bf16 %v791, %v790
    %v808 = vld [vmem:[%s4] sm:$0xf]
    %v809 = vld [vmem:[%s4 + $0x4] sm:$0xf]
    %v810 = vld [vmem:[%s4 + $0x8] sm:$0xf]
    %v811 = vld [vmem:[%s4 + $0xc] sm:$0xf]
    %v812 = vld [vmem:[%s4 + $0x10] sm:$0xf]
    %v813 = vld [vmem:[%s4 + $0x14] sm:$0xf]
    %v814 = vld [vmem:[%s4 + $0x18] sm:$0xf]
    %v815 = vld [vmem:[%s4 + $0x1c] sm:$0xf]
    %v816 = vld [vmem:[%s4 + $0x20] sm:$0xf]
    %v817 = vld [vmem:[%s4 + $0x24] sm:$0xf]
    %v818 = vld [vmem:[%s4 + $0x28] sm:$0xf]
    %v819 = vld [vmem:[%s4 + $0x2c] sm:$0xf]
    %v820 = vld [vmem:[%s4 + $0x30] sm:$0xf]
    %v821 = vld [vmem:[%s4 + $0x34] sm:$0xf]
    %v822 = vld [vmem:[%s4 + $0x38] sm:$0xf]
    %v823 = vld [vmem:[%s4 + $0x3c] sm:$0xf]
    %v824 = vld [vmem:[%s5] sm:$0xf]
    %v825 = vld [vmem:[%s5 + $0x4] sm:$0xf]
    %v826 = vld [vmem:[%s5 + $0x8] sm:$0xf]
    %v827 = vld [vmem:[%s5 + $0xc] sm:$0xf]
    %v828 = vld [vmem:[%s5 + $0x10] sm:$0xf]
    %v829 = vld [vmem:[%s5 + $0x14] sm:$0xf]
    %v830 = vld [vmem:[%s5 + $0x18] sm:$0xf]
    %v831 = vld [vmem:[%s5 + $0x1c] sm:$0xf]
    %v832 = vld [vmem:[%s5 + $0x20] sm:$0xf]
    %v833 = vld [vmem:[%s5 + $0x24] sm:$0xf]
    %v834 = vld [vmem:[%s5 + $0x28] sm:$0xf]
    %v835 = vld [vmem:[%s5 + $0x2c] sm:$0xf]
    %v836 = vld [vmem:[%s5 + $0x30] sm:$0xf]
    %v837 = vld [vmem:[%s5 + $0x34] sm:$0xf]
    %v838 = vld [vmem:[%s5 + $0x38] sm:$0xf]
    %v839 = vld [vmem:[%s5 + $0x3c] sm:$0xf]
    %v856 = vunpack.c.l.b16 %v824
    %v857 = vunpack.c.l.b16 %v825
    %v858 = vunpack.c.l.b16 %v826
    %v859 = vunpack.c.l.b16 %v827
    %v860 = vunpack.c.l.b16 %v828
    %v861 = vunpack.c.l.b16 %v829
    %v862 = vunpack.c.l.b16 %v830
    %v863 = vunpack.c.l.b16 %v831
    %v864 = vunpack.c.l.b16 %v832
    %v865 = vunpack.c.l.b16 %v833
    %v866 = vunpack.c.l.b16 %v834
    %v867 = vunpack.c.l.b16 %v835
    %v868 = vunpack.c.l.b16 %v836
    %v869 = vunpack.c.l.b16 %v837
    %v870 = vunpack.c.l.b16 %v838
    %v871 = vunpack.c.l.b16 %v839
    %v872 = vpack.c.b16 %v857, %v856
    %v873 = vpack.c.b16 %v859, %v858
    %v874 = vpack.c.b16 %v861, %v860
    %v875 = vpack.c.b16 %v863, %v862
    %v876 = vpack.c.b16 %v865, %v864
    %v877 = vpack.c.b16 %v867, %v866
    %v878 = vpack.c.b16 %v869, %v868
    %v879 = vpack.c.b16 %v871, %v870
    %888 = vmatprep.subr.bf16.mxu0 0
    %889 = vmatpush1.bf16.msra.mxu0 %v872
    %890 = vmatprep.subr.bf16.mxu0 0
    %891 = vmatpush1.bf16.msra.mxu0 %v873
    %892 = vmatprep.subr.bf16.mxu0 0
    %893 = vmatpush1.bf16.msra.mxu0 %v874
    %894 = vmatprep.subr.bf16.mxu0 0
    %895 = vmatpush1.bf16.msra.mxu0 %v875
    %896 = vmatprep.subr.bf16.mxu0 0
    %897 = vmatpush1.bf16.msra.mxu0 %v876
    %898 = vmatprep.subr.bf16.mxu0 0
    %899 = vmatpush1.bf16.msra.mxu0 %v877
    %900 = vmatprep.subr.bf16.mxu0 0
    %901 = vmatpush1.bf16.msra.mxu0 %v878
    %902 = vmatprep.subr.bf16.mxu0 0
    %903 = vmatpush1.bf16.msra.mxu0 %v879
    %904 = vmatprep.subr.bf16.mxu0 0
    %905 = vmatpush1.bf16.msra.mxu0 0
    %906 = vmatprep.subr.bf16.mxu0 0
    %907 = vmatpush1.bf16.msra.mxu0 0
    %908 = vmatprep.subr.bf16.mxu0 0
    %909 = vmatpush1.bf16.msra.mxu0 0
    %910 = vmatprep.subr.bf16.mxu0 0
    %911 = vmatpush1.bf16.msra.mxu0 0
    %912 = vmatprep.subr.bf16.mxu0 0
    %913 = vmatpush1.bf16.msra.mxu0 0
    %914 = vmatprep.subr.bf16.mxu0 0
    %915 = vmatpush1.bf16.msra.mxu0 0
    %916 = vmatprep.subr.bf16.mxu0 0
    %917 = vmatpush1.bf16.msra.mxu0 0
    %918 = vmatprep.subr.bf16.mxu0 0
    %919 = vmatpush1.bf16.msra.mxu0 0
    %920 = vmatprep.mubr.bf16.mxu0 0
    %921 = vmatmul.mubr.bf16.gmra.mrb[0].mxu0 %v792
    %v922 = vpop.f32.mrb[0].mxu0
    %v923 = vadd.f32 0.0, %v922
    %v924 = vpop.f32.mrb[0].mxu0
    %v925 = vpop.f32.mrb[0].mxu0
    %v926 = vadd.f32 0.0, %v925
    %v927 = vpop.f32.mrb[0].mxu0
    %928 = vmatprep.mubr.bf16.mxu0 0
    %929 = vmatmul.mubr.bf16.gmra.mrb[0].mxu0 %v793
    %v930 = vpop.f32.mrb[0].mxu0
    %v931 = vadd.f32 0.0, %v930
    %v932 = vpop.f32.mrb[0].mxu0
    %v933 = vpop.f32.mrb[0].mxu0
    %v934 = vadd.f32 0.0, %v933
    %v935 = vpop.f32.mrb[0].mxu0
    %936 = vmatprep.mubr.bf16.mxu0 0
    %937 = vmatmul.mubr.bf16.gmra.mrb[0].mxu0 %v794
    %v938 = vpop.f32.mrb[0].mxu0
    %v939 = vadd.f32 0.0, %v938
    %v940 = vpop.f32.mrb[0].mxu0
    %v941 = vpop.f32.mrb[0].mxu0
    %v942 = vadd.f32 0.0, %v941
    %v943 = vpop.f32.mrb[0].mxu0
    %944 = vmatprep.mubr.bf16.mxu0 0
    %945 = vmatmul.mubr.bf16.gmra.mrb[0].mxu0 %v795
    %v946 = vpop.f32.mrb[0].mxu0
    %v947 = vadd.f32 0.0, %v946
    %v948 = vpop.f32.mrb[0].mxu0
    %v949 = vpop.f32.mrb[0].mxu0
    %v950 = vadd.f32 0.0, %v949
    %v951 = vpop.f32.mrb[0].mxu0
    %952 = vmatprep.mubr.bf16.mxu0 0
    %953 = vmatmul.mubr.bf16.gmra.mrb[0].mxu0 %v796
    %v954 = vpop.f32.mrb[0].mxu0
    %v955 = vadd.f32 0.0, %v954
    %v956 = vpop.f32.mrb[0].mxu0
    %v957 = vpop.f32.mrb[0].mxu0
    %v958 = vadd.f32 0.0, %v957
    %v959 = vpop.f32.mrb[0].mxu0
    %960 = vmatprep.mubr.bf16.mxu0 0
    %961 = vmatmul.mubr.bf16.gmra.mrb[0].mxu0 %v797
    %v962 = vpop.f32.mrb[0].mxu0
    %v963 = vadd.f32 0.0, %v962
    %v964 = vpop.f32.mrb[0].mxu0
    %v965 = vpop.f32.mrb[0].mxu0
    %v966 = vadd.f32 0.0, %v965
    %v967 = vpop.f32.mrb[0].mxu0
    %968 = vmatprep.mubr.bf16.mxu0 0
    %969 = vmatmul.mubr.bf16.gmra.mrb[0].mxu0 %v798
    %v970 = vpop.f32.mrb[0].mxu0
    %v971 = vadd.f32 0.0, %v970
    %v972 = vpop.f32.mrb[0].mxu0
    %v973 = vpop.f32.mrb[0].mxu0
    %v974 = vadd.f32 0.0, %v973
    %v975 = vpop.f32.mrb[0].mxu0
    %976 = vmatprep.mubr.bf16.mxu0 0
    %977 = vmatmul.mubr.bf16.gmra.mrb[0].mxu0 %v799
    %v978 = vpop.f32.mrb[0].mxu0
    %v979 = vadd.f32 0.0, %v978
    %v980 = vpop.f32.mrb[0].mxu0
    %v981 = vpop.f32.mrb[0].mxu0
    %v982 = vadd.f32 0.0, %v981
    %v983 = vpop.f32.mrb[0].mxu0
    %984 = vmatprep.mubr.bf16.mxu0 0
    %985 = vmatmul.mubr.bf16.gmra.mrb[0].mxu0 %v800
    %v986 = vpop.f32.mrb[0].mxu0
    %v987 = vadd.f32 0.0, %v986
    %v988 = vpop.f32.mrb[0].mxu0
    %v989 = vpop.f32.mrb[0].mxu0
    %v990 = vadd.f32 0.0, %v989
    %v991 = vpop.f32.mrb[0].mxu0
    %992 = vmatprep.mubr.bf16.mxu0 0
    %993 = vmatmul.mubr.bf16.gmra.mrb[0].mxu0 %v801
    %v994 = vpop.f32.mrb[0].mxu0
    %v995 = vadd.f32 0.0, %v994
    %v996 = vpop.f32.mrb[0].mxu0
    %v997 = vpop.f32.mrb[0].mxu0
    %v998 = vadd.f32 0.0, %v997
    %v999 = vpop.f32.mrb[0].mxu0
    %1000 = vmatprep.mubr.bf16.mxu0 0
    %1001 = vmatmul.mubr.bf16.gmra.mrb[0].mxu0 %v802
    %v1002 = vpop.f32.mrb[0].mxu0
    %v1003 = vadd.f32 0.0, %v1002
    %v1004 = vpop.f32.mrb[0].mxu0
    %v1005 = vpop.f32.mrb[0].mxu0
    %v1006 = vadd.f32 0.0, %v1005
    %v1007 = vpop.f32.mrb[0].mxu0
    %1008 = vmatprep.mubr.bf16.mxu0 0
    %1009 = vmatmul.mubr.bf16.gmra.mrb[0].mxu0 %v803
    %v1010 = vpop.f32.mrb[0].mxu0
    %v1011 = vadd.f32 0.0, %v1010
    %v1012 = vpop.f32.mrb[0].mxu0
    %v1013 = vpop.f32.mrb[0].mxu0
    %v1014 = vadd.f32 0.0, %v1013
    %v1015 = vpop.f32.mrb[0].mxu0
    %1016 = vmatprep.mubr.bf16.mxu0 0
    %1017 = vmatmul.mubr.bf16.gmra.mrb[0].mxu0 %v804
    %v1018 = vpop.f32.mrb[0].mxu0
    %v1019 = vadd.f32 0.0, %v1018
    %v1020 = vpop.f32.mrb[0].mxu0
    %v1021 = vpop.f32.mrb[0].mxu0
    %v1022 = vadd.f32 0.0, %v1021
    %v1023 = vpop.f32.mrb[0].mxu0
    %1024 = vmatprep.mubr.bf16.mxu0 0
    %1025 = vmatmul.mubr.bf16.gmra.mrb[0].mxu0 %v805
    %v1026 = vpop.f32.mrb[0].mxu0
    %v1027 = vadd.f32 0.0, %v1026
    %v1028 = vpop.f32.mrb[0].mxu0
    %v1029 = vpop.f32.mrb[0].mxu0
    %v1030 = vadd.f32 0.0, %v1029
    %v1031 = vpop.f32.mrb[0].mxu0
    %1032 = vmatprep.mubr.bf16.mxu0 0
    %1033 = vmatmul.mubr.bf16.gmra.mrb[0].mxu0 %v806
    %v1034 = vpop.f32.mrb[0].mxu0
    %v1035 = vadd.f32 0.0, %v1034
    %v1036 = vpop.f32.mrb[0].mxu0
    %v1037 = vpop.f32.mrb[0].mxu0
    %v1038 = vadd.f32 0.0, %v1037
    %v1039 = vpop.f32.mrb[0].mxu0
    %1040 = vmatprep.mubr.bf16.mxu0 0
    %1041 = vmatmul.mubr.bf16.gmra.mrb[0].mxu0 %v807
    %v1042 = vpop.f32.mrb[0].mxu0
    %v1043 = vadd.f32 0.0, %v1042
    %v1044 = vpop.f32.mrb[0].mxu0
    %v1045 = vpop.f32.mrb[0].mxu0
    %v1046 = vadd.f32 0.0, %v1045
    %v1047 = vpop.f32.mrb[0].mxu0
    %1048 = vdwg.mxu0
    %v1065 = vunpack.c.l.b16 %v808
    %v1066 = vunpack.c.l.b16 %v809
    %v1067 = vunpack.c.l.b16 %v810
    %v1068 = vunpack.c.l.b16 %v811
    %v1069 = vunpack.c.l.b16 %v812
    %v1070 = vunpack.c.l.b16 %v813
    %v1071 = vunpack.c.l.b16 %v814
    %v1072 = vunpack.c.l.b16 %v815
    %v1073 = vunpack.c.l.b16 %v816
    %v1074 = vunpack.c.l.b16 %v817
    %v1075 = vunpack.c.l.b16 %v818
    %v1076 = vunpack.c.l.b16 %v819
    %v1077 = vunpack.c.l.b16 %v820
    %v1078 = vunpack.c.l.b16 %v821
    %v1079 = vunpack.c.l.b16 %v822
    %v1080 = vunpack.c.l.b16 %v823
    %v1081 = vpack.c.b16 %v1066, %v1065
    %v1082 = vpack.c.b16 %v1068, %v1067
    %v1083 = vpack.c.b16 %v1070, %v1069
    %v1084 = vpack.c.b16 %v1072, %v1071
    %v1085 = vpack.c.b16 %v1074, %v1073
    %v1086 = vpack.c.b16 %v1076, %v1075
    %v1087 = vpack.c.b16 %v1078, %v1077
    %v1088 = vpack.c.b16 %v1080, %v1079
    %1097 = vmatprep.subr.bf16.mxu0 0
    %1098 = vmatpush1.bf16.msra.mxu0 %v1081
    %1099 = vmatprep.subr.bf16.mxu0 0
    %1100 = vmatpush1.bf16.msra.mxu0 %v1082
    %1101 = vmatprep.subr.bf16.mxu0 0
    %1102 = vmatpush1.bf16.msra.mxu0 %v1083
    %1103 = vmatprep.subr.bf16.mxu0 0
    %1104 = vmatpush1.bf16.msra.mxu0 %v1084
    %1105 = vmatprep.subr.bf16.mxu0 0
    %1106 = vmatpush1.bf16.msra.mxu0 %v1085
    %1107 = vmatprep.subr.bf16.mxu0 0
    %1108 = vmatpush1.bf16.msra.mxu0 %v1086
    %1109 = vmatprep.subr.bf16.mxu0 0
    %1110 = vmatpush1.bf16.msra.mxu0 %v1087
    %1111 = vmatprep.subr.bf16.mxu0 0
    %1112 = vmatpush1.bf16.msra.mxu0 %v1088
    %1113 = vmatprep.subr.bf16.mxu0 0
    %1114 = vmatpush1.bf16.msra.mxu0 0
    %1115 = vmatprep.subr.bf16.mxu0 0
    %1116 = vmatpush1.bf16.msra.mxu0 0
    %1117 = vmatprep.subr.bf16.mxu0 0
    %1118 = vmatpush1.bf16.msra.mxu0 0
    %1119 = vmatprep.subr.bf16.mxu0 0
    %1120 = vmatpush1.bf16.msra.mxu0 0
    %1121 = vmatprep.subr.bf16.mxu0 0
    %1122 = vmatpush1.bf16.msra.mxu0 0
    %1123 = vmatprep.subr.bf16.mxu0 0
    %1124 = vmatpush1.bf16.msra.mxu0 0
    %1125 = vmatprep.subr.bf16.mxu0 0
    %1126 = vmatpush1.bf16.msra.mxu0 0
    %1127 = vmatprep.subr.bf16.mxu0 0
    %1128 = vmatpush1.bf16.msra.mxu0 0
    %1129 = vmatprep.mubr.bf16.mxu0 0
    %1130 = vmatmul.mubr.bf16.gmra.mrb[0].mxu0 %v744
    %v1131 = vpop.f32.mrb[0].mxu0
    %v1132 = vadd.f32 %v923, %v1131
    %v1133 = vpop.f32.mrb[0].mxu0
    %v1134 = vpop.f32.mrb[0].mxu0
    %v1135 = vadd.f32 %v926, %v1134
    %v1136 = vpop.f32.mrb[0].mxu0
    %1137 = vmatprep.mubr.bf16.mxu0 0
    %1138 = vmatmul.mubr.bf16.gmra.mrb[0].mxu0 %v745
    %v1139 = vpop.f32.mrb[0].mxu0
    %v1140 = vadd.f32 %v931, %v1139
    %v1141 = vpop.f32.mrb[0].mxu0
    %v1142 = vpop.f32.mrb[0].mxu0
    %v1143 = vadd.f32 %v934, %v1142
    %v1144 = vpop.f32.mrb[0].mxu0
    %1145 = vmatprep.mubr.bf16.mxu0 0
    %1146 = vmatmul.mubr.bf16.gmra.mrb[0].mxu0 %v746
    %v1147 = vpop.f32.mrb[0].mxu0
    %v1148 = vadd.f32 %v939, %v1147
    %v1149 = vpop.f32.mrb[0].mxu0
    %v1150 = vpop.f32.mrb[0].mxu0
    %v1151 = vadd.f32 %v942, %v1150
    %v1152 = vpop.f32.mrb[0].mxu0
    %1153 = vmatprep.mubr.bf16.mxu0 0
    %1154 = vmatmul.mubr.bf16.gmra.mrb[0].mxu0 %v747
    %v1155 = vpop.f32.mrb[0].mxu0
    %v1156 = vadd.f32 %v947, %v1155
    %v1157 = vpop.f32.mrb[0].mxu0
    %v1158 = vpop.f32.mrb[0].mxu0
    %v1159 = vadd.f32 %v950, %v1158
    %v1160 = vpop.f32.mrb[0].mxu0
    %1161 = vmatprep.mubr.bf16.mxu0 0
    %1162 = vmatmul.mubr.bf16.gmra.mrb[0].mxu0 %v748
    %v1163 = vpop.f32.mrb[0].mxu0
    %v1164 = vadd.f32 %v955, %v1163
    %v1165 = vpop.f32.mrb[0].mxu0
    %v1166 = vpop.f32.mrb[0].mxu0
    %v1167 = vadd.f32 %v958, %v1166
    %v1168 = vpop.f32.mrb[0].mxu0
    %1169 = vmatprep.mubr.bf16.mxu0 0
    %1170 = vmatmul.mubr.bf16.gmra.mrb[0].mxu0 %v749
    %v1171 = vpop.f32.mrb[0].mxu0
    %v1172 = vadd.f32 %v963, %v1171
    %v1173 = vpop.f32.mrb[0].mxu0
    %v1174 = vpop.f32.mrb[0].mxu0
    %v1175 = vadd.f32 %v966, %v1174
    %v1176 = vpop.f32.mrb[0].mxu0
    %1177 = vmatprep.mubr.bf16.mxu0 0
    %1178 = vmatmul.mubr.bf16.gmra.mrb[0].mxu0 %v750
    %v1179 = vpop.f32.mrb[0].mxu0
    %v1180 = vadd.f32 %v971, %v1179
    %v1181 = vpop.f32.mrb[0].mxu0
    %v1182 = vpop.f32.mrb[0].mxu0
    %v1183 = vadd.f32 %v974, %v1182
    %v1184 = vpop.f32.mrb[0].mxu0
    %1185 = vmatprep.mubr.bf16.mxu0 0
    %1186 = vmatmul.mubr.bf16.gmra.mrb[0].mxu0 %v751
    %v1187 = vpop.f32.mrb[0].mxu0
    %v1188 = vadd.f32 %v979, %v1187
    %v1189 = vpop.f32.mrb[0].mxu0
    %v1190 = vpop.f32.mrb[0].mxu0
    %v1191 = vadd.f32 %v982, %v1190
    %v1192 = vpop.f32.mrb[0].mxu0
    %1193 = vmatprep.mubr.bf16.mxu0 0
    %1194 = vmatmul.mubr.bf16.gmra.mrb[0].mxu0 %v752
    %v1195 = vpop.f32.mrb[0].mxu0
    %v1196 = vadd.f32 %v987, %v1195
    %v1197 = vpop.f32.mrb[0].mxu0
    %v1198 = vpop.f32.mrb[0].mxu0
    %v1199 = vadd.f32 %v990, %v1198
    %v1200 = vpop.f32.mrb[0].mxu0
    %1201 = vmatprep.mubr.bf16.mxu0 0
    %1202 = vmatmul.mubr.bf16.gmra.mrb[0].mxu0 %v753
    %v1203 = vpop.f32.mrb[0].mxu0
    %v1204 = vadd.f32 %v995, %v1203
    %v1205 = vpop.f32.mrb[0].mxu0
    %v1206 = vpop.f32.mrb[0].mxu0
    %v1207 = vadd.f32 %v998, %v1206
    %v1208 = vpop.f32.mrb[0].mxu0
    %1209 = vmatprep.mubr.bf16.mxu0 0
    %1210 = vmatmul.mubr.bf16.gmra.mrb[0].mxu0 %v754
    %v1211 = vpop.f32.mrb[0].mxu0
    %v1212 = vadd.f32 %v1003, %v1211
    %v1213 = vpop.f32.mrb[0].mxu0
    %v1214 = vpop.f32.mrb[0].mxu0
    %v1215 = vadd.f32 %v1006, %v1214
    %v1216 = vpop.f32.mrb[0].mxu0
    %1217 = vmatprep.mubr.bf16.mxu0 0
    %1218 = vmatmul.mubr.bf16.gmra.mrb[0].mxu0 %v755
    %v1219 = vpop.f32.mrb[0].mxu0
    %v1220 = vadd.f32 %v1011, %v1219
    %v1221 = vpop.f32.mrb[0].mxu0
    %v1222 = vpop.f32.mrb[0].mxu0
    %v1223 = vadd.f32 %v1014, %v1222
    %v1224 = vpop.f32.mrb[0].mxu0
    %1225 = vmatprep.mubr.bf16.mxu0 0
    %1226 = vmatmul.mubr.bf16.gmra.mrb[0].mxu0 %v756
    %v1227 = vpop.f32.mrb[0].mxu0
    %v1228 = vadd.f32 %v1019, %v1227
    %v1229 = vpop.f32.mrb[0].mxu0
    %v1230 = vpop.f32.mrb[0].mxu0
    %v1231 = vadd.f32 %v1022, %v1230
    %v1232 = vpop.f32.mrb[0].mxu0
    %1233 = vmatprep.mubr.bf16.mxu0 0
    %1234 = vmatmul.mubr.bf16.gmra.mrb[0].mxu0 %v757
    %v1235 = vpop.f32.mrb[0].mxu0
    %v1236 = vadd.f32 %v1027, %v1235
    %v1237 = vpop.f32.mrb[0].mxu0
    %v1238 = vpop.f32.mrb[0].mxu0
    %v1239 = vadd.f32 %v1030, %v1238
    %v1240 = vpop.f32.mrb[0].mxu0
    %1241 = vmatprep.mubr.bf16.mxu0 0
    %1242 = vmatmul.mubr.bf16.gmra.mrb[0].mxu0 %v758
    %v1243 = vpop.f32.mrb[0].mxu0
    %v1244 = vadd.f32 %v1035, %v1243
    %v1245 = vpop.f32.mrb[0].mxu0
    %v1246 = vpop.f32.mrb[0].mxu0
    %v1247 = vadd.f32 %v1038, %v1246
    %v1248 = vpop.f32.mrb[0].mxu0
    %1249 = vmatprep.mubr.bf16.mxu0 0
    %1250 = vmatmul.mubr.bf16.gmra.mrb[0].mxu0 %v759
    %v1251 = vpop.f32.mrb[0].mxu0
    %v1252 = vadd.f32 %v1043, %v1251
    %v1253 = vpop.f32.mrb[0].mxu0
    %v1254 = vpop.f32.mrb[0].mxu0
    %v1255 = vadd.f32 %v1046, %v1254
    %v1256 = vpop.f32.mrb[0].mxu0
    %1257 = vdwg.mxu0
    %v1258 = vld [vmem:[%s6] sm:$0x1]
    %v1260 = vlaneseq
    %v1261 = vshrl.u32 %v1260, 7
    %v1262 = vsub.s32 0, %v1261
    %v1263 = vrot.slane %v1258, %v1262
    %v1265 = vadd.f32 %v1132, %v1263
    %v1266 = vadd.f32 %v1135, %v1263
    %v1267 = vadd.f32 %v1140, %v1263
    %v1268 = vadd.f32 %v1143, %v1263
    %v1269 = vadd.f32 %v1148, %v1263
    %v1270 = vadd.f32 %v1151, %v1263
    %v1271 = vadd.f32 %v1156, %v1263
    %v1272 = vadd.f32 %v1159, %v1263
    %v1273 = vadd.f32 %v1164, %v1263
    %v1274 = vadd.f32 %v1167, %v1263
    %v1275 = vadd.f32 %v1172, %v1263
    %v1276 = vadd.f32 %v1175, %v1263
    %v1277 = vadd.f32 %v1180, %v1263
    %v1278 = vadd.f32 %v1183, %v1263
    %v1279 = vadd.f32 %v1188, %v1263
    %v1280 = vadd.f32 %v1191, %v1263
    %v1281 = vadd.f32 %v1196, %v1263
    %v1282 = vadd.f32 %v1199, %v1263
    %v1283 = vadd.f32 %v1204, %v1263
    %v1284 = vadd.f32 %v1207, %v1263
    %v1285 = vadd.f32 %v1212, %v1263
    %v1286 = vadd.f32 %v1215, %v1263
    %v1287 = vadd.f32 %v1220, %v1263
    %v1288 = vadd.f32 %v1223, %v1263
    %v1289 = vadd.f32 %v1228, %v1263
    %v1290 = vadd.f32 %v1231, %v1263
    %v1291 = vadd.f32 %v1236, %v1263
    %v1292 = vadd.f32 %v1239, %v1263
    %v1293 = vadd.f32 %v1244, %v1263
    %v1294 = vadd.f32 %v1247, %v1263
    %v1295 = vadd.f32 %v1252, %v1263
    %v1296 = vadd.f32 %v1255, %v1263
    %v1297 = vld [vmem:[%s3] sm:$0xff]
    %v1298 = vld [vmem:[%s3 + $0x8] sm:$0xff]
    %v1299 = vld [vmem:[%s3 + $0x10] sm:$0xff]
    %v1300 = vld [vmem:[%s3 + $0x18] sm:$0xff]
    %v1301 = vld [vmem:[%s3 + $0x20] sm:$0xff]
    %v1302 = vld [vmem:[%s3 + $0x28] sm:$0xff]
    %v1303 = vld [vmem:[%s3 + $0x30] sm:$0xff]
    %v1304 = vld [vmem:[%s3 + $0x38] sm:$0xff]
    %v1305 = vld [vmem:[%s3 + $0x40] sm:$0xff]
    %v1306 = vld [vmem:[%s3 + $0x48] sm:$0xff]
    %v1307 = vld [vmem:[%s3 + $0x50] sm:$0xff]
    %v1308 = vld [vmem:[%s3 + $0x58] sm:$0xff]
    %v1309 = vld [vmem:[%s3 + $0x60] sm:$0xff]
    %v1310 = vld [vmem:[%s3 + $0x68] sm:$0xff]
    %v1311 = vld [vmem:[%s3 + $0x70] sm:$0xff]
    %v1312 = vld [vmem:[%s3 + $0x78] sm:$0xff]
    %v1313 = vld [vmem:[%s3 + $0x80] sm:$0xff]
    %v1314 = vld [vmem:[%s3 + $0x88] sm:$0xff]
    %v1315 = vld [vmem:[%s3 + $0x90] sm:$0xff]
    %v1316 = vld [vmem:[%s3 + $0x98] sm:$0xff]
    %v1317 = vld [vmem:[%s3 + $0xa0] sm:$0xff]
    %v1318 = vld [vmem:[%s3 + $0xa8] sm:$0xff]
    %v1319 = vld [vmem:[%s3 + $0xb0] sm:$0xff]
    %v1320 = vld [vmem:[%s3 + $0xb8] sm:$0xff]
    %v1321 = vld [vmem:[%s3 + $0xc0] sm:$0xff]
    %v1322 = vld [vmem:[%s3 + $0xc8] sm:$0xff]
    %v1323 = vld [vmem:[%s3 + $0xd0] sm:$0xff]
    %v1324 = vld [vmem:[%s3 + $0xd8] sm:$0xff]
    %v1325 = vld [vmem:[%s3 + $0xe0] sm:$0xff]
    %v1326 = vld [vmem:[%s3 + $0xe8] sm:$0xff]
    %v1327 = vld [vmem:[%s3 + $0xf0] sm:$0xff]
    %v1328 = vld [vmem:[%s3 + $0xf8] sm:$0xff]
    %v1329 = vld [vmem:[%s7] sm:$0x1]
    %1331 = vset.pattern.permute.xlu0 0
    %1332 = vperm.xlu0 %1331, %v1297
    %v1333 = vpop.permute.xlu0 %1332
    %1336 = vset.pattern.permute.xlu0 0
    %1337 = vperm.xlu0 %1336, %v1298
    %v1338 = vpop.permute.xlu0 %1337
    %1341 = vset.pattern.permute.xlu0 0
    %1342 = vperm.xlu0 %1341, %v1299
    %v1343 = vpop.permute.xlu0 %1342
    %1346 = vset.pattern.permute.xlu0 0
    %1347 = vperm.xlu0 %1346, %v1300
    %v1348 = vpop.permute.xlu0 %1347
    %1351 = vset.pattern.permute.xlu0 0
    %1352 = vperm.xlu0 %1351, %v1301
    %v1353 = vpop.permute.xlu0 %1352
    %1356 = vset.pattern.permute.xlu0 0
    %1357 = vperm.xlu0 %1356, %v1302
    %v1358 = vpop.permute.xlu0 %1357
    %1361 = vset.pattern.permute.xlu0 0
    %1362 = vperm.xlu0 %1361, %v1303
    %v1363 = vpop.permute.xlu0 %1362
    %1366 = vset.pattern.permute.xlu0 0
    %1367 = vperm.xlu0 %1366, %v1304
    %v1368 = vpop.permute.xlu0 %1367
    %1371 = vset.pattern.permute.xlu0 0
    %1372 = vperm.xlu0 %1371, %v1305
    %v1373 = vpop.permute.xlu0 %1372
    %1376 = vset.pattern.permute.xlu0 0
    %1377 = vperm.xlu0 %1376, %v1306
    %v1378 = vpop.permute.xlu0 %1377
    %1381 = vset.pattern.permute.xlu0 0
    %1382 = vperm.xlu0 %1381, %v1307
    %v1383 = vpop.permute.xlu0 %1382
    %1386 = vset.pattern.permute.xlu0 0
    %1387 = vperm.xlu0 %1386, %v1308
    %v1388 = vpop.permute.xlu0 %1387
    %1391 = vset.pattern.permute.xlu0 0
    %1392 = vperm.xlu0 %1391, %v1309
    %v1393 = vpop.permute.xlu0 %1392
    %1396 = vset.pattern.permute.xlu0 0
    %1397 = vperm.xlu0 %1396, %v1310
    %v1398 = vpop.permute.xlu0 %1397
    %1401 = vset.pattern.permute.xlu0 0
    %1402 = vperm.xlu0 %1401, %v1311
    %v1403 = vpop.permute.xlu0 %1402
    %1406 = vset.pattern.permute.xlu0 0
    %1407 = vperm.xlu0 %1406, %v1312
    %v1408 = vpop.permute.xlu0 %1407
    %1411 = vset.pattern.permute.xlu0 0
    %1412 = vperm.xlu0 %1411, %v1313
    %v1413 = vpop.permute.xlu0 %1412
    %1416 = vset.pattern.permute.xlu0 0
    %1417 = vperm.xlu0 %1416, %v1314
    %v1418 = vpop.permute.xlu0 %1417
    %1421 = vset.pattern.permute.xlu0 0
    %1422 = vperm.xlu0 %1421, %v1315
    %v1423 = vpop.permute.xlu0 %1422
    %1426 = vset.pattern.permute.xlu0 0
    %1427 = vperm.xlu0 %1426, %v1316
    %v1428 = vpop.permute.xlu0 %1427
    %1431 = vset.pattern.permute.xlu0 0
    %1432 = vperm.xlu0 %1431, %v1317
    %v1433 = vpop.permute.xlu0 %1432
    %1436 = vset.pattern.permute.xlu0 0
    %1437 = vperm.xlu0 %1436, %v1318
    %v1438 = vpop.permute.xlu0 %1437
    %1441 = vset.pattern.permute.xlu0 0
    %1442 = vperm.xlu0 %1441, %v1319
    %v1443 = vpop.permute.xlu0 %1442
    %1446 = vset.pattern.permute.xlu0 0
    %1447 = vperm.xlu0 %1446, %v1320
    %v1448 = vpop.permute.xlu0 %1447
    %1451 = vset.pattern.permute.xlu0 0
    %1452 = vperm.xlu0 %1451, %v1321
    %v1453 = vpop.permute.xlu0 %1452
    %1456 = vset.pattern.permute.xlu0 0
    %1457 = vperm.xlu0 %1456, %v1322
    %v1458 = vpop.permute.xlu0 %1457
    %1461 = vset.pattern.permute.xlu0 0
    %1462 = vperm.xlu0 %1461, %v1323
    %v1463 = vpop.permute.xlu0 %1462
    %1466 = vset.pattern.permute.xlu0 0
    %1467 = vperm.xlu0 %1466, %v1324
    %v1468 = vpop.permute.xlu0 %1467
    %1471 = vset.pattern.permute.xlu0 0
    %1472 = vperm.xlu0 %1471, %v1325
    %v1473 = vpop.permute.xlu0 %1472
    %1476 = vset.pattern.permute.xlu0 0
    %1477 = vperm.xlu0 %1476, %v1326
    %v1478 = vpop.permute.xlu0 %1477
    %1481 = vset.pattern.permute.xlu0 0
    %1482 = vperm.xlu0 %1481, %v1327
    %v1483 = vpop.permute.xlu0 %1482
    %1486 = vset.pattern.permute.xlu0 0
    %1487 = vperm.xlu0 %1486, %v1328
    %v1488 = vpop.permute.xlu0 %1487
    %v1491 = vlaneseq
    %v1492 = vshrl.u32 %v1491, 7
    %v1493 = vsub.s32 0, %v1492
    %v1494 = vrot.slane %v1329, %v1493
    %v1496 = vmul.f32 %v1333, %v1494
    %v1497 = vmul.f32 %v1338, %v1494
    %v1498 = vmul.f32 %v1343, %v1494
    %v1499 = vmul.f32 %v1348, %v1494
    %v1500 = vmul.f32 %v1353, %v1494
    %v1501 = vmul.f32 %v1358, %v1494
    %v1502 = vmul.f32 %v1363, %v1494
    %v1503 = vmul.f32 %v1368, %v1494
    %v1504 = vmul.f32 %v1373, %v1494
    %v1505 = vmul.f32 %v1378, %v1494
    %v1506 = vmul.f32 %v1383, %v1494
    %v1507 = vmul.f32 %v1388, %v1494
    %v1508 = vmul.f32 %v1393, %v1494
    %v1509 = vmul.f32 %v1398, %v1494
    %v1510 = vmul.f32 %v1403, %v1494
    %v1511 = vmul.f32 %v1408, %v1494
    %v1512 = vmul.f32 %v1413, %v1494
    %v1513 = vmul.f32 %v1418, %v1494
    %v1514 = vmul.f32 %v1423, %v1494
    %v1515 = vmul.f32 %v1428, %v1494
    %v1516 = vmul.f32 %v1433, %v1494
    %v1517 = vmul.f32 %v1438, %v1494
    %v1518 = vmul.f32 %v1443, %v1494
    %v1519 = vmul.f32 %v1448, %v1494
    %v1520 = vmul.f32 %v1453, %v1494
    %v1521 = vmul.f32 %v1458, %v1494
    %v1522 = vmul.f32 %v1463, %v1494
    %v1523 = vmul.f32 %v1468, %v1494
    %v1524 = vmul.f32 %v1473, %v1494
    %v1525 = vmul.f32 %v1478, %v1494
    %v1526 = vmul.f32 %v1483, %v1494
    %v1527 = vmul.f32 %v1488, %v1494
    %v1528 = vadd.f32 %v1265, %v1496
    %v1529 = vadd.f32 %v1266, %v1497
    %v1530 = vadd.f32 %v1267, %v1498
    %v1531 = vadd.f32 %v1268, %v1499
    %v1532 = vadd.f32 %v1269, %v1500
    %v1533 = vadd.f32 %v1270, %v1501
    %v1534 = vadd.f32 %v1271, %v1502
    %v1535 = vadd.f32 %v1272, %v1503
    %v1536 = vadd.f32 %v1273, %v1504
    %v1537 = vadd.f32 %v1274, %v1505
    %v1538 = vadd.f32 %v1275, %v1506
    %v1539 = vadd.f32 %v1276, %v1507
    %v1540 = vadd.f32 %v1277, %v1508
    %v1541 = vadd.f32 %v1278, %v1509
    %v1542 = vadd.f32 %v1279, %v1510
    %v1543 = vadd.f32 %v1280, %v1511
    %v1544 = vadd.f32 %v1281, %v1512
    %v1545 = vadd.f32 %v1282, %v1513
    %v1546 = vadd.f32 %v1283, %v1514
    %v1547 = vadd.f32 %v1284, %v1515
    %v1548 = vadd.f32 %v1285, %v1516
    %v1549 = vadd.f32 %v1286, %v1517
    %v1550 = vadd.f32 %v1287, %v1518
    %v1551 = vadd.f32 %v1288, %v1519
    %v1552 = vadd.f32 %v1289, %v1520
    %v1553 = vadd.f32 %v1290, %v1521
    %v1554 = vadd.f32 %v1291, %v1522
    %v1555 = vadd.f32 %v1292, %v1523
    %v1556 = vadd.f32 %v1293, %v1524
    %v1557 = vadd.f32 %v1294, %v1525
    %v1558 = vadd.f32 %v1295, %v1526
    %v1559 = vadd.f32 %v1296, %v1527
    %vm1560 = vcmp.ge.f32.partialorder %v1528, 0.0
    %vm1561 = vcmp.ge.f32.partialorder %v1529, 0.0
    %vm1562 = vcmp.ge.f32.partialorder %v1530, 0.0
    %vm1563 = vcmp.ge.f32.partialorder %v1531, 0.0
    %vm1564 = vcmp.ge.f32.partialorder %v1532, 0.0
    %vm1565 = vcmp.ge.f32.partialorder %v1533, 0.0
    %vm1566 = vcmp.ge.f32.partialorder %v1534, 0.0
    %vm1567 = vcmp.ge.f32.partialorder %v1535, 0.0
    %vm1568 = vcmp.ge.f32.partialorder %v1536, 0.0
    %vm1569 = vcmp.ge.f32.partialorder %v1537, 0.0
    %vm1570 = vcmp.ge.f32.partialorder %v1538, 0.0
    %vm1571 = vcmp.ge.f32.partialorder %v1539, 0.0
    %vm1572 = vcmp.ge.f32.partialorder %v1540, 0.0
    %vm1573 = vcmp.ge.f32.partialorder %v1541, 0.0
    %vm1574 = vcmp.ge.f32.partialorder %v1542, 0.0
    %vm1575 = vcmp.ge.f32.partialorder %v1543, 0.0
    %vm1576 = vcmp.ge.f32.partialorder %v1544, 0.0
    %vm1577 = vcmp.ge.f32.partialorder %v1545, 0.0
    %vm1578 = vcmp.ge.f32.partialorder %v1546, 0.0
    %vm1579 = vcmp.ge.f32.partialorder %v1547, 0.0
    %vm1580 = vcmp.ge.f32.partialorder %v1548, 0.0
    %vm1581 = vcmp.ge.f32.partialorder %v1549, 0.0
    %vm1582 = vcmp.ge.f32.partialorder %v1550, 0.0
    %vm1583 = vcmp.ge.f32.partialorder %v1551, 0.0
    %vm1584 = vcmp.ge.f32.partialorder %v1552, 0.0
    %vm1585 = vcmp.ge.f32.partialorder %v1553, 0.0
    %vm1586 = vcmp.ge.f32.partialorder %v1554, 0.0
    %vm1587 = vcmp.ge.f32.partialorder %v1555, 0.0
    %vm1588 = vcmp.ge.f32.partialorder %v1556, 0.0
    %vm1589 = vcmp.ge.f32.partialorder %v1557, 0.0
    %vm1590 = vcmp.ge.f32.partialorder %v1558, 0.0
    %vm1591 = vcmp.ge.f32.partialorder %v1559, 0.0
    %v1592 = vmul.f32 %v1528, 0.2
    %v1593 = vmul.f32 %v1529, 0.2
    %v1594 = vmul.f32 %v1530, 0.2
    %v1595 = vmul.f32 %v1531, 0.2
    %v1596 = vmul.f32 %v1532, 0.2
    %v1597 = vmul.f32 %v1533, 0.2
    %v1598 = vmul.f32 %v1534, 0.2
    %v1599 = vmul.f32 %v1535, 0.2
    %v1600 = vmul.f32 %v1536, 0.2
    %v1601 = vmul.f32 %v1537, 0.2
    %v1602 = vmul.f32 %v1538, 0.2
    %v1603 = vmul.f32 %v1539, 0.2
    %v1604 = vmul.f32 %v1540, 0.2
    %v1605 = vmul.f32 %v1541, 0.2
    %v1606 = vmul.f32 %v1542, 0.2
    %v1607 = vmul.f32 %v1543, 0.2
    %v1608 = vmul.f32 %v1544, 0.2
    %v1609 = vmul.f32 %v1545, 0.2
    %v1610 = vmul.f32 %v1546, 0.2
    %v1611 = vmul.f32 %v1547, 0.2
    %v1612 = vmul.f32 %v1548, 0.2
    %v1613 = vmul.f32 %v1549, 0.2
    %v1614 = vmul.f32 %v1550, 0.2
    %v1615 = vmul.f32 %v1551, 0.2
    %v1616 = vmul.f32 %v1552, 0.2
    %v1617 = vmul.f32 %v1553, 0.2
    %v1618 = vmul.f32 %v1554, 0.2
    %v1619 = vmul.f32 %v1555, 0.2
    %v1620 = vmul.f32 %v1556, 0.2
    %v1621 = vmul.f32 %v1557, 0.2
    %v1622 = vmul.f32 %v1558, 0.2
    %v1623 = vmul.f32 %v1559, 0.2
    %v1624 = vsel %vm1560, %v1528, %v1592
    %v1625 = vsel %vm1561, %v1529, %v1593
    %v1626 = vsel %vm1562, %v1530, %v1594
    %v1627 = vsel %vm1563, %v1531, %v1595
    %v1628 = vsel %vm1564, %v1532, %v1596
    %v1629 = vsel %vm1565, %v1533, %v1597
    %v1630 = vsel %vm1566, %v1534, %v1598
    %v1631 = vsel %vm1567, %v1535, %v1599
    %v1632 = vsel %vm1568, %v1536, %v1600
    %v1633 = vsel %vm1569, %v1537, %v1601
    %v1634 = vsel %vm1570, %v1538, %v1602
    %v1635 = vsel %vm1571, %v1539, %v1603
    %v1636 = vsel %vm1572, %v1540, %v1604
    %v1637 = vsel %vm1573, %v1541, %v1605
    %v1638 = vsel %vm1574, %v1542, %v1606
    %v1639 = vsel %vm1575, %v1543, %v1607
    %v1640 = vsel %vm1576, %v1544, %v1608
    %v1641 = vsel %vm1577, %v1545, %v1609
    %v1642 = vsel %vm1578, %v1546, %v1610
    %v1643 = vsel %vm1579, %v1547, %v1611
    %v1644 = vsel %vm1580, %v1548, %v1612
    %v1645 = vsel %vm1581, %v1549, %v1613
    %v1646 = vsel %vm1582, %v1550, %v1614
    %v1647 = vsel %vm1583, %v1551, %v1615
    %v1648 = vsel %vm1584, %v1552, %v1616
    %v1649 = vsel %vm1585, %v1553, %v1617
    %v1650 = vsel %vm1586, %v1554, %v1618
    %v1651 = vsel %vm1587, %v1555, %v1619
    %v1652 = vsel %vm1588, %v1556, %v1620
    %v1653 = vsel %vm1589, %v1557, %v1621
    %v1654 = vsel %vm1590, %v1558, %v1622
    %v1655 = vsel %vm1591, %v1559, %v1623
    %v1656 = vmul.f32 %v1624, %v1624
    %v1657 = vmul.f32 %v1625, %v1625
    %v1658 = vmul.f32 %v1626, %v1626
    %v1659 = vmul.f32 %v1627, %v1627
    %v1660 = vmul.f32 %v1628, %v1628
    %v1661 = vmul.f32 %v1629, %v1629
    %v1662 = vmul.f32 %v1630, %v1630
    %v1663 = vmul.f32 %v1631, %v1631
    %v1664 = vmul.f32 %v1632, %v1632
    %v1665 = vmul.f32 %v1633, %v1633
    %v1666 = vmul.f32 %v1634, %v1634
    %v1667 = vmul.f32 %v1635, %v1635
    %v1668 = vmul.f32 %v1636, %v1636
    %v1669 = vmul.f32 %v1637, %v1637
    %v1670 = vmul.f32 %v1638, %v1638
    %v1671 = vmul.f32 %v1639, %v1639
    %v1672 = vmul.f32 %v1640, %v1640
    %v1673 = vmul.f32 %v1641, %v1641
    %v1674 = vmul.f32 %v1642, %v1642
    %v1675 = vmul.f32 %v1643, %v1643
    %v1676 = vmul.f32 %v1644, %v1644
    %v1677 = vmul.f32 %v1645, %v1645
    %v1678 = vmul.f32 %v1646, %v1646
    %v1679 = vmul.f32 %v1647, %v1647
    %v1680 = vmul.f32 %v1648, %v1648
    %v1681 = vmul.f32 %v1649, %v1649
    %v1682 = vmul.f32 %v1650, %v1650
    %v1683 = vmul.f32 %v1651, %v1651
    %v1684 = vmul.f32 %v1652, %v1652
    %v1685 = vmul.f32 %v1653, %v1653
    %v1686 = vmul.f32 %v1654, %v1654
    %v1687 = vmul.f32 %v1655, %v1655
    %1688 = vadd.xlane.f32.xlu0 %v1656
    %v1689 = vpop.xlane.xlu0 %1688
    %1690 = vadd.xlane.f32.xlu0 %v1657
    %v1691 = vpop.xlane.xlu0 %1690
    %1692 = vadd.xlane.f32.xlu0 %v1658
    %v1693 = vpop.xlane.xlu0 %1692
    %1694 = vadd.xlane.f32.xlu0 %v1659
    %v1695 = vpop.xlane.xlu0 %1694
    %1696 = vadd.xlane.f32.xlu0 %v1660
    %v1697 = vpop.xlane.xlu0 %1696
    %1698 = vadd.xlane.f32.xlu0 %v1661
    %v1699 = vpop.xlane.xlu0 %1698
    %1700 = vadd.xlane.f32.xlu0 %v1662
    %v1701 = vpop.xlane.xlu0 %1700
    %1702 = vadd.xlane.f32.xlu0 %v1663
    %v1703 = vpop.xlane.xlu0 %1702
    %1704 = vadd.xlane.f32.xlu0 %v1664
    %v1705 = vpop.xlane.xlu0 %1704
    %1706 = vadd.xlane.f32.xlu0 %v1665
    %v1707 = vpop.xlane.xlu0 %1706
    %1708 = vadd.xlane.f32.xlu0 %v1666
    %v1709 = vpop.xlane.xlu0 %1708
    %1710 = vadd.xlane.f32.xlu0 %v1667
    %v1711 = vpop.xlane.xlu0 %1710
    %1712 = vadd.xlane.f32.xlu0 %v1668
    %v1713 = vpop.xlane.xlu0 %1712
    %1714 = vadd.xlane.f32.xlu0 %v1669
    %v1715 = vpop.xlane.xlu0 %1714
    %1716 = vadd.xlane.f32.xlu0 %v1670
    %v1717 = vpop.xlane.xlu0 %1716
    %1718 = vadd.xlane.f32.xlu0 %v1671
    %v1719 = vpop.xlane.xlu0 %1718
    %1720 = vadd.xlane.f32.xlu0 %v1672
    %v1721 = vpop.xlane.xlu0 %1720
    %1722 = vadd.xlane.f32.xlu0 %v1673
    %v1723 = vpop.xlane.xlu0 %1722
    %1724 = vadd.xlane.f32.xlu0 %v1674
    %v1725 = vpop.xlane.xlu0 %1724
    %1726 = vadd.xlane.f32.xlu0 %v1675
    %v1727 = vpop.xlane.xlu0 %1726
    %1728 = vadd.xlane.f32.xlu0 %v1676
    %v1729 = vpop.xlane.xlu0 %1728
    %1730 = vadd.xlane.f32.xlu0 %v1677
    %v1731 = vpop.xlane.xlu0 %1730
    %1732 = vadd.xlane.f32.xlu0 %v1678
    %v1733 = vpop.xlane.xlu0 %1732
    %1734 = vadd.xlane.f32.xlu0 %v1679
    %v1735 = vpop.xlane.xlu0 %1734
    %1736 = vadd.xlane.f32.xlu0 %v1680
    %v1737 = vpop.xlane.xlu0 %1736
    %1738 = vadd.xlane.f32.xlu0 %v1681
    %v1739 = vpop.xlane.xlu0 %1738
    %1740 = vadd.xlane.f32.xlu0 %v1682
    %v1741 = vpop.xlane.xlu0 %1740
    %1742 = vadd.xlane.f32.xlu0 %v1683
    %v1743 = vpop.xlane.xlu0 %1742
    %1744 = vadd.xlane.f32.xlu0 %v1684
    %v1745 = vpop.xlane.xlu0 %1744
    %1746 = vadd.xlane.f32.xlu0 %v1685
    %v1747 = vpop.xlane.xlu0 %1746
    %1748 = vadd.xlane.f32.xlu0 %v1686
    %v1749 = vpop.xlane.xlu0 %1748
    %1750 = vadd.xlane.f32.xlu0 %v1687
    %v1751 = vpop.xlane.xlu0 %1750
    %v1752 = vmax.f32 %v1689, 1e-24
    %v1753 = vmax.f32 %v1691, 1e-24
    %v1754 = vmax.f32 %v1693, 1e-24
    %v1755 = vmax.f32 %v1695, 1e-24
    %v1756 = vmax.f32 %v1697, 1e-24
    %v1757 = vmax.f32 %v1699, 1e-24
    %v1758 = vmax.f32 %v1701, 1e-24
    %v1759 = vmax.f32 %v1703, 1e-24
    %v1760 = vmax.f32 %v1705, 1e-24
    %v1761 = vmax.f32 %v1707, 1e-24
    %v1762 = vmax.f32 %v1709, 1e-24
    %v1763 = vmax.f32 %v1711, 1e-24
    %v1764 = vmax.f32 %v1713, 1e-24
    %v1765 = vmax.f32 %v1715, 1e-24
    %v1766 = vmax.f32 %v1717, 1e-24
    %v1767 = vmax.f32 %v1719, 1e-24
    %v1768 = vmax.f32 %v1721, 1e-24
    %v1769 = vmax.f32 %v1723, 1e-24
    %v1770 = vmax.f32 %v1725, 1e-24
    %v1771 = vmax.f32 %v1727, 1e-24
    %v1772 = vmax.f32 %v1729, 1e-24
    %v1773 = vmax.f32 %v1731, 1e-24
    %v1774 = vmax.f32 %v1733, 1e-24
    %v1775 = vmax.f32 %v1735, 1e-24
    %v1776 = vmax.f32 %v1737, 1e-24
    %v1777 = vmax.f32 %v1739, 1e-24
    %v1778 = vmax.f32 %v1741, 1e-24
    %v1779 = vmax.f32 %v1743, 1e-24
    %v1780 = vmax.f32 %v1745, 1e-24
    %v1781 = vmax.f32 %v1747, 1e-24
    %v1782 = vmax.f32 %v1749, 1e-24
    %v1783 = vmax.f32 %v1751, 1e-24
    %v1784 = vrsqrt.pop %v1752
    %v1785 = vrsqrt.pop %v1753
    %v1786 = vrsqrt.pop %v1754
    %v1787 = vrsqrt.pop %v1755
    %v1788 = vrsqrt.pop %v1756
    %v1789 = vrsqrt.pop %v1757
    %v1790 = vrsqrt.pop %v1758
    %v1791 = vrsqrt.pop %v1759
    %v1792 = vrsqrt.pop %v1760
    %v1793 = vrsqrt.pop %v1761
    %v1794 = vrsqrt.pop %v1762
    %v1795 = vrsqrt.pop %v1763
    %v1796 = vrsqrt.pop %v1764
    %v1797 = vrsqrt.pop %v1765
    %v1798 = vrsqrt.pop %v1766
    %v1799 = vrsqrt.pop %v1767
    %v1800 = vrsqrt.pop %v1768
    %v1801 = vrsqrt.pop %v1769
    %v1802 = vrsqrt.pop %v1770
    %v1803 = vrsqrt.pop %v1771
    %v1804 = vrsqrt.pop %v1772
    %v1805 = vrsqrt.pop %v1773
    %v1806 = vrsqrt.pop %v1774
    %v1807 = vrsqrt.pop %v1775
    %v1808 = vrsqrt.pop %v1776
    %v1809 = vrsqrt.pop %v1777
    %v1810 = vrsqrt.pop %v1778
    %v1811 = vrsqrt.pop %v1779
    %v1812 = vrsqrt.pop %v1780
    %v1813 = vrsqrt.pop %v1781
    %v1814 = vrsqrt.pop %v1782
    %v1815 = vrsqrt.pop %v1783
    %v1816 = vmul.f32 %v1624, %v1784
    %v1817 = vmul.f32 %v1625, %v1785
    %v1818 = vmul.f32 %v1626, %v1786
    %v1819 = vmul.f32 %v1627, %v1787
    %v1820 = vmul.f32 %v1628, %v1788
    %v1821 = vmul.f32 %v1629, %v1789
    %v1822 = vmul.f32 %v1630, %v1790
    %v1823 = vmul.f32 %v1631, %v1791
    %v1824 = vmul.f32 %v1632, %v1792
    %v1825 = vmul.f32 %v1633, %v1793
    %v1826 = vmul.f32 %v1634, %v1794
    %v1827 = vmul.f32 %v1635, %v1795
    %v1828 = vmul.f32 %v1636, %v1796
    %v1829 = vmul.f32 %v1637, %v1797
    %v1830 = vmul.f32 %v1638, %v1798
    %v1831 = vmul.f32 %v1639, %v1799
    %v1832 = vmul.f32 %v1640, %v1800
    %v1833 = vmul.f32 %v1641, %v1801
    %v1834 = vmul.f32 %v1642, %v1802
    %v1835 = vmul.f32 %v1643, %v1803
    %v1836 = vmul.f32 %v1644, %v1804
    %v1837 = vmul.f32 %v1645, %v1805
    %v1838 = vmul.f32 %v1646, %v1806
    %v1839 = vmul.f32 %v1647, %v1807
    %v1840 = vmul.f32 %v1648, %v1808
    %v1841 = vmul.f32 %v1649, %v1809
    %v1842 = vmul.f32 %v1650, %v1810
    %v1843 = vmul.f32 %v1651, %v1811
    %v1844 = vmul.f32 %v1652, %v1812
    %v1845 = vmul.f32 %v1653, %v1813
    %v1846 = vmul.f32 %v1654, %v1814
    %v1847 = vmul.f32 %v1655, %v1815
    %1848 = vst [vmem:[%s8] sm:$0xff] %v1816
    %1849 = vst [vmem:[%s8 + $0x8] sm:$0xff] %v1817
    %1850 = vst [vmem:[%s8 + $0x10] sm:$0xff] %v1818
    %1851 = vst [vmem:[%s8 + $0x18] sm:$0xff] %v1819
    %1852 = vst [vmem:[%s8 + $0x20] sm:$0xff] %v1820
    %1853 = vst [vmem:[%s8 + $0x28] sm:$0xff] %v1821
    %1854 = vst [vmem:[%s8 + $0x30] sm:$0xff] %v1822
    %1855 = vst [vmem:[%s8 + $0x38] sm:$0xff] %v1823
    %1856 = vst [vmem:[%s8 + $0x40] sm:$0xff] %v1824
    %1857 = vst [vmem:[%s8 + $0x48] sm:$0xff] %v1825
    %1858 = vst [vmem:[%s8 + $0x50] sm:$0xff] %v1826
    %1859 = vst [vmem:[%s8 + $0x58] sm:$0xff] %v1827
    %1860 = vst [vmem:[%s8 + $0x60] sm:$0xff] %v1828
    %1861 = vst [vmem:[%s8 + $0x68] sm:$0xff] %v1829
    %1862 = vst [vmem:[%s8 + $0x70] sm:$0xff] %v1830
    %1863 = vst [vmem:[%s8 + $0x78] sm:$0xff] %v1831
    %1864 = vst [vmem:[%s8 + $0x80] sm:$0xff] %v1832
    %1865 = vst [vmem:[%s8 + $0x88] sm:$0xff] %v1833
    %1866 = vst [vmem:[%s8 + $0x90] sm:$0xff] %v1834
    %1867 = vst [vmem:[%s8 + $0x98] sm:$0xff] %v1835
    %1868 = vst [vmem:[%s8 + $0xa0] sm:$0xff] %v1836
    %1869 = vst [vmem:[%s8 + $0xa8] sm:$0xff] %v1837
    %1870 = vst [vmem:[%s8 + $0xb0] sm:$0xff] %v1838
    %1871 = vst [vmem:[%s8 + $0xb8] sm:$0xff] %v1839
    %1872 = vst [vmem:[%s8 + $0xc0] sm:$0xff] %v1840
    %1873 = vst [vmem:[%s8 + $0xc8] sm:$0xff] %v1841
    %1874 = vst [vmem:[%s8 + $0xd0] sm:$0xff] %v1842
    %1875 = vst [vmem:[%s8 + $0xd8] sm:$0xff] %v1843
    %1876 = vst [vmem:[%s8 + $0xe0] sm:$0xff] %v1844
    %1877 = vst [vmem:[%s8 + $0xe8] sm:$0xff] %v1845
    %1878 = vst [vmem:[%s8 + $0xf0] sm:$0xff] %v1846
    %1879 = vst [vmem:[%s8 + $0xf8] sm:$0xff] %v1847
    %v1880 = vpack.c.bf16 %v1817, %v1816
    %v1881 = vpack.c.bf16 %v1819, %v1818
    %v1882 = vpack.c.bf16 %v1821, %v1820
    %v1883 = vpack.c.bf16 %v1823, %v1822
    %v1884 = vpack.c.bf16 %v1825, %v1824
    %v1885 = vpack.c.bf16 %v1827, %v1826
    %v1886 = vpack.c.bf16 %v1829, %v1828
    %v1887 = vpack.c.bf16 %v1831, %v1830
    %v1888 = vpack.c.bf16 %v1833, %v1832
    %v1889 = vpack.c.bf16 %v1835, %v1834
    %v1890 = vpack.c.bf16 %v1837, %v1836
    %v1891 = vpack.c.bf16 %v1839, %v1838
    %v1892 = vpack.c.bf16 %v1841, %v1840
    %v1893 = vpack.c.bf16 %v1843, %v1842
    %v1894 = vpack.c.bf16 %v1845, %v1844
    %v1895 = vpack.c.bf16 %v1847, %v1846
    %v1912 = vunpack.c.l.b16 %v1880
    %v1913 = vunpack.c.h.b16 %v1880
    %v1914 = vunpack.c.l.b16 %v1881
    %v1915 = vunpack.c.h.b16 %v1881
    %v1916 = vunpack.c.l.b16 %v1882
    %v1917 = vunpack.c.h.b16 %v1882
    %v1918 = vunpack.c.l.b16 %v1883
    %v1919 = vunpack.c.h.b16 %v1883
    %v1920 = vunpack.c.l.b16 %v1884
    %v1921 = vunpack.c.h.b16 %v1884
    %v1922 = vunpack.c.l.b16 %v1885
    %v1923 = vunpack.c.h.b16 %v1885
    %v1924 = vunpack.c.l.b16 %v1886
    %v1925 = vunpack.c.h.b16 %v1886
    %v1926 = vunpack.c.l.b16 %v1887
    %v1927 = vunpack.c.h.b16 %v1887
    %v1928 = vunpack.c.l.b16 %v1888
    %v1929 = vunpack.c.h.b16 %v1888
    %v1930 = vunpack.c.l.b16 %v1889
    %v1931 = vunpack.c.h.b16 %v1889
    %v1932 = vunpack.c.l.b16 %v1890
    %v1933 = vunpack.c.h.b16 %v1890
    %v1934 = vunpack.c.l.b16 %v1891
    %v1935 = vunpack.c.h.b16 %v1891
    %v1936 = vunpack.c.l.b16 %v1892
    %v1937 = vunpack.c.h.b16 %v1892
    %v1938 = vunpack.c.l.b16 %v1893
    %v1939 = vunpack.c.h.b16 %v1893
    %v1940 = vunpack.c.l.b16 %v1894
    %v1941 = vunpack.c.h.b16 %v1894
    %v1942 = vunpack.c.l.b16 %v1895
    %v1943 = vunpack.c.h.b16 %v1895
    %v1944 = vpack.c.b16 %v1912, %v1912
    %v1945 = vpack.c.b16 %v1913, %v1913
    %v1946 = vpack.c.b16 %v1914, %v1914
    %v1947 = vpack.c.b16 %v1915, %v1915
    %v1948 = vpack.c.b16 %v1916, %v1916
    %v1949 = vpack.c.b16 %v1917, %v1917
    %v1950 = vpack.c.b16 %v1918, %v1918
    %v1951 = vpack.c.b16 %v1919, %v1919
    %v1952 = vpack.c.b16 %v1920, %v1920
    %v1953 = vpack.c.b16 %v1921, %v1921
    %v1954 = vpack.c.b16 %v1922, %v1922
    %v1955 = vpack.c.b16 %v1923, %v1923
    %v1956 = vpack.c.b16 %v1924, %v1924
    %v1957 = vpack.c.b16 %v1925, %v1925
    %v1958 = vpack.c.b16 %v1926, %v1926
    %v1959 = vpack.c.b16 %v1927, %v1927
    %v1960 = vpack.c.b16 %v1928, %v1928
    %v1961 = vpack.c.b16 %v1929, %v1929
    %v1962 = vpack.c.b16 %v1930, %v1930
    %v1963 = vpack.c.b16 %v1931, %v1931
    %v1964 = vpack.c.b16 %v1932, %v1932
    %v1965 = vpack.c.b16 %v1933, %v1933
    %v1966 = vpack.c.b16 %v1934, %v1934
    %v1967 = vpack.c.b16 %v1935, %v1935
    %v1968 = vpack.c.b16 %v1936, %v1936
    %v1969 = vpack.c.b16 %v1937, %v1937
    %v1970 = vpack.c.b16 %v1938, %v1938
    %v1971 = vpack.c.b16 %v1939, %v1939
    %v1972 = vpack.c.b16 %v1940, %v1940
    %v1973 = vpack.c.b16 %v1941, %v1941
    %v1974 = vpack.c.b16 %v1942, %v1942
    %v1975 = vpack.c.b16 %v1943, %v1943
    %2008 = vst [vmem:[%s9] sm:$0xf] %v1944
    %2009 = vst [vmem:[%s9 + $0x4] sm:$0xf] %v1945
    %2010 = vst [vmem:[%s9 + $0x8] sm:$0xf] %v1946
    %2011 = vst [vmem:[%s9 + $0xc] sm:$0xf] %v1947
    %2012 = vst [vmem:[%s9 + $0x10] sm:$0xf] %v1948
    %2013 = vst [vmem:[%s9 + $0x14] sm:$0xf] %v1949
    %2014 = vst [vmem:[%s9 + $0x18] sm:$0xf] %v1950
    %2015 = vst [vmem:[%s9 + $0x1c] sm:$0xf] %v1951
    %2016 = vst [vmem:[%s9 + $0x20] sm:$0xf] %v1952
    %2017 = vst [vmem:[%s9 + $0x24] sm:$0xf] %v1953
    %2018 = vst [vmem:[%s9 + $0x28] sm:$0xf] %v1954
    %2019 = vst [vmem:[%s9 + $0x2c] sm:$0xf] %v1955
    %2020 = vst [vmem:[%s9 + $0x30] sm:$0xf] %v1956
    %2021 = vst [vmem:[%s9 + $0x34] sm:$0xf] %v1957
    %2022 = vst [vmem:[%s9 + $0x38] sm:$0xf] %v1958
    %2023 = vst [vmem:[%s9 + $0x3c] sm:$0xf] %v1959
    %2024 = vst [vmem:[%s9 + $0x40] sm:$0xf] %v1960
    %2025 = vst [vmem:[%s9 + $0x44] sm:$0xf] %v1961
    %2026 = vst [vmem:[%s9 + $0x48] sm:$0xf] %v1962
    %2027 = vst [vmem:[%s9 + $0x4c] sm:$0xf] %v1963
    %2028 = vst [vmem:[%s9 + $0x50] sm:$0xf] %v1964
    %2029 = vst [vmem:[%s9 + $0x54] sm:$0xf] %v1965
    %2030 = vst [vmem:[%s9 + $0x58] sm:$0xf] %v1966
    %2031 = vst [vmem:[%s9 + $0x5c] sm:$0xf] %v1967
    %2032 = vst [vmem:[%s9 + $0x60] sm:$0xf] %v1968
    %2033 = vst [vmem:[%s9 + $0x64] sm:$0xf] %v1969
    %2034 = vst [vmem:[%s9 + $0x68] sm:$0xf] %v1970
    %2035 = vst [vmem:[%s9 + $0x6c] sm:$0xf] %v1971
    %2036 = vst [vmem:[%s9 + $0x70] sm:$0xf] %v1972
    %2037 = vst [vmem:[%s9 + $0x74] sm:$0xf] %v1973
    %2038 = vst [vmem:[%s9 + $0x78] sm:$0xf] %v1974
    %2039 = vst [vmem:[%s9 + $0x7c] sm:$0xf] %v1975
  $region41: #{ngcf_forward.5} parent=0 // pred_fallthru
    _
  // Predicated region
  $region42: #{ngcf_forward.5} parent=0 // pred_check
    _
  $region43: #{ngcf_forward.5} parent=0 // pred_check_branch
    %2041 = sbr.rel (0) target = $region45
  $region44: #{ngcf_forward.5} parent=0 // pred_region
    _
  $region45: #{ngcf_forward.5} parent=0 // pred_fallthru
    _
  // Predicated region
  $region46: #{ngcf_forward.5} parent=0 // pred_check
    _
  $region47: #{ngcf_forward.5} parent=0 // pred_check_branch
    %2043 = sbr.rel (0) target = $region49
  $region48: #{ngcf_forward.5} parent=0 // pred_region
    _
  $region49: #{ngcf_forward.5} parent=0 // pred_fallthru
    _
  // Predicated region
  $region50: #{ngcf_forward.5} parent=0 // pred_check
    _
  $region51: #{ngcf_forward.5} parent=0 // pred_check_branch
    %2045 = sbr.rel (0) target = $region53
  $region52: #{ngcf_forward.5} parent=0 // pred_region
    _
  $region53: #{ngcf_forward.5} parent=0 // pred_fallthru
    _
  // Predicated region
  $region54: #{ngcf_forward.5} parent=0 // pred_check
    _
  $region55: #{ngcf_forward.5} parent=0 // pred_check_branch
    %2047 = sbr.rel (0) target = $region57
  $region56: #{ngcf_forward.5} parent=0 // pred_region
    _
  $region57: #{ngcf_forward.5} parent=0 // pred_fallthru
    _

</llo_original>
